<compile_context>
chip_gen: v5e
topology: v5e:2x2
jax: 0.10.0
libtpu: 0.0.40
codegen_flags: <defaults>
</compile_context>

<pallas_src>
import functools

import jax
import jax.numpy as jnp
from jax.experimental import pallas as pl
from jax.experimental.pallas import tpu as pltpu


_PAD = 8   # sublane-aligned signal start row & zeroed pad-strip height in the conv scratch


def _vmem_limit_bytes():
    # Generation-aware VMEM budget: ~75% of physical capacity (v5e/v6e: 128 MiB -> ~96 MiB,
    # v7x: 64 MiB -> 48 MiB), clamped to a sane range.
    cap = 128 * 1024 * 1024
    try:
        cap = int(getattr(pltpu.get_tpu_info(), "vmem_capacity_bytes", cap))
    except Exception:
        pass
    return max(32 * 1024 * 1024, min((cap * 3) // 4, 100 * 1024 * 1024))


# ----------------------------------------------------------------------------- fused kernel

def _masknet_kernel(x_ref, gnw_ref, gnb_ref, msw_ref, msb_ref, fw_ref, fb_ref,
                    ew_ref, emb_ref, lnw_ref, lnb_ref, ignw_ref, ignb_ref,
                    alpha_ref, caw1_ref, cab1_ref, caw2_ref, cab2_ref,
                    ow_ref, ob_ref, ogw_ref, ogb_ref, dw_ref,
                    o_ref, xpad_ref, *, eps_gn, eps_ln):
    S, Cin = x_ref.shape[1], x_ref.shape[2]
    C = ew_ref.shape[1]
    num_spks = o_ref.shape[0]
    k_max = msw_ref.shape[0] // Cin
    pad = (k_max - 1) // 2

    x = x_ref[0]                                        # (S, Cin) f32

    # --- self.norm: GroupNorm(1, Cin, eps=1e-8): global stats over (S, Cin), per-ch affine.
    mean = jnp.mean(x)
    var = jnp.mean((x - mean) ** 2)
    xn = (x - mean) * jax.lax.rsqrt(var + eps_gn) * gnw_ref[...] + gnb_ref[...]

    # --- multi-scale convs (k = 3/5/7/1) folded into ONE im2col matmul (K = k_max*Cin).
    # Only the _PAD pad rows above/below the signal are zeroed; the interior store is
    # sublane-aligned at row _PAD; the 7 tap views are shifted static slices of the scratch.
    zpad = jnp.zeros((_PAD, Cin), jnp.float32)
    xpad_ref[:_PAD, :] = zpad
    xpad_ref[_PAD + S:, :] = zpad
    xpad_ref[_PAD:_PAD + S, :] = xn
    cat = jnp.concatenate(
        [xpad_ref[_PAD - pad + t:_PAD - pad + t + S, :] for t in range(k_max)], axis=1)
    ms = jnp.maximum(
        jnp.dot(cat.astype(msw_ref.dtype), msw_ref[...],
                preferred_element_type=jnp.float32) + msb_ref[...], 0.0)    # (S, Cin)

    # --- multi_scale_fusion 1x1 -> conv1d_encoder 1x1 (bias=False) -> + positional emb.
    xe = jnp.dot(ms.astype(fw_ref.dtype), fw_ref[...],
                 preferred_element_type=jnp.float32) + fb_ref[...]
    xe = jnp.dot(xe.astype(ew_ref.dtype), ew_ref[...],
                 preferred_element_type=jnp.float32)
    xm = xe + emb_ref[...]                               # (S, C): input to self.mdl

    # --- MossFormerM trailing LayerNorm (eps=1e-6) over channels.
    # TODO(synk): MossformerBlock_GFSMN 24-layer stack not in reference source; identity here.
    m = jnp.mean(xm, axis=-1, keepdims=True)
    v = jnp.mean((xm - m) ** 2, axis=-1, keepdims=True)
    y = (xm - m) * jax.lax.rsqrt(v + eps_ln) * lnw_ref[...] + lnb_ref[...]

    # --- intra_norm GroupNorm(1, C) -> skip_around_intra -> PReLU.
    m2 = jnp.mean(y)
    v2 = jnp.mean((y - m2) ** 2)
    y = (y - m2) * jax.lax.rsqrt(v2 + eps_gn) * ignw_ref[...] + ignb_ref[...]
    y = y + xm
    alpha = alpha_ref[0]
    y = jnp.where(y > 0, y, alpha * y)

    # --- channel attention: avg-pool over time -> FC -> ReLU -> FC -> sigmoid -> scale.
    pooled = jnp.mean(y, axis=0, keepdims=True)          # (1, C)
    h = jnp.maximum(
        jnp.dot(pooled.astype(caw1_ref.dtype), caw1_ref[...],
                preferred_element_type=jnp.float32) + cab1_ref[...], 0.0)
    att = jax.nn.sigmoid(
        jnp.dot(h.astype(caw2_ref.dtype), caw2_ref[...],
                preferred_element_type=jnp.float32) + cab2_ref[...])
    y = y * att

    # --- conv1d_out for ALL speakers in one matmul (weights stay resident, no per-speaker
    # re-DMA), then per-speaker output * output_gate -> conv1_decoder -> ReLU.
    yo = jnp.dot(y.astype(ow_ref.dtype), ow_ref[...],
                 preferred_element_type=jnp.float32) + ob_ref[...]          # (S, spks*C)
    for k in range(num_spks):                            # static, unrolled speaker loop
        yk = yo[:, k * C:(k + 1) * C].astype(ogw_ref.dtype)
        og = jnp.dot(yk, ogw_ref[...], preferred_element_type=jnp.float32) + ogb_ref[...]
        gated = jnp.tanh(og[:, :C]) * jax.nn.sigmoid(og[:, C:])
        z = jnp.dot(gated.astype(dw_ref.dtype), dw_ref[...],
                    preferred_element_type=jnp.float32)
        o_ref[k, 0] = jnp.maximum(z, 0.0).astype(o_ref.dtype)


# ----------------------------------------------------------------------------- wrapper

def forward(x, pp):
    """x: [B, N_in, S] (PyTorch NCS).  Returns [num_spks, B, N_in, S]."""
    B, Nin, S = x.shape
    C = pp["ew"].shape[1]
    num_spks = pp["ow"].shape[1] // C
    H = pp["ca_w1"].shape[1]
    KC, Cms = pp["msw"].shape
    assert (KC // Nin - 1) // 2 <= _PAD

    xc = jnp.transpose(x, (0, 2, 1))                         # channels-last [B, S, Nin]
    emb = scaled_sinu_embedding(S, C, pp["pos_scale"])       # (S, C)

    def _full(shape):
        nd = len(shape)
        return pl.BlockSpec(shape, lambda b, _n=nd: (0,) * _n)

    out = pl.pallas_call(
        functools.partial(_masknet_kernel, eps_gn=1e-8, eps_ln=1e-6),
        out_shape=jax.ShapeDtypeStruct((num_spks, B, S, Nin), jnp.float32),
        grid=(B,),
        in_specs=[
            pl.BlockSpec((1, S, Nin), lambda b: (b, 0, 0)),      # x (channels-last)
            _full((1, Nin)), _full((1, Nin)),                    # GroupNorm affine
            _full((KC, Cms)), _full((1, Cms)),                   # im2col multi-scale w / b
            _full((Nin, C)), _full((1, C)),                      # fusion w / b
            _full((C, C)),                                       # encoder w
            _full((S, C)),                                       # positional embedding
            _full((1, C)), _full((1, C)),                        # MossFormerM LayerNorm
            _full((1, C)), _full((1, C)),                        # intra GroupNorm
            pl.BlockSpec(memory_space=pltpu.MemorySpace.SMEM),   # PReLU alpha (scalar)
            _full((C, H)), _full((1, H)),                        # channel attention FC1
            _full((H, C)), _full((1, C)),                        # channel attention FC2
            _full((C, num_spks * C)), _full((1, num_spks * C)),  # conv1d_out (all speakers)
            _full((C, 2 * C)), _full((1, 2 * C)),                # output | output_gate
            _full((C, Nin)),                                     # conv1_decoder
        ],
        out_specs=pl.BlockSpec((num_spks, 1, S, Nin), lambda b: (0, b, 0, 0)),
        scratch_shapes=[pltpu.VMEM((S + 2 * _PAD, Nin), jnp.float32)],
        compiler_params=pltpu.CompilerParams(
            dimension_semantics=("parallel",),
            vmem_limit_bytes=_vmem_limit_bytes()),
    )(xc, pp["gn_w"], pp["gn_b"], pp["msw"], pp["msb"], pp["fw"], pp["fb"],
      pp["ew"], emb, pp["ln_w"], pp["ln_b"], pp["ign_w"], pp["ign_b"],
      pp["prelu_alpha"], pp["ca_w1"], pp["ca_b1"], pp["ca_w2"], pp["ca_b2"],
      pp["ow"], pp["ob"], pp["ogw"], pp["ogb"], pp["dec_w"])

    return jnp.transpose(out, (0, 1, 3, 2))                  # [spks, B, N_in, S]


# ----------------------------------------------------------------------------- params / glue

def scaled_sinu_embedding(S, dim, scale):
    # TODO(synk): ScaledSinuEmbedding source is not part of the reference; a standard sin|cos
    # embedding with a learnable scalar scale (init 1.0) is reproduced here.
    inv_freq = 1.0 / (10000.0 ** (jnp.arange(0, dim, 2, dtype=jnp.float32) / dim))
    t = jnp.arange(S, dtype=jnp.float32)
    sinu = t[:, None] * inv_freq[None, :]
    return jnp.concatenate([jnp.sin(sinu), jnp.cos(sinu)], axis=-1) * scale   # (S, dim)


def init_params(key, in_ch, out_ch, num_spks):
    assert in_ch % 4 == 0 and out_ch % 8 == 0
    assert in_ch == out_ch, "conv1d_encoder in the reference requires in_ch == out_ch"
    q = in_ch // 4
    h = out_ch // 8
    ks = iter(jax.random.split(key, 24))

    def w(shape, scale=0.1):
        return scale * jax.random.normal(next(ks), shape, jnp.float32)

    return {
        # self.norm: GroupNorm(1, in_ch, eps=1e-8)
        "norm_w": jnp.ones((in_ch,), jnp.float32),
        "norm_b": jnp.zeros((in_ch,), jnp.float32),
        # multi-scale convs (PyTorch Conv1d weight layout [Cout, Cin, k])
        "ms1_w": w((q, in_ch, 3)), "ms1_b": w((q,), 0.05),
        "ms2_w": w((q, in_ch, 5)), "ms2_b": w((q,), 0.05),
        "ms3_w": w((q, in_ch, 7)), "ms3_b": w((q,), 0.05),
        "ms4_w": w((q, in_ch, 1)), "ms4_b": w((q,), 0.05),
        "fusion_w": w((out_ch, in_ch, 1)), "fusion_b": w((out_ch,), 0.05),
        # conv1d_encoder (bias=False)
        "enc_w": w((out_ch, in_ch, 1)),
        # ScaledSinuEmbedding learnable scale
        "pos_scale": jnp.array(1.0, jnp.float32),
        # MossFormerM trailing LayerNorm (eps=1e-6)
        "mfm_ln_w": jnp.ones((out_ch,), jnp.float32),
        "mfm_ln_b": jnp.zeros((out_ch,), jnp.float32),
        # Computation_Block intra_norm: GroupNorm(1, out_ch, eps=1e-8)
        "intra_norm_w": jnp.ones((out_ch,), jnp.float32),
        "intra_norm_b": jnp.zeros((out_ch,), jnp.float32),
        # PReLU (single shared parameter, init 0.25)
        "prelu_alpha": jnp.full((1,), 0.25, jnp.float32),
        # channel attention FCs (1x1 convs)
        "ca_w1": w((h, out_ch, 1)), "ca_b1": w((h,), 0.05),
        "ca_w2": w((out_ch, h, 1)), "ca_b2": w((out_ch,), 0.05),
        # conv1d_out: out_ch -> out_ch * num_spks (with bias)
        "out_w": w((out_ch * num_spks, out_ch, 1)), "out_b": w((out_ch * num_spks,), 0.05),
        # output / output_gate 1x1 convs
        "og_wo": w((out_ch, out_ch, 1)), "og_bo": w((out_ch,), 0.05),
        "og_wg": w((out_ch, out_ch, 1)), "og_bg": w((out_ch,), 0.05),
        # conv1_decoder: out_ch -> in_ch (bias=False)
        "dec_w": w((in_ch, out_ch, 1)),
    }


def pack_params(p):
    """Repack raw PyTorch-layout weights into the fused-kernel layouts: right-multiply
    (Cin, Cout) bf16 matmul weights, (1, C) f32 biases / norm params, and the four
    multi-scale convs folded into a single im2col weight of K = 7*Cin.
    Note: at realistic MossFormer sizes (C = Nin = 512) every lane dim is already a
    multiple of 128, so no extra channel padding is applied here."""
    bf = jnp.bfloat16
    in_ch = p["ms1_w"].shape[1]
    q = p["ms1_w"].shape[0]
    assert p["enc_w"].shape[0] == p["enc_w"].shape[1], \
        "conv1d_encoder requires in_ch == out_ch (inherited from the reference)"
    k_max = p["ms3_w"].shape[2]                        # 7 (largest kernel)
    pad_max = (k_max - 1) // 2

    # Fold the four branches into packed[t, ci, o]; tap t of the packed weight corresponds
    # to branch tap j = t - (pad_max - pad_branch).  Flattened row index = t*Cin + ci, which
    # matches the kernel's im2col concat (tap-major, then channel).
    packed = jnp.zeros((k_max, in_ch, 4 * q), jnp.float32)

    def _place(dst, wb, col0):
        k = wb.shape[2]
        off = pad_max - (k - 1) // 2
        return dst.at[off:off + k, :, col0:col0 + q].set(jnp.transpose(wb, (2, 1, 0)))

    packed = _place(packed, p["ms1_w"], 0)
    packed = _place(packed, p["ms2_w"], q)
    packed = _place(packed, p["ms3_w"], 2 * q)
    packed = _place(packed, p["ms4_w"], 3 * q)
    msw = packed.reshape(k_max * in_ch, 4 * q)
    msb = jnp.concatenate([p["ms1_b"], p["ms2_b"], p["ms3_b"], p["ms4_b"]])[None, :]

    row = lambda a: a[None, :]
    t2 = lambda wc: jnp.transpose(wc[:, :, 0])         # (Cout, Cin, 1) -> (Cin, Cout)
    return {
        "gn_w": row(p["norm_w"]), "gn_b": row(p["norm_b"]),
        "msw": msw.astype(bf), "msb": msb,
        "fw": t2(p["fusion_w"]).astype(bf), "fb": row(p["fusion_b"]),
        "ew": t2(p["enc_w"]).astype(bf),
        "pos_scale": p["pos_scale"],
        "ln_w": row(p["mfm_ln_w"]), "ln_b": row(p["mfm_ln_b"]),
        "ign_w": row(p["intra_norm_w"]), "ign_b": row(p["intra_norm_b"]),
        "prelu_alpha": p["prelu_alpha"],
        "ca_w1": t2(p["ca_w1"]).astype(bf), "ca_b1": row(p["ca_b1"]),
        "ca_w2": t2(p["ca_w2"]).astype(bf), "ca_b2": row(p["ca_b2"]),
        "ow": t2(p["out_w"]).astype(bf), "ob": row(p["out_b"]),
        "ogw": jnp.concatenate([t2(p["og_wo"]), t2(p["og_wg"])], axis=1).astype(bf),
        "ogb": jnp.concatenate([p["og_bo"], p["og_bg"]])[None, :],
        "dec_w": t2(p["dec_w"]).astype(bf),
    }


# ----------------------------------------------------------------------------- pure-JAX reference

def reference_forward(x, p):
    """Pure-JAX (XLA) reference that follows the PyTorch graph op-for-op, with the same
    bf16 casts at every matmul/conv input as the kernel (f32 accumulation and norm math)."""
    bf, f32 = jnp.bfloat16, jnp.float32
    eps_gn, eps_ln = 1e-8, 1e-6
    B, Nin, S = x.shape
    C = p["fusion_w"].shape[0]
    num_spks = p["out_w"].shape[0] // C

    def mm(w2d, h, b=None):                 # 1x1 conv: w2d [Cout, Cin], h [B, Cin, S]
        y = jnp.einsum("oi,bis->bos", w2d.astype(bf), h.astype(bf),
                       preferred_element_type=f32)
        return y if b is None else y + b[None, :, None]

    def convk(h, w, b):                     # k-tap 'same' conv: w [Cout, Cin, k]
        k = w.shape[2]
        pad = (k - 1) // 2
        hp = jnp.pad(h, ((0, 0), (0, 0), (pad, pad)))
        y = sum(jnp.einsum("oi,bis->bos", w[:, :, t].astype(bf),
                           hp[:, :, t:t + S].astype(bf), preferred_element_type=f32)
                for t in range(k))
        return y + b[None, :, None]

    m = jnp.mean(x, axis=(1, 2), keepdims=True)
    v = jnp.mean((x - m) ** 2, axis=(1, 2), keepdims=True)
    xn = (x - m) * jax.lax.rsqrt(v + eps_gn) * p["norm_w"][None, :, None] \
        + p["norm_b"][None, :, None]

    ms = jnp.concatenate(
        [jax.nn.relu(convk(xn, p["ms1_w"], p["ms1_b"])),
         jax.nn.relu(convk(xn, p["ms2_w"], p["ms2_b"])),
         jax.nn.relu(convk(xn, p["ms3_w"], p["ms3_b"])),
         jax.nn.relu(convk(xn, p["ms4_w"], p["ms4_b"]))], axis=1)
    x_enh = mm(p["fusion_w"][:, :, 0], ms, p["fusion_b"])
    xe = mm(p["enc_w"][:, :, 0], x_enh)
    emb = scaled_sinu_embedding(S, C, p["pos_scale"])        # (S, C)
    xm = xe + jnp.transpose(emb)[None]

    # TODO(synk): MossformerBlock_GFSMN treated as identity (matches the kernel).
    m = jnp.mean(xm, axis=1, keepdims=True)
    v = jnp.mean((xm - m) ** 2, axis=1, keepdims=True)
    y = (xm - m) * jax.lax.rsqrt(v + eps_ln) * p["mfm_ln_w"][None, :, None] \
        + p["mfm_ln_b"][None, :, None]
    m = jnp.mean(y, axis=(1, 2), keepdims=True)
    v = jnp.mean((y - m) ** 2, axis=(1, 2), keepdims=True)
    y = (y - m) * jax.lax.rsqrt(v + eps_gn) * p["intra_norm_w"][None, :, None] \
        + p["intra_norm_b"][None, :, None]
    y = y + xm
    a = p["prelu_alpha"][0]
    y = jnp.where(y > 0, y, a * y)

    pooled = jnp.mean(y, axis=2, keepdims=True)
    h = jax.nn.relu(mm(p["ca_w1"][:, :, 0], pooled, p["ca_b1"]))
    att = jax.nn.sigmoid(mm(p["ca_w2"][:, :, 0], h, p["ca_b2"]))
    y = y * att

    yo = mm(p["out_w"][:, :, 0], y, p["out_b"]).reshape(B * num_spks, C, S)
    o = jnp.tanh(mm(p["og_wo"][:, :, 0], yo, p["og_bo"]))
    g = jax.nn.sigmoid(mm(p["og_wg"][:, :, 0], yo, p["og_bg"]))
    z = jax.nn.relu(mm(p["dec_w"][:, :, 0], o * g)).reshape(B, num_spks, Nin, S)
    return jnp.transpose(z, (1, 0, 2, 3))


# ----------------------------------------------------------------------------- main

if __name__ == "__main__":
    B, in_ch, out_ch, S, num_spks = 2, 32, 32, 64, 2
    key = jax.random.PRNGKey(0)
    kx, kp = jax.random.split(key)
    x = jax.random.normal(kx, (B, in_ch, S), jnp.float32)

    params = init_params(kp, in_ch, out_ch, num_spks)
    packed = pack_params(params)

    fwd = jax.jit(forward)
    out = jax.block_until_ready(fwd(x, packed))

    assert out.shape == (num_spks, B, in_ch, S), out.shape
    assert bool(jnp.all(jnp.isfinite(out)))
    assert bool(jnp.all(out >= 0.0))                          # final ReLU

    ref = reference_forward(x, params)
    err = float(jnp.max(jnp.abs(out - ref)))
    assert err < 1e-2, f"max abs error vs pure-JAX reference: {err}"
    print("KERNEL_OK")
</pallas_src>

<mosaic_0001>
module attributes {stable_mosaic.version = 11 : i64} {
  func.func @_masknet_kernel(%arg0: i32, %arg1: memref<1x64x32xf32, #tpu.memory_space<vmem>>, %arg2: memref<1x32xf32, #tpu.memory_space<vmem>>, %arg3: memref<1x32xf32, #tpu.memory_space<vmem>>, %arg4: memref<224x32xbf16, #tpu.memory_space<vmem>>, %arg5: memref<1x32xf32, #tpu.memory_space<vmem>>, %arg6: memref<32x32xbf16, #tpu.memory_space<vmem>>, %arg7: memref<1x32xf32, #tpu.memory_space<vmem>>, %arg8: memref<32x32xbf16, #tpu.memory_space<vmem>>, %arg9: memref<64x32xf32, #tpu.memory_space<vmem>>, %arg10: memref<1x32xf32, #tpu.memory_space<vmem>>, %arg11: memref<1x32xf32, #tpu.memory_space<vmem>>, %arg12: memref<1x32xf32, #tpu.memory_space<vmem>>, %arg13: memref<1x32xf32, #tpu.memory_space<vmem>>, %arg14: memref<1xf32, #tpu.memory_space<smem>>, %arg15: memref<32x4xbf16, #tpu.memory_space<vmem>>, %arg16: memref<1x4xf32, #tpu.memory_space<vmem>>, %arg17: memref<4x32xbf16, #tpu.memory_space<vmem>>, %arg18: memref<1x32xf32, #tpu.memory_space<vmem>>, %arg19: memref<32x64xbf16, #tpu.memory_space<vmem>>, %arg20: memref<1x64xf32, #tpu.memory_space<vmem>>, %arg21: memref<32x64xbf16, #tpu.memory_space<vmem>>, %arg22: memref<1x64xf32, #tpu.memory_space<vmem>>, %arg23: memref<32x32xbf16, #tpu.memory_space<vmem>>, %arg24: memref<2x1x64x32xf32, #tpu.memory_space<vmem>>, %arg25: memref<80x32xf32, #tpu.memory_space<vmem>>) attributes {dimension_semantics = [#tpu.dimension_semantics<parallel>], iteration_bounds = array<i64: 2>, scalar_prefetch = 0 : i64, scratch_operands = 1 : i64, tpu.core_type = #tpu.core_type<tc>, window_params = [{transform_indices = @transform_0, window_bounds = array<i64: 1, 64, 32>}, {pipeline_mode = #tpu.pipeline_mode<synchronous>, transform_indices = @transform_1, window_bounds = array<i64: 1, 32>}, {pipeline_mode = #tpu.pipeline_mode<synchronous>, transform_indices = @transform_2, window_bounds = array<i64: 1, 32>}, {pipeline_mode = #tpu.pipeline_mode<synchronous>, transform_indices = @transform_3, window_bounds = array<i64: 224, 32>}, {pipeline_mode = #tpu.pipeline_mode<synchronous>, transform_indices = @transform_4, window_bounds = array<i64: 1, 32>}, {pipeline_mode = #tpu.pipeline_mode<synchronous>, transform_indices = @transform_5, window_bounds = array<i64: 32, 32>}, {pipeline_mode = #tpu.pipeline_mode<synchronous>, transform_indices = @transform_6, window_bounds = array<i64: 1, 32>}, {pipeline_mode = #tpu.pipeline_mode<synchronous>, transform_indices = @transform_7, window_bounds = array<i64: 32, 32>}, {pipeline_mode = #tpu.pipeline_mode<synchronous>, transform_indices = @transform_8, window_bounds = array<i64: 64, 32>}, {pipeline_mode = #tpu.pipeline_mode<synchronous>, transform_indices = @transform_9, window_bounds = array<i64: 1, 32>}, {pipeline_mode = #tpu.pipeline_mode<synchronous>, transform_indices = @transform_10, window_bounds = array<i64: 1, 32>}, {pipeline_mode = #tpu.pipeline_mode<synchronous>, transform_indices = @transform_11, window_bounds = array<i64: 1, 32>}, {pipeline_mode = #tpu.pipeline_mode<synchronous>, transform_indices = @transform_12, window_bounds = array<i64: 1, 32>}, {transform_indices = @transform_13, window_bounds = array<i64: 1>}, {pipeline_mode = #tpu.pipeline_mode<synchronous>, transform_indices = @transform_14, window_bounds = array<i64: 32, 4>}, {pipeline_mode = #tpu.pipeline_mode<synchronous>, transform_indices = @transform_15, window_bounds = array<i64: 1, 4>}, {pipeline_mode = #tpu.pipeline_mode<synchronous>, transform_indices = @transform_16, window_bounds = array<i64: 4, 32>}, {pipeline_mode = #tpu.pipeline_mode<synchronous>, transform_indices = @transform_17, window_bounds = array<i64: 1, 32>}, {pipeline_mode = #tpu.pipeline_mode<synchronous>, transform_indices = @transform_18, window_bounds = array<i64: 32, 64>}, {pipeline_mode = #tpu.pipeline_mode<synchronous>, transform_indices = @transform_19, window_bounds = array<i64: 1, 64>}, {pipeline_mode = #tpu.pipeline_mode<synchronous>, transform_indices = @transform_20, window_bounds = array<i64: 32, 64>}, {pipeline_mode = #tpu.pipeline_mode<synchronous>, transform_indices = @transform_21, window_bounds = array<i64: 1, 64>}, {pipeline_mode = #tpu.pipeline_mode<synchronous>, transform_indices = @transform_22, window_bounds = array<i64: 32, 32>}, {transform_indices = @transform_23, window_bounds = array<i64: 2, 1, 64, 32>}]} {
    %c0 = arith.constant 0 : index
    %c0_0 = arith.constant 0 : index
    %c0_1 = arith.constant 0 : index
    %0 = vector.load %arg1[%c0, %c0_0, %c0_1] : memref<1x64x32xf32, #tpu.memory_space<vmem>>, vector<1x64x32xf32>
    %1 = vector.shape_cast %0 : vector<1x64x32xf32> to vector<64x32xf32>
    %2 = vector.shape_cast %1 : vector<64x32xf32> to vector<1x64x32xf32>
    %cst = arith.constant dense<0.000000e+00> : vector<1xf32>
    %3 = vector.multi_reduction <add>, %2, %cst [1, 2] : vector<1x64x32xf32> to vector<1xf32>
    %4 = vector.shape_cast %3 : vector<1xf32> to vector<1x1x1xf32>
    %5 = vector.extract %4[0, 0, 0] : f32 from vector<1x1x1xf32>
    %cst_2 = arith.constant 2.048000e+03 : f32
    %6 = arith.divf %5, %cst_2 : f32
    %7 = vector.broadcast %6 : f32 to vector<64x32xf32>
    %8 = arith.subf %1, %7 : vector<64x32xf32>
    %9 = arith.mulf %8, %8 : vector<64x32xf32>
    %10 = vector.shape_cast %9 : vector<64x32xf32> to vector<1x64x32xf32>
    %cst_3 = arith.constant dense<0.000000e+00> : vector<1xf32>
    %11 = vector.multi_reduction <add>, %10, %cst_3 [1, 2] : vector<1x64x32xf32> to vector<1xf32>
    %12 = vector.shape_cast %11 : vector<1xf32> to vector<1x1x1xf32>
    %13 = vector.extract %12[0, 0, 0] : f32 from vector<1x1x1xf32>
    %cst_4 = arith.constant 2.048000e+03 : f32
    %14 = arith.divf %13, %cst_4 : f32
    %15 = vector.broadcast %6 : f32 to vector<64x32xf32>
    %16 = arith.subf %1, %15 : vector<64x32xf32>
    %cst_5 = arith.constant 9.99999993E-9 : f32
    %17 = arith.addf %14, %cst_5 : f32
    %18 = math.rsqrt %17 : f32
    %19 = vector.broadcast %18 : f32 to vector<64x32xf32>
    %20 = arith.mulf %16, %19 : vector<64x32xf32>
    %c0_6 = arith.constant 0 : index
    %c0_7 = arith.constant 0 : index
    %21 = vector.load %arg2[%c0_6, %c0_7] : memref<1x32xf32, #tpu.memory_space<vmem>>, vector<1x32xf32>
    %22 = vector.broadcast %21 : vector<1x32xf32> to vector<64x32xf32>
    %23 = arith.mulf %20, %22 : vector<64x32xf32>
    %c0_8 = arith.constant 0 : index
    %c0_9 = arith.constant 0 : index
    %24 = vector.load %arg3[%c0_8, %c0_9] : memref<1x32xf32, #tpu.memory_space<vmem>>, vector<1x32xf32>
    %25 = vector.broadcast %24 : vector<1x32xf32> to vector<64x32xf32>
    %26 = arith.addf %23, %25 : vector<64x32xf32>
    %cst_10 = arith.constant 0.000000e+00 : f32
    %27 = vector.broadcast %cst_10 : f32 to vector<8x32xf32>
    %c0_11 = arith.constant 0 : index
    %c0_12 = arith.constant 0 : index
    %28 = vector.load %arg25[%c0_11, %c0_12] : memref<80x32xf32, #tpu.memory_space<vmem>>, vector<8x32xf32>
    tpu.vector_store %arg25[%c0_11, %c0_12], %27 {strides = array<i32>} : memref<80x32xf32, #tpu.memory_space<vmem>>, vector<8x32xf32>,
    %c72 = arith.constant 72 : index
    %c0_13 = arith.constant 0 : index
    %29 = vector.load %arg25[%c72, %c0_13] : memref<80x32xf32, #tpu.memory_space<vmem>>, vector<8x32xf32>
    tpu.vector_store %arg25[%c72, %c0_13], %27 {strides = array<i32>} : memref<80x32xf32, #tpu.memory_space<vmem>>, vector<8x32xf32>,
    %c8 = arith.constant 8 : index
    %c0_14 = arith.constant 0 : index
    %30 = vector.load %arg25[%c8, %c0_14] : memref<80x32xf32, #tpu.memory_space<vmem>>, vector<64x32xf32>
    tpu.vector_store %arg25[%c8, %c0_14], %26 {strides = array<i32>} : memref<80x32xf32, #tpu.memory_space<vmem>>, vector<64x32xf32>,
    %c5 = arith.constant 5 : index
    %c0_15 = arith.constant 0 : index
    %31 = vector.load %arg25[%c5, %c0_15] : memref<80x32xf32, #tpu.memory_space<vmem>>, vector<64x32xf32>
    %c6 = arith.constant 6 : index
    %c0_16 = arith.constant 0 : index
    %32 = vector.load %arg25[%c6, %c0_16] : memref<80x32xf32, #tpu.memory_space<vmem>>, vector<64x32xf32>
    %c7 = arith.constant 7 : index
    %c0_17 = arith.constant 0 : index
    %33 = vector.load %arg25[%c7, %c0_17] : memref<80x32xf32, #tpu.memory_space<vmem>>, vector<64x32xf32>
    %c8_18 = arith.constant 8 : index
    %c0_19 = arith.constant 0 : index
    %34 = vector.load %arg25[%c8_18, %c0_19] : memref<80x32xf32, #tpu.memory_space<vmem>>, vector<64x32xf32>
    %c9 = arith.constant 9 : index
    %c0_20 = arith.constant 0 : index
    %35 = vector.load %arg25[%c9, %c0_20] : memref<80x32xf32, #tpu.memory_space<vmem>>, vector<64x32xf32>
    %c10 = arith.constant 10 : index
    %c0_21 = arith.constant 0 : index
    %36 = vector.load %arg25[%c10, %c0_21] : memref<80x32xf32, #tpu.memory_space<vmem>>, vector<64x32xf32>
    %c11 = arith.constant 11 : index
    %c0_22 = arith.constant 0 : index
    %37 = vector.load %arg25[%c11, %c0_22] : memref<80x32xf32, #tpu.memory_space<vmem>>, vector<64x32xf32>
    %38 = tpu.concatenate %31, %32, %33, %34, %35, %36, %37 in 1 : vector<64x32xf32>, vector<64x32xf32>, vector<64x32xf32>, vector<64x32xf32>, vector<64x32xf32>, vector<64x32xf32>, vector<64x32xf32> -> vector<64x224xf32>
    %39 = arith.truncf %38 : vector<64x224xf32> to vector<64x224xbf16>
    %c0_23 = arith.constant 0 : index
    %c0_24 = arith.constant 0 : index
    %40 = vector.load %arg4[%c0_23, %c0_24] : memref<224x32xbf16, #tpu.memory_space<vmem>>, vector<224x32xbf16>
    %cst_25 = arith.constant dense<0.000000e+00> : vector<64x32xf32>
    %41 = tpu.matmul %39, %40, %cst_25 {dimension_numbers = #tpu.dot_dimension_numbers<[1], [0], [0], [1], [0, 0, 1, 1], [], []>} : vector<64x224xbf16>, vector<224x32xbf16>, vector<64x32xf32> -> vector<64x32xf32>
    %c0_26 = arith.constant 0 : index
    %c0_27 = arith.constant 0 : index
    %42 = vector.load %arg5[%c0_26, %c0_27] : memref<1x32xf32, #tpu.memory_space<vmem>>, vector<1x32xf32>
    %43 = vector.broadcast %42 : vector<1x32xf32> to vector<64x32xf32>
    %44 = arith.addf %41, %43 : vector<64x32xf32>
    %cst_28 = arith.constant 0.000000e+00 : f32
    %45 = vector.broadcast %cst_28 : f32 to vector<64x32xf32>
    %46 = arith.maximumf %44, %45 : vector<64x32xf32>
    %47 = arith.truncf %46 : vector<64x32xf32> to vector<64x32xbf16>
    %c0_29 = arith.constant 0 : index
    %c0_30 = arith.constant 0 : index
    %48 = vector.load %arg6[%c0_29, %c0_30] : memref<32x32xbf16, #tpu.memory_space<vmem>>, vector<32x32xbf16>
    %cst_31 = arith.constant dense<0.000000e+00> : vector<64x32xf32>
    %49 = tpu.matmul %47, %48, %cst_31 {dimension_numbers = #tpu.dot_dimension_numbers<[1], [0], [0], [1], [0, 0, 1, 1], [], []>} : vector<64x32xbf16>, vector<32x32xbf16>, vector<64x32xf32> -> vector<64x32xf32>
    %c0_32 = arith.constant 0 : index
    %c0_33 = arith.constant 0 : index
    %50 = vector.load %arg7[%c0_32, %c0_33] : memref<1x32xf32, #tpu.memory_space<vmem>>, vector<1x32xf32>
    %51 = vector.broadcast %50 : vector<1x32xf32> to vector<64x32xf32>
    %52 = arith.addf %49, %51 : vector<64x32xf32>
    %53 = arith.truncf %52 : vector<64x32xf32> to vector<64x32xbf16>
    %c0_34 = arith.constant 0 : index
    %c0_35 = arith.constant 0 : index
    %54 = vector.load %arg8[%c0_34, %c0_35] : memref<32x32xbf16, #tpu.memory_space<vmem>>, vector<32x32xbf16>
    %cst_36 = arith.constant dense<0.000000e+00> : vector<64x32xf32>
    %55 = tpu.matmul %53, %54, %cst_36 {dimension_numbers = #tpu.dot_dimension_numbers<[1], [0], [0], [1], [0, 0, 1, 1], [], []>} : vector<64x32xbf16>, vector<32x32xbf16>, vector<64x32xf32> -> vector<64x32xf32>
    %c0_37 = arith.constant 0 : index
    %c0_38 = arith.constant 0 : index
    %56 = vector.load %arg9[%c0_37, %c0_38] : memref<64x32xf32, #tpu.memory_space<vmem>>, vector<64x32xf32>
    %57 = arith.addf %55, %56 : vector<64x32xf32>
    %cst_39 = arith.constant dense<0.000000e+00> : vector<64xf32>
    %58 = vector.multi_reduction <add>, %57, %cst_39 [1] : vector<64x32xf32> to vector<64xf32>
    %59 = vector.shape_cast %58 : vector<64xf32> to vector<64x1xf32>
    %cst_40 = arith.constant 3.200000e+01 : f32
    %60 = vector.broadcast %cst_40 : f32 to vector<64x1xf32>
    %61 = arith.divf %59, %60 : vector<64x1xf32>
    %62 = vector.broadcast %61 : vector<64x1xf32> to vector<64x32xf32>
    %63 = arith.subf %57, %62 : vector<64x32xf32>
    %64 = arith.mulf %63, %63 : vector<64x32xf32>
    %cst_41 = arith.constant dense<0.000000e+00> : vector<64xf32>
    %65 = vector.multi_reduction <add>, %64, %cst_41 [1] : vector<64x32xf32> to vector<64xf32>
    %66 = vector.shape_cast %65 : vector<64xf32> to vector<64x1xf32>
    %cst_42 = arith.constant 3.200000e+01 : f32
    %67 = vector.broadcast %cst_42 : f32 to vector<64x1xf32>
    %68 = arith.divf %66, %67 : vector<64x1xf32>
    %69 = vector.broadcast %61 : vector<64x1xf32> to vector<64x32xf32>
    %70 = arith.subf %57, %69 : vector<64x32xf32>
    %cst_43 = arith.constant 9.99999997E-7 : f32
    %71 = vector.broadcast %cst_43 : f32 to vector<64x1xf32>
    %72 = arith.addf %68, %71 : vector<64x1xf32>
    %73 = math.rsqrt %72 : vector<64x1xf32>
    %74 = vector.broadcast %73 : vector<64x1xf32> to vector<64x32xf32>
    %75 = arith.mulf %70, %74 : vector<64x32xf32>
    %c0_44 = arith.constant 0 : index
    %c0_45 = arith.constant 0 : index
    %76 = vector.load %arg10[%c0_44, %c0_45] : memref<1x32xf32, #tpu.memory_space<vmem>>, vector<1x32xf32>
    %77 = vector.broadcast %76 : vector<1x32xf32> to vector<64x32xf32>
    %78 = arith.mulf %75, %77 : vector<64x32xf32>
    %c0_46 = arith.constant 0 : index
    %c0_47 = arith.constant 0 : index
    %79 = vector.load %arg11[%c0_46, %c0_47] : memref<1x32xf32, #tpu.memory_space<vmem>>, vector<1x32xf32>
    %80 = vector.broadcast %79 : vector<1x32xf32> to vector<64x32xf32>
    %81 = arith.addf %78, %80 : vector<64x32xf32>
    %82 = vector.shape_cast %81 : vector<64x32xf32> to vector<1x64x32xf32>
    %cst_48 = arith.constant dense<0.000000e+00> : vector<1xf32>
    %83 = vector.multi_reduction <add>, %82, %cst_48 [1, 2] : vector<1x64x32xf32> to vector<1xf32>
    %84 = vector.shape_cast %83 : vector<1xf32> to vector<1x1x1xf32>
    %85 = vector.extract %84[0, 0, 0] : f32 from vector<1x1x1xf32>
    %cst_49 = arith.constant 2.048000e+03 : f32
    %86 = arith.divf %85, %cst_49 : f32
    %87 = vector.broadcast %86 : f32 to vector<64x32xf32>
    %88 = arith.subf %81, %87 : vector<64x32xf32>
    %89 = arith.mulf %88, %88 : vector<64x32xf32>
    %90 = vector.shape_cast %89 : vector<64x32xf32> to vector<1x64x32xf32>
    %cst_50 = arith.constant dense<0.000000e+00> : vector<1xf32>
    %91 = vector.multi_reduction <add>, %90, %cst_50 [1, 2] : vector<1x64x32xf32> to vector<1xf32>
    %92 = vector.shape_cast %91 : vector<1xf32> to vector<1x1x1xf32>
    %93 = vector.extract %92[0, 0, 0] : f32 from vector<1x1x1xf32>
    %cst_51 = arith.constant 2.048000e+03 : f32
    %94 = arith.divf %93, %cst_51 : f32
    %95 = vector.broadcast %86 : f32 to vector<64x32xf32>
    %96 = arith.subf %81, %95 : vector<64x32xf32>
    %cst_52 = arith.constant 9.99999993E-9 : f32
    %97 = arith.addf %94, %cst_52 : f32
    %98 = math.rsqrt %97 : f32
    %99 = vector.broadcast %98 : f32 to vector<64x32xf32>
    %100 = arith.mulf %96, %99 : vector<64x32xf32>
    %c0_53 = arith.constant 0 : index
    %c0_54 = arith.constant 0 : index
    %101 = vector.load %arg12[%c0_53, %c0_54] : memref<1x32xf32, #tpu.memory_space<vmem>>, vector<1x32xf32>
    %102 = vector.broadcast %101 : vector<1x32xf32> to vector<64x32xf32>
    %103 = arith.mulf %100, %102 : vector<64x32xf32>
    %c0_55 = arith.constant 0 : index
    %c0_56 = arith.constant 0 : index
    %104 = vector.load %arg13[%c0_55, %c0_56] : memref<1x32xf32, #tpu.memory_space<vmem>>, vector<1x32xf32>
    %105 = vector.broadcast %104 : vector<1x32xf32> to vector<64x32xf32>
    %106 = arith.addf %103, %105 : vector<64x32xf32>
    %107 = arith.addf %106, %57 : vector<64x32xf32>
    %c0_57 = arith.constant 0 : index
    %108 = memref.load %arg14[%c0_57] : memref<1xf32, #tpu.memory_space<smem>>
    %cst_58 = arith.constant 0.000000e+00 : f32
    %109 = vector.broadcast %cst_58 : f32 to vector<64x32xf32>
    %110 = arith.cmpf ogt, %107, %109 : vector<64x32xf32>
    %111 = vector.broadcast %108 : f32 to vector<64x32xf32>
    %112 = arith.mulf %111, %107 : vector<64x32xf32>
    %113 = arith.select %110, %107, %112 : vector<64x32xi1>, vector<64x32xf32>
    %cst_59 = arith.constant dense<0.000000e+00> : vector<32xf32>
    %114 = vector.multi_reduction <add>, %113, %cst_59 [0] : vector<64x32xf32> to vector<32xf32>
    %115 = vector.shape_cast %114 : vector<32xf32> to vector<1x32xf32>
    %cst_60 = arith.constant 6.400000e+01 : f32
    %116 = vector.broadcast %cst_60 : f32 to vector<1x32xf32>
    %117 = arith.divf %115, %116 : vector<1x32xf32>
    %118 = arith.truncf %117 : vector<1x32xf32> to vector<1x32xbf16>
    %c0_61 = arith.constant 0 : index
    %c0_62 = arith.constant 0 : index
    %119 = vector.load %arg15[%c0_61, %c0_62] : memref<32x4xbf16, #tpu.memory_space<vmem>>, vector<32x4xbf16>
    %cst_63 = arith.constant dense<0.000000e+00> : vector<1x4xf32>
    %120 = tpu.matmul %118, %119, %cst_63 {dimension_numbers = #tpu.dot_dimension_numbers<[1], [0], [0], [1], [0, 0, 1, 1], [], []>} : vector<1x32xbf16>, vector<32x4xbf16>, vector<1x4xf32> -> vector<1x4xf32>
    %c0_64 = arith.constant 0 : index
    %c0_65 = arith.constant 0 : index
    %121 = vector.load %arg16[%c0_64, %c0_65] : memref<1x4xf32, #tpu.memory_space<vmem>>, vector<1x4xf32>
    %122 = arith.addf %120, %121 : vector<1x4xf32>
    %cst_66 = arith.constant 0.000000e+00 : f32
    %123 = vector.broadcast %cst_66 : f32 to vector<1x4xf32>
    %124 = arith.maximumf %122, %123 : vector<1x4xf32>
    %125 = arith.truncf %124 : vector<1x4xf32> to vector<1x4xbf16>
    %c0_67 = arith.constant 0 : index
    %c0_68 = arith.constant 0 : index
    %126 = vector.load %arg17[%c0_67, %c0_68] : memref<4x32xbf16, #tpu.memory_space<vmem>>, vector<4x32xbf16>
    %cst_69 = arith.constant dense<0.000000e+00> : vector<1x32xf32>
    %127 = tpu.matmul %125, %126, %cst_69 {dimension_numbers = #tpu.dot_dimension_numbers<[1], [0], [0], [1], [0, 0, 1, 1], [], []>} : vector<1x4xbf16>, vector<4x32xbf16>, vector<1x32xf32> -> vector<1x32xf32>
    %c0_70 = arith.constant 0 : index
    %c0_71 = arith.constant 0 : index
    %128 = vector.load %arg18[%c0_70, %c0_71] : memref<1x32xf32, #tpu.memory_space<vmem>>, vector<1x32xf32>
    %129 = arith.addf %127, %128 : vector<1x32xf32>
    %130 = arith.negf %129 : vector<1x32xf32>
    %131 = math.exp %130 : vector<1x32xf32>
    %cst_72 = arith.constant 1.000000e+00 : f32
    %132 = vector.broadcast %cst_72 : f32 to vector<1x32xf32>
    %133 = arith.addf %132, %131 : vector<1x32xf32>
    %134 = arith.divf %132, %133 : vector<1x32xf32>
    %135 = vector.broadcast %134 : vector<1x32xf32> to vector<64x32xf32>
    %136 = arith.mulf %113, %135 : vector<64x32xf32>
    %137 = arith.truncf %136 : vector<64x32xf32> to vector<64x32xbf16>
    %c0_73 = arith.constant 0 : index
    %c0_74 = arith.constant 0 : index
    %138 = vector.load %arg19[%c0_73, %c0_74] : memref<32x64xbf16, #tpu.memory_space<vmem>>, vector<32x64xbf16>
    %cst_75 = arith.constant dense<0.000000e+00> : vector<64x64xf32>
    %139 = tpu.matmul %137, %138, %cst_75 {dimension_numbers = #tpu.dot_dimension_numbers<[1], [0], [0], [1], [0, 0, 1, 1], [], []>} : vector<64x32xbf16>, vector<32x64xbf16>, vector<64x64xf32> -> vector<64x64xf32>
    %c0_76 = arith.constant 0 : index
    %c0_77 = arith.constant 0 : index
    %140 = vector.load %arg20[%c0_76, %c0_77] : memref<1x64xf32, #tpu.memory_space<vmem>>, vector<1x64xf32>
    %141 = vector.broadcast %140 : vector<1x64xf32> to vector<64x64xf32>
    %142 = arith.addf %139, %141 : vector<64x64xf32>
    %143 = vector.extract_strided_slice %142 {offsets = [0, 0], sizes = [64, 32], strides = [1, 1]} : vector<64x64xf32> to vector<64x32xf32>
    %144 = arith.truncf %143 : vector<64x32xf32> to vector<64x32xbf16>
    %c0_78 = arith.constant 0 : index
    %c0_79 = arith.constant 0 : index
    %145 = vector.load %arg21[%c0_78, %c0_79] : memref<32x64xbf16, #tpu.memory_space<vmem>>, vector<32x64xbf16>
    %cst_80 = arith.constant dense<0.000000e+00> : vector<64x64xf32>
    %146 = tpu.matmul %144, %145, %cst_80 {dimension_numbers = #tpu.dot_dimension_numbers<[1], [0], [0], [1], [0, 0, 1, 1], [], []>} : vector<64x32xbf16>, vector<32x64xbf16>, vector<64x64xf32> -> vector<64x64xf32>
    %c0_81 = arith.constant 0 : index
    %c0_82 = arith.constant 0 : index
    %147 = vector.load %arg22[%c0_81, %c0_82] : memref<1x64xf32, #tpu.memory_space<vmem>>, vector<1x64xf32>
    %148 = vector.broadcast %147 : vector<1x64xf32> to vector<64x64xf32>
    %149 = arith.addf %146, %148 : vector<64x64xf32>
    %150 = vector.extract_strided_slice %149 {offsets = [0, 0], sizes = [64, 32], strides = [1, 1]} : vector<64x64xf32> to vector<64x32xf32>
    %151 = math.tanh %150 : vector<64x32xf32>
    %152 = vector.extract_strided_slice %149 {offsets = [0, 32], sizes = [64, 32], strides = [1, 1]} : vector<64x64xf32> to vector<64x32xf32>
    %153 = arith.negf %152 : vector<64x32xf32>
    %154 = math.exp %153 : vector<64x32xf32>
    %cst_83 = arith.constant 1.000000e+00 : f32
    %155 = vector.broadcast %cst_83 : f32 to vector<64x32xf32>
    %156 = arith.addf %155, %154 : vector<64x32xf32>
    %157 = arith.divf %155, %156 : vector<64x32xf32>
    %158 = arith.mulf %151, %157 : vector<64x32xf32>
    %159 = arith.truncf %158 : vector<64x32xf32> to vector<64x32xbf16>
    %c0_84 = arith.constant 0 : index
    %c0_85 = arith.constant 0 : index
    %160 = vector.load %arg23[%c0_84, %c0_85] : memref<32x32xbf16, #tpu.memory_space<vmem>>, vector<32x32xbf16>
    %cst_86 = arith.constant dense<0.000000e+00> : vector<64x32xf32>
    %161 = tpu.matmul %159, %160, %cst_86 {dimension_numbers = #tpu.dot_dimension_numbers<[1], [0], [0], [1], [0, 0, 1, 1], [], []>} : vector<64x32xbf16>, vector<32x32xbf16>, vector<64x32xf32> -> vector<64x32xf32>
    %cst_87 = arith.constant 0.000000e+00 : f32
    %162 = vector.broadcast %cst_87 : f32 to vector<64x32xf32>
    %163 = arith.maximumf %161, %162 : vector<64x32xf32>
    %c0_88 = arith.constant 0 : index
    %c0_89 = arith.constant 0 : index
    %c0_90 = arith.constant 0 : index
    %c0_91 = arith.constant 0 : index
    %164 = vector.load %arg24[%c0_88, %c0_89, %c0_90, %c0_91] : memref<2x1x64x32xf32, #tpu.memory_space<vmem>>, vector<1x1x64x32xf32>
    %165 = vector.shape_cast %164 : vector<1x1x64x32xf32> to vector<64x32xf32>
    %166 = vector.shape_cast %163 : vector<64x32xf32> to vector<1x1x64x32xf32>
    tpu.vector_store %arg24[%c0_88, %c0_89, %c0_90, %c0_91], %166 {strides = array<i32>} : memref<2x1x64x32xf32, #tpu.memory_space<vmem>>, vector<1x1x64x32xf32>,
    %167 = vector.extract_strided_slice %142 {offsets = [0, 32], sizes = [64, 32], strides = [1, 1]} : vector<64x64xf32> to vector<64x32xf32>
    %168 = arith.truncf %167 : vector<64x32xf32> to vector<64x32xbf16>
    %c0_92 = arith.constant 0 : index
    %c0_93 = arith.constant 0 : index
    %169 = vector.load %arg21[%c0_92, %c0_93] : memref<32x64xbf16, #tpu.memory_space<vmem>>, vector<32x64xbf16>
    %cst_94 = arith.constant dense<0.000000e+00> : vector<64x64xf32>
    %170 = tpu.matmul %168, %169, %cst_94 {dimension_numbers = #tpu.dot_dimension_numbers<[1], [0], [0], [1], [0, 0, 1, 1], [], []>} : vector<64x32xbf16>, vector<32x64xbf16>, vector<64x64xf32> -> vector<64x64xf32>
    %c0_95 = arith.constant 0 : index
    %c0_96 = arith.constant 0 : index
    %171 = vector.load %arg22[%c0_95, %c0_96] : memref<1x64xf32, #tpu.memory_space<vmem>>, vector<1x64xf32>
    %172 = vector.broadcast %171 : vector<1x64xf32> to vector<64x64xf32>
    %173 = arith.addf %170, %172 : vector<64x64xf32>
    %174 = vector.extract_strided_slice %173 {offsets = [0, 0], sizes = [64, 32], strides = [1, 1]} : vector<64x64xf32> to vector<64x32xf32>
    %175 = math.tanh %174 : vector<64x32xf32>
    %176 = vector.extract_strided_slice %173 {offsets = [0, 32], sizes = [64, 32], strides = [1, 1]} : vector<64x64xf32> to vector<64x32xf32>
    %177 = arith.negf %176 : vector<64x32xf32>
    %178 = math.exp %177 : vector<64x32xf32>
    %cst_97 = arith.constant 1.000000e+00 : f32
    %179 = vector.broadcast %cst_97 : f32 to vector<64x32xf32>
    %180 = arith.addf %179, %178 : vector<64x32xf32>
    %181 = arith.divf %179, %180 : vector<64x32xf32>
    %182 = arith.mulf %175, %181 : vector<64x32xf32>
    %183 = arith.truncf %182 : vector<64x32xf32> to vector<64x32xbf16>
    %c0_98 = arith.constant 0 : index
    %c0_99 = arith.constant 0 : index
    %184 = vector.load %arg23[%c0_98, %c0_99] : memref<32x32xbf16, #tpu.memory_space<vmem>>, vector<32x32xbf16>
    %cst_100 = arith.constant dense<0.000000e+00> : vector<64x32xf32>
    %185 = tpu.matmul %183, %184, %cst_100 {dimension_numbers = #tpu.dot_dimension_numbers<[1], [0], [0], [1], [0, 0, 1, 1], [], []>} : vector<64x32xbf16>, vector<32x32xbf16>, vector<64x32xf32> -> vector<64x32xf32>
    %cst_101 = arith.constant 0.000000e+00 : f32
    %186 = vector.broadcast %cst_101 : f32 to vector<64x32xf32>
    %187 = arith.maximumf %185, %186 : vector<64x32xf32>
    %c1 = arith.constant 1 : index
    %c0_102 = arith.constant 0 : index
    %c0_103 = arith.constant 0 : index
    %c0_104 = arith.constant 0 : index
    %188 = vector.load %arg24[%c1, %c0_102, %c0_103, %c0_104] : memref<2x1x64x32xf32, #tpu.memory_space<vmem>>, vector<1x1x64x32xf32>
    %189 = vector.shape_cast %188 : vector<1x1x64x32xf32> to vector<64x32xf32>
    %190 = vector.shape_cast %187 : vector<64x32xf32> to vector<1x1x64x32xf32>
    tpu.vector_store %arg24[%c1, %c0_102, %c0_103, %c0_104], %190 {strides = array<i32>} : memref<2x1x64x32xf32, #tpu.memory_space<vmem>>, vector<1x1x64x32xf32>,
    return
  }
  func.func @transform_0(%arg0: i32) -> (i32, i32, i32) {
    %c0_i32 = arith.constant 0 : i32
    %c0_i32_0 = arith.constant 0 : i32
    %c0_i32_1 = arith.constant 0 : i32
    return %arg0, %c0_i32, %c0_i32_0 : i32, i32, i32
  }
  func.func @transform_1(%arg0: i32) -> (i32, i32) {
    %c0_i32 = arith.constant 0 : i32
    %c0_i32_0 = arith.constant 0 : i32
    %c0_i32_1 = arith.constant 0 : i32
    return %c0_i32, %c0_i32_0 : i32, i32
  }
  func.func @transform_2(%arg0: i32) -> (i32, i32) {
    %c0_i32 = arith.constant 0 : i32
    %c0_i32_0 = arith.constant 0 : i32
    %c0_i32_1 = arith.constant 0 : i32
    return %c0_i32, %c0_i32_0 : i32, i32
  }
  func.func @transform_3(%arg0: i32) -> (i32, i32) {
    %c0_i32 = arith.constant 0 : i32
    %c0_i32_0 = arith.constant 0 : i32
    %c0_i32_1 = arith.constant 0 : i32
    return %c0_i32, %c0_i32_0 : i32, i32
  }
  func.func @transform_4(%arg0: i32) -> (i32, i32) {
    %c0_i32 = arith.constant 0 : i32
    %c0_i32_0 = arith.constant 0 : i32
    %c0_i32_1 = arith.constant 0 : i32
    return %c0_i32, %c0_i32_0 : i32, i32
  }
  func.func @transform_5(%arg0: i32) -> (i32, i32) {
    %c0_i32 = arith.constant 0 : i32
    %c0_i32_0 = arith.constant 0 : i32
    %c0_i32_1 = arith.constant 0 : i32
    return %c0_i32, %c0_i32_0 : i32, i32
  }
  func.func @transform_6(%arg0: i32) -> (i32, i32) {
    %c0_i32 = arith.constant 0 : i32
    %c0_i32_0 = arith.constant 0 : i32
    %c0_i32_1 = arith.constant 0 : i32
    return %c0_i32, %c0_i32_0 : i32, i32
  }
  func.func @transform_7(%arg0: i32) -> (i32, i32) {
    %c0_i32 = arith.constant 0 : i32
    %c0_i32_0 = arith.constant 0 : i32
    %c0_i32_1 = arith.constant 0 : i32
    return %c0_i32, %c0_i32_0 : i32, i32
  }
  func.func @transform_8(%arg0: i32) -> (i32, i32) {
    %c0_i32 = arith.constant 0 : i32
    %c0_i32_0 = arith.constant 0 : i32
    %c0_i32_1 = arith.constant 0 : i32
    return %c0_i32, %c0_i32_0 : i32, i32
  }
  func.func @transform_9(%arg0: i32) -> (i32, i32) {
    %c0_i32 = arith.constant 0 : i32
    %c0_i32_0 = arith.constant 0 : i32
    %c0_i32_1 = arith.constant 0 : i32
    return %c0_i32, %c0_i32_0 : i32, i32
  }
  func.func @transform_10(%arg0: i32) -> (i32, i32) {
    %c0_i32 = arith.constant 0 : i32
    %c0_i32_0 = arith.constant 0 : i32
    %c0_i32_1 = arith.constant 0 : i32
    return %c0_i32, %c0_i32_0 : i32, i32
  }
  func.func @transform_11(%arg0: i32) -> (i32, i32) {
    %c0_i32 = arith.constant 0 : i32
    %c0_i32_0 = arith.constant 0 : i32
    %c0_i32_1 = arith.constant 0 : i32
    return %c0_i32, %c0_i32_0 : i32, i32
  }
  func.func @transform_12(%arg0: i32) -> (i32, i32) {
    %c0_i32 = arith.constant 0 : i32
    %c0_i32_0 = arith.constant 0 : i32
    %c0_i32_1 = arith.constant 0 : i32
    return %c0_i32, %c0_i32_0 : i32, i32
  }
  func.func @transform_13(%arg0: i32) -> i32 {
    %c0_i32 = arith.constant 0 : i32
    %c0_i32_0 = arith.constant 0 : i32
    return %c0_i32 : i32
  }
  func.func @transform_14(%arg0: i32) -> (i32, i32) {
    %c0_i32 = arith.constant 0 : i32
    %c0_i32_0 = arith.constant 0 : i32
    %c0_i32_1 = arith.constant 0 : i32
    return %c0_i32, %c0_i32_0 : i32, i32
  }
  func.func @transform_15(%arg0: i32) -> (i32, i32) {
    %c0_i32 = arith.constant 0 : i32
    %c0_i32_0 = arith.constant 0 : i32
    %c0_i32_1 = arith.constant 0 : i32
    return %c0_i32, %c0_i32_0 : i32, i32
  }
  func.func @transform_16(%arg0: i32) -> (i32, i32) {
    %c0_i32 = arith.constant 0 : i32
    %c0_i32_0 = arith.constant 0 : i32
    %c0_i32_1 = arith.constant 0 : i32
    return %c0_i32, %c0_i32_0 : i32, i32
  }
  func.func @transform_17(%arg0: i32) -> (i32, i32) {
    %c0_i32 = arith.constant 0 : i32
    %c0_i32_0 = arith.constant 0 : i32
    %c0_i32_1 = arith.constant 0 : i32
    return %c0_i32, %c0_i32_0 : i32, i32
  }
  func.func @transform_18(%arg0: i32) -> (i32, i32) {
    %c0_i32 = arith.constant 0 : i32
    %c0_i32_0 = arith.constant 0 : i32
    %c0_i32_1 = arith.constant 0 : i32
    return %c0_i32, %c0_i32_0 : i32, i32
  }
  func.func @transform_19(%arg0: i32) -> (i32, i32) {
    %c0_i32 = arith.constant 0 : i32
    %c0_i32_0 = arith.constant 0 : i32
    %c0_i32_1 = arith.constant 0 : i32
    return %c0_i32, %c0_i32_0 : i32, i32
  }
  func.func @transform_20(%arg0: i32) -> (i32, i32) {
    %c0_i32 = arith.constant 0 : i32
    %c0_i32_0 = arith.constant 0 : i32
    %c0_i32_1 = arith.constant 0 : i32
    return %c0_i32, %c0_i32_0 : i32, i32
  }
  func.func @transform_21(%arg0: i32) -> (i32, i32) {
    %c0_i32 = arith.constant 0 : i32
    %c0_i32_0 = arith.constant 0 : i32
    %c0_i32_1 = arith.constant 0 : i32
    return %c0_i32, %c0_i32_0 : i32, i32
  }
  func.func @transform_22(%arg0: i32) -> (i32, i32) {
    %c0_i32 = arith.constant 0 : i32
    %c0_i32_0 = arith.constant 0 : i32
    %c0_i32_1 = arith.constant 0 : i32
    return %c0_i32, %c0_i32_0 : i32, i32
  }
  func.func @transform_23(%arg0: i32) -> (i32, i32, i32, i32) {
    %c0_i32 = arith.constant 0 : i32
    %c0_i32_0 = arith.constant 0 : i32
    %c0_i32_1 = arith.constant 0 : i32
    %c0_i32_2 = arith.constant 0 : i32
    return %c0_i32, %arg0, %c0_i32_0, %c0_i32_1 : i32, i32, i32, i32
  }
}

</mosaic_0001>

<llo_original>
// kernel: forward.1
$region0: #{forward.1}
  #allocation0 [shape = 'u32[]', space=smem, size = 0x4, offset = 0x4, fixed_abs, tag = 'smem constant byte address 0x4 - core index']
  #allocation1 [shape = 'u32[72,128]{1,0:T(1,128)}', space=vmem, size = 0x9000, scoped, tag = 'internal scratch']
  #allocation2 [shape = 'f32[80,32]{1,0:T(8,128)}', space=vmem, size = 0xa000, scoped, tag = 'scratch operand']
  #allocation3 [shape = 'f32[1]{0:T(128)S(6)}', space=smem, size = 0x200, scoped, tag = 'scoped memory for forward.1']
  %s0 = inlined_call_operand.vmem [shape: f32[2,64,32], index: 0, kind: input, shape index: {}]
  %s1 = inlined_call_operand.vmem [shape: f32[1,32], index: 1, kind: input, shape index: {}]
  %s2 = inlined_call_operand.vmem [shape: f32[1,32], index: 2, kind: input, shape index: {}]
  %s3 = inlined_call_operand.vmem [shape: bf16[224,32], index: 3, kind: input, shape index: {}]
  %s4 = inlined_call_operand.vmem [shape: f32[1,32], index: 4, kind: input, shape index: {}]
  %s5 = inlined_call_operand.vmem [shape: bf16[32,32], index: 5, kind: input, shape index: {}]
  %s6 = inlined_call_operand.vmem [shape: f32[1,32], index: 6, kind: input, shape index: {}]
  %s7 = inlined_call_operand.vmem [shape: bf16[32,32], index: 7, kind: input, shape index: {}]
  %s8 = inlined_call_operand.vmem [shape: f32[64,32], index: 8, kind: input, shape index: {}]
  %s9 = inlined_call_operand.vmem [shape: f32[1,32], index: 9, kind: input, shape index: {}]
  %s10 = inlined_call_operand.vmem [shape: f32[1,32], index: 10, kind: input, shape index: {}]
  %s11 = inlined_call_operand.vmem [shape: f32[1,32], index: 11, kind: input, shape index: {}]
  %s12 = inlined_call_operand.vmem [shape: f32[1,32], index: 12, kind: input, shape index: {}]
  %s13 = inlined_call_operand.<no memory space> [shape: f32[1], index: 13, kind: input, shape index: {}]
  %s14 = inlined_call_operand.vmem [shape: bf16[32,4], index: 14, kind: input, shape index: {}]
  %s15 = inlined_call_operand.vmem [shape: f32[1,4], index: 15, kind: input, shape index: {}]
  %s16 = inlined_call_operand.vmem [shape: bf16[4,32], index: 16, kind: input, shape index: {}]
  %s17 = inlined_call_operand.vmem [shape: f32[1,32], index: 17, kind: input, shape index: {}]
  %s18 = inlined_call_operand.vmem [shape: bf16[32,64], index: 18, kind: input, shape index: {}]
  %s19 = inlined_call_operand.vmem [shape: f32[1,64], index: 19, kind: input, shape index: {}]
  %s20 = inlined_call_operand.vmem [shape: bf16[32,64], index: 20, kind: input, shape index: {}]
  %s21 = inlined_call_operand.vmem [shape: f32[1,64], index: 21, kind: input, shape index: {}]
  %s22 = inlined_call_operand.vmem [shape: bf16[32,32], index: 22, kind: input, shape index: {}]
  %s23 = inlined_call_operand.vmem [shape: f32[2,2,64,32], index: 23, kind: output, shape index: {}]
  %s24 = sld [smem:[#allocation0]]
  $region159: #{forward.1} parent=0
    _
  %s26 = ssub.s32 1, %s24
  %s27 = scalar_select 0, %s26, %s24
  %28 = sst [smem:[#allocation3]] %s13
  $region1: #{forward.1} parent=0
    #allocation4 [shape = 'u8[131072]{0}', space=vmem, size = 0x20000, scoped, tag = 'output window, operand 0']
    loop: start=0, step=1, limit=4
    $region2: #{forward.1} parent=1 // loop_pre_header
      _
    $region3: #{forward.1} parent=1 // loop_header
      %s30 = sphi 0, %s34
      %p31 = scmp.ge.s32.totalorder %s30, 4
      %s40 = sphi 0, %s42
      %s43 = sphi 0, %s40
      %s44 = sphi 0, %s43
      %s60 = sphi 0, %s44
      %s64 = sphi 0, %s64
      %s66 = sphi 0, %s64
      %s67 = sphi 0, %s66
      %s81 = sphi 0, %s67
      %s85 = sphi 0, %s85
      %s87 = sphi 0, %s85
      %s88 = sphi 0, %s87
      %s102 = sphi 0, %s88
      %s106 = sphi 0, %s106
      %s108 = sphi 0, %s106
      %s109 = sphi 0, %s108
      %s123 = sphi 0, %s109
      %s127 = sphi 0, %s127
      %s129 = sphi 0, %s127
      %s130 = sphi 0, %s129
      %s144 = sphi 0, %s130
      %s148 = sphi 0, %s148
      %s150 = sphi 0, %s148
      %s151 = sphi 0, %s150
      %s165 = sphi 0, %s151
      %s169 = sphi 0, %s169
      %s171 = sphi 0, %s169
      %s172 = sphi 0, %s171
      %s186 = sphi 0, %s172
      %s190 = sphi 0, %s190
      %s192 = sphi 0, %s190
      %s193 = sphi 0, %s192
      %s207 = sphi 0, %s193
      %s211 = sphi 0, %s211
      %s213 = sphi 0, %s211
      %s214 = sphi 0, %s213
      %s228 = sphi 0, %s214
      %s232 = sphi 0, %s232
      %s234 = sphi 0, %s232
      %s235 = sphi 0, %s234
      %s249 = sphi 0, %s235
      %s253 = sphi 0, %s253
      %s255 = sphi 0, %s253
      %s256 = sphi 0, %s255
      %s270 = sphi 0, %s256
      %s274 = sphi 0, %s274
      %s276 = sphi 0, %s274
      %s277 = sphi 0, %s276
      %s291 = sphi 0, %s277
      %s295 = sphi 0, %s295
      %s297 = sphi 0, %s295
      %s298 = sphi 0, %s297
      %s312 = sphi 0, %s298
      %s316 = sphi 0, %s316
      %s318 = sphi 0, %s316
      %s319 = sphi 0, %s318
      %s333 = sphi 0, %s319
      %s337 = sphi 0, %s337
      %s339 = sphi 0, %s337
      %s340 = sphi 0, %s339
      %s354 = sphi 0, %s340
      %s358 = sphi 0, %s358
      %s360 = sphi 0, %s358
      %s361 = sphi 0, %s360
      %s375 = sphi 0, %s361
      %s379 = sphi 0, %s379
      %s381 = sphi 0, %s379
      %s382 = sphi 0, %s381
      %s396 = sphi 0, %s382
      %s400 = sphi 0, %s400
      %s402 = sphi 0, %s400
      %s403 = sphi 0, %s402
      %s417 = sphi 0, %s403
      %s421 = sphi 0, %s421
      %s423 = sphi 0, %s421
      %s424 = sphi 0, %s423
      %s438 = sphi 0, %s424
      %s442 = sphi 0, %s442
      %s444 = sphi 0, %s442
      %s445 = sphi 0, %s444
      %s459 = sphi 0, %s445
      %s463 = sphi 0, %s463
      %s465 = sphi 0, %s463
      %s466 = sphi 0, %s465
      %s480 = sphi 0, %s466
      %s484 = sphi 0, %s484
      %s486 = sphi 0, %s484
      %s487 = sphi 0, %s486
      %s501 = sphi 0, %s487
      %s505 = sphi 0, %s505
      %s507 = sphi 0, %s505
      %s508 = sphi 0, %s507
      %s522 = sphi 0, %s508
      %s528 = sphi 0, %s530
      %s531 = sphi 0, %s528
      %s532 = sphi 0, %s531
      %s548 = sphi 0, %s532
    $region4: #{forward.1} parent=1 // loop_header_branch
      %33 = sbr.rel (%p31) target = $region8
    $region5: #{forward.1} parent=1 // loop_body
      %s35 = ssub.s32 %s30, 1
      %s36 = ssub.s32 %s30, 2
      %s37 = sadd.s32 %s30, 1
      %s38 = ssub.s32 %s30, %s37
      %p39 = scmp.eq.s32.totalorder %s38, 0
      %s41 = sadd.s32 %s40, 1
      %s42 = scalar_select %p39, %s40, %s41
      %p45 = pneg %p39
      %p46 = scmp.eq.s32.totalorder %s30, 1
      %p47 = por %p45, %p46
      %p48 = scmp.ne.s32.totalorder %s40, %s43
      %p49 = scmp.eq.s32.totalorder %s30, 0
      %p50 = por %p48, %p49
      %p51 = scmp.ne.s32.totalorder %s40, %s43
      %p52 = scmp.eq.s32.totalorder %s35, 1
      %p53 = por %p51, %p52
      %p54 = scmp.ne.s32.totalorder %s43, %s44
      %p55 = scmp.eq.s32.totalorder %s35, 0
      %p56 = por %p54, %p55
      %p57 = scmp.ne.s32.totalorder %s43, %s44
      %p58 = scmp.eq.s32.totalorder %s36, 1
      %p59 = por %p57, %p58
      %p61 = scmp.ne.s32.totalorder %s44, %s60
      %p62 = scmp.eq.s32.totalorder %s36, 0
      %p63 = por %p61, %p62
      %s65 = sadd.s32 %s64, 1
      %p68 = scmp.eq.s32.totalorder %s30, 1
      %p69 = scmp.ne.s32.totalorder %s64, %s66
      %p70 = scmp.eq.s32.totalorder %s30, 0
      %p71 = por %p69, %p70
      %p72 = scmp.ne.s32.totalorder %s64, %s66
      %p73 = scmp.eq.s32.totalorder %s35, 1
      %p74 = por %p72, %p73
      %p75 = scmp.ne.s32.totalorder %s66, %s67
      %p76 = scmp.eq.s32.totalorder %s35, 0
      %p77 = por %p75, %p76
      %p78 = scmp.ne.s32.totalorder %s66, %s67
      %p79 = scmp.eq.s32.totalorder %s36, 1
      %p80 = por %p78, %p79
      %p82 = scmp.ne.s32.totalorder %s67, %s81
      %p83 = scmp.eq.s32.totalorder %s36, 0
      %p84 = por %p82, %p83
      %s86 = sadd.s32 %s85, 1
      %p89 = scmp.eq.s32.totalorder %s30, 1
      %p90 = scmp.ne.s32.totalorder %s85, %s87
      %p91 = scmp.eq.s32.totalorder %s30, 0
      %p92 = por %p90, %p91
      %p93 = scmp.ne.s32.totalorder %s85, %s87
      %p94 = scmp.eq.s32.totalorder %s35, 1
      %p95 = por %p93, %p94
      %p96 = scmp.ne.s32.totalorder %s87, %s88
      %p97 = scmp.eq.s32.totalorder %s35, 0
      %p98 = por %p96, %p97
      %p99 = scmp.ne.s32.totalorder %s87, %s88
      %p100 = scmp.eq.s32.totalorder %s36, 1
      %p101 = por %p99, %p100
      %p103 = scmp.ne.s32.totalorder %s88, %s102
      %p104 = scmp.eq.s32.totalorder %s36, 0
      %p105 = por %p103, %p104
      %s107 = sadd.s32 %s106, 1
      %p110 = scmp.eq.s32.totalorder %s30, 1
      %p111 = scmp.ne.s32.totalorder %s106, %s108
      %p112 = scmp.eq.s32.totalorder %s30, 0
      %p113 = por %p111, %p112
      %p114 = scmp.ne.s32.totalorder %s106, %s108
      %p115 = scmp.eq.s32.totalorder %s35, 1
      %p116 = por %p114, %p115
      %p117 = scmp.ne.s32.totalorder %s108, %s109
      %p118 = scmp.eq.s32.totalorder %s35, 0
      %p119 = por %p117, %p118
      %p120 = scmp.ne.s32.totalorder %s108, %s109
      %p121 = scmp.eq.s32.totalorder %s36, 1
      %p122 = por %p120, %p121
      %p124 = scmp.ne.s32.totalorder %s109, %s123
      %p125 = scmp.eq.s32.totalorder %s36, 0
      %p126 = por %p124, %p125
      %s128 = sadd.s32 %s127, 1
      %p131 = scmp.eq.s32.totalorder %s30, 1
      %p132 = scmp.ne.s32.totalorder %s127, %s129
      %p133 = scmp.eq.s32.totalorder %s30, 0
      %p134 = por %p132, %p133
      %p135 = scmp.ne.s32.totalorder %s127, %s129
      %p136 = scmp.eq.s32.totalorder %s35, 1
      %p137 = por %p135, %p136
      %p138 = scmp.ne.s32.totalorder %s129, %s130
      %p139 = scmp.eq.s32.totalorder %s35, 0
      %p140 = por %p138, %p139
      %p141 = scmp.ne.s32.totalorder %s129, %s130
      %p142 = scmp.eq.s32.totalorder %s36, 1
      %p143 = por %p141, %p142
      %p145 = scmp.ne.s32.totalorder %s130, %s144
      %p146 = scmp.eq.s32.totalorder %s36, 0
      %p147 = por %p145, %p146
      %s149 = sadd.s32 %s148, 1
      %p152 = scmp.eq.s32.totalorder %s30, 1
      %p153 = scmp.ne.s32.totalorder %s148, %s150
      %p154 = scmp.eq.s32.totalorder %s30, 0
      %p155 = por %p153, %p154
      %p156 = scmp.ne.s32.totalorder %s148, %s150
      %p157 = scmp.eq.s32.totalorder %s35, 1
      %p158 = por %p156, %p157
      %p159 = scmp.ne.s32.totalorder %s150, %s151
      %p160 = scmp.eq.s32.totalorder %s35, 0
      %p161 = por %p159, %p160
      %p162 = scmp.ne.s32.totalorder %s150, %s151
      %p163 = scmp.eq.s32.totalorder %s36, 1
      %p164 = por %p162, %p163
      %p166 = scmp.ne.s32.totalorder %s151, %s165
      %p167 = scmp.eq.s32.totalorder %s36, 0
      %p168 = por %p166, %p167
      %s170 = sadd.s32 %s169, 1
      %p173 = scmp.eq.s32.totalorder %s30, 1
      %p174 = scmp.ne.s32.totalorder %s169, %s171
      %p175 = scmp.eq.s32.totalorder %s30, 0
      %p176 = por %p174, %p175
      %p177 = scmp.ne.s32.totalorder %s169, %s171
      %p178 = scmp.eq.s32.totalorder %s35, 1
      %p179 = por %p177, %p178
      %p180 = scmp.ne.s32.totalorder %s171, %s172
      %p181 = scmp.eq.s32.totalorder %s35, 0
      %p182 = por %p180, %p181
      %p183 = scmp.ne.s32.totalorder %s171, %s172
      %p184 = scmp.eq.s32.totalorder %s36, 1
      %p185 = por %p183, %p184
      %p187 = scmp.ne.s32.totalorder %s172, %s186
      %p188 = scmp.eq.s32.totalorder %s36, 0
      %p189 = por %p187, %p188
      %s191 = sadd.s32 %s190, 1
      %p194 = scmp.eq.s32.totalorder %s30, 1
      %p195 = scmp.ne.s32.totalorder %s190, %s192
      %p196 = scmp.eq.s32.totalorder %s30, 0
      %p197 = por %p195, %p196
      %p198 = scmp.ne.s32.totalorder %s190, %s192
      %p199 = scmp.eq.s32.totalorder %s35, 1
      %p200 = por %p198, %p199
      %p201 = scmp.ne.s32.totalorder %s192, %s193
      %p202 = scmp.eq.s32.totalorder %s35, 0
      %p203 = por %p201, %p202
      %p204 = scmp.ne.s32.totalorder %s192, %s193
      %p205 = scmp.eq.s32.totalorder %s36, 1
      %p206 = por %p204, %p205
      %p208 = scmp.ne.s32.totalorder %s193, %s207
      %p209 = scmp.eq.s32.totalorder %s36, 0
      %p210 = por %p208, %p209
      %s212 = sadd.s32 %s211, 1
      %p215 = scmp.eq.s32.totalorder %s30, 1
      %p216 = scmp.ne.s32.totalorder %s211, %s213
      %p217 = scmp.eq.s32.totalorder %s30, 0
      %p218 = por %p216, %p217
      %p219 = scmp.ne.s32.totalorder %s211, %s213
      %p220 = scmp.eq.s32.totalorder %s35, 1
      %p221 = por %p219, %p220
      %p222 = scmp.ne.s32.totalorder %s213, %s214
      %p223 = scmp.eq.s32.totalorder %s35, 0
      %p224 = por %p222, %p223
      %p225 = scmp.ne.s32.totalorder %s213, %s214
      %p226 = scmp.eq.s32.totalorder %s36, 1
      %p227 = por %p225, %p226
      %p229 = scmp.ne.s32.totalorder %s214, %s228
      %p230 = scmp.eq.s32.totalorder %s36, 0
      %p231 = por %p229, %p230
      %s233 = sadd.s32 %s232, 1
      %p236 = scmp.eq.s32.totalorder %s30, 1
      %p237 = scmp.ne.s32.totalorder %s232, %s234
      %p238 = scmp.eq.s32.totalorder %s30, 0
      %p239 = por %p237, %p238
      %p240 = scmp.ne.s32.totalorder %s232, %s234
      %p241 = scmp.eq.s32.totalorder %s35, 1
      %p242 = por %p240, %p241
      %p243 = scmp.ne.s32.totalorder %s234, %s235
      %p244 = scmp.eq.s32.totalorder %s35, 0
      %p245 = por %p243, %p244
      %p246 = scmp.ne.s32.totalorder %s234, %s235
      %p247 = scmp.eq.s32.totalorder %s36, 1
      %p248 = por %p246, %p247
      %p250 = scmp.ne.s32.totalorder %s235, %s249
      %p251 = scmp.eq.s32.totalorder %s36, 0
      %p252 = por %p250, %p251
      %s254 = sadd.s32 %s253, 1
      %p257 = scmp.eq.s32.totalorder %s30, 1
      %p258 = scmp.ne.s32.totalorder %s253, %s255
      %p259 = scmp.eq.s32.totalorder %s30, 0
      %p260 = por %p258, %p259
      %p261 = scmp.ne.s32.totalorder %s253, %s255
      %p262 = scmp.eq.s32.totalorder %s35, 1
      %p263 = por %p261, %p262
      %p264 = scmp.ne.s32.totalorder %s255, %s256
      %p265 = scmp.eq.s32.totalorder %s35, 0
      %p266 = por %p264, %p265
      %p267 = scmp.ne.s32.totalorder %s255, %s256
      %p268 = scmp.eq.s32.totalorder %s36, 1
      %p269 = por %p267, %p268
      %p271 = scmp.ne.s32.totalorder %s256, %s270
      %p272 = scmp.eq.s32.totalorder %s36, 0
      %p273 = por %p271, %p272
      %s275 = sadd.s32 %s274, 1
      %p278 = scmp.eq.s32.totalorder %s30, 1
      %p279 = scmp.ne.s32.totalorder %s274, %s276
      %p280 = scmp.eq.s32.totalorder %s30, 0
      %p281 = por %p279, %p280
      %p282 = scmp.ne.s32.totalorder %s274, %s276
      %p283 = scmp.eq.s32.totalorder %s35, 1
      %p284 = por %p282, %p283
      %p285 = scmp.ne.s32.totalorder %s276, %s277
      %p286 = scmp.eq.s32.totalorder %s35, 0
      %p287 = por %p285, %p286
      %p288 = scmp.ne.s32.totalorder %s276, %s277
      %p289 = scmp.eq.s32.totalorder %s36, 1
      %p290 = por %p288, %p289
      %p292 = scmp.ne.s32.totalorder %s277, %s291
      %p293 = scmp.eq.s32.totalorder %s36, 0
      %p294 = por %p292, %p293
      %s296 = sadd.s32 %s295, 1
      %p299 = scmp.eq.s32.totalorder %s30, 1
      %p300 = scmp.ne.s32.totalorder %s295, %s297
      %p301 = scmp.eq.s32.totalorder %s30, 0
      %p302 = por %p300, %p301
      %p303 = scmp.ne.s32.totalorder %s295, %s297
      %p304 = scmp.eq.s32.totalorder %s35, 1
      %p305 = por %p303, %p304
      %p306 = scmp.ne.s32.totalorder %s297, %s298
      %p307 = scmp.eq.s32.totalorder %s35, 0
      %p308 = por %p306, %p307
      %p309 = scmp.ne.s32.totalorder %s297, %s298
      %p310 = scmp.eq.s32.totalorder %s36, 1
      %p311 = por %p309, %p310
      %p313 = scmp.ne.s32.totalorder %s298, %s312
      %p314 = scmp.eq.s32.totalorder %s36, 0
      %p315 = por %p313, %p314
      %s317 = sadd.s32 %s316, 1
      %p320 = scmp.eq.s32.totalorder %s30, 1
      %p321 = scmp.ne.s32.totalorder %s316, %s318
      %p322 = scmp.eq.s32.totalorder %s30, 0
      %p323 = por %p321, %p322
      %p324 = scmp.ne.s32.totalorder %s316, %s318
      %p325 = scmp.eq.s32.totalorder %s35, 1
      %p326 = por %p324, %p325
      %p327 = scmp.ne.s32.totalorder %s318, %s319
      %p328 = scmp.eq.s32.totalorder %s35, 0
      %p329 = por %p327, %p328
      %p330 = scmp.ne.s32.totalorder %s318, %s319
      %p331 = scmp.eq.s32.totalorder %s36, 1
      %p332 = por %p330, %p331
      %p334 = scmp.ne.s32.totalorder %s319, %s333
      %p335 = scmp.eq.s32.totalorder %s36, 0
      %p336 = por %p334, %p335
      %s338 = sadd.s32 %s337, 1
      %p341 = scmp.eq.s32.totalorder %s30, 1
      %p342 = scmp.ne.s32.totalorder %s337, %s339
      %p343 = scmp.eq.s32.totalorder %s30, 0
      %p344 = por %p342, %p343
      %p345 = scmp.ne.s32.totalorder %s337, %s339
      %p346 = scmp.eq.s32.totalorder %s35, 1
      %p347 = por %p345, %p346
      %p348 = scmp.ne.s32.totalorder %s339, %s340
      %p349 = scmp.eq.s32.totalorder %s35, 0
      %p350 = por %p348, %p349
      %p351 = scmp.ne.s32.totalorder %s339, %s340
      %p352 = scmp.eq.s32.totalorder %s36, 1
      %p353 = por %p351, %p352
      %p355 = scmp.ne.s32.totalorder %s340, %s354
      %p356 = scmp.eq.s32.totalorder %s36, 0
      %p357 = por %p355, %p356
      %s359 = sadd.s32 %s358, 1
      %p362 = scmp.eq.s32.totalorder %s30, 1
      %p363 = scmp.ne.s32.totalorder %s358, %s360
      %p364 = scmp.eq.s32.totalorder %s30, 0
      %p365 = por %p363, %p364
      %p366 = scmp.ne.s32.totalorder %s358, %s360
      %p367 = scmp.eq.s32.totalorder %s35, 1
      %p368 = por %p366, %p367
      %p369 = scmp.ne.s32.totalorder %s360, %s361
      %p370 = scmp.eq.s32.totalorder %s35, 0
      %p371 = por %p369, %p370
      %p372 = scmp.ne.s32.totalorder %s360, %s361
      %p373 = scmp.eq.s32.totalorder %s36, 1
      %p374 = por %p372, %p373
      %p376 = scmp.ne.s32.totalorder %s361, %s375
      %p377 = scmp.eq.s32.totalorder %s36, 0
      %p378 = por %p376, %p377
      %s380 = sadd.s32 %s379, 1
      %p383 = scmp.eq.s32.totalorder %s30, 1
      %p384 = scmp.ne.s32.totalorder %s379, %s381
      %p385 = scmp.eq.s32.totalorder %s30, 0
      %p386 = por %p384, %p385
      %p387 = scmp.ne.s32.totalorder %s379, %s381
      %p388 = scmp.eq.s32.totalorder %s35, 1
      %p389 = por %p387, %p388
      %p390 = scmp.ne.s32.totalorder %s381, %s382
      %p391 = scmp.eq.s32.totalorder %s35, 0
      %p392 = por %p390, %p391
      %p393 = scmp.ne.s32.totalorder %s381, %s382
      %p394 = scmp.eq.s32.totalorder %s36, 1
      %p395 = por %p393, %p394
      %p397 = scmp.ne.s32.totalorder %s382, %s396
      %p398 = scmp.eq.s32.totalorder %s36, 0
      %p399 = por %p397, %p398
      %s401 = sadd.s32 %s400, 1
      %p404 = scmp.eq.s32.totalorder %s30, 1
      %p405 = scmp.ne.s32.totalorder %s400, %s402
      %p406 = scmp.eq.s32.totalorder %s30, 0
      %p407 = por %p405, %p406
      %p408 = scmp.ne.s32.totalorder %s400, %s402
      %p409 = scmp.eq.s32.totalorder %s35, 1
      %p410 = por %p408, %p409
      %p411 = scmp.ne.s32.totalorder %s402, %s403
      %p412 = scmp.eq.s32.totalorder %s35, 0
      %p413 = por %p411, %p412
      %p414 = scmp.ne.s32.totalorder %s402, %s403
      %p415 = scmp.eq.s32.totalorder %s36, 1
      %p416 = por %p414, %p415
      %p418 = scmp.ne.s32.totalorder %s403, %s417
      %p419 = scmp.eq.s32.totalorder %s36, 0
      %p420 = por %p418, %p419
      %s422 = sadd.s32 %s421, 1
      %p425 = scmp.eq.s32.totalorder %s30, 1
      %p426 = scmp.ne.s32.totalorder %s421, %s423
      %p427 = scmp.eq.s32.totalorder %s30, 0
      %p428 = por %p426, %p427
      %p429 = scmp.ne.s32.totalorder %s421, %s423
      %p430 = scmp.eq.s32.totalorder %s35, 1
      %p431 = por %p429, %p430
      %p432 = scmp.ne.s32.totalorder %s423, %s424
      %p433 = scmp.eq.s32.totalorder %s35, 0
      %p434 = por %p432, %p433
      %p435 = scmp.ne.s32.totalorder %s423, %s424
      %p436 = scmp.eq.s32.totalorder %s36, 1
      %p437 = por %p435, %p436
      %p439 = scmp.ne.s32.totalorder %s424, %s438
      %p440 = scmp.eq.s32.totalorder %s36, 0
      %p441 = por %p439, %p440
      %s443 = sadd.s32 %s442, 1
      %p446 = scmp.eq.s32.totalorder %s30, 1
      %p447 = scmp.ne.s32.totalorder %s442, %s444
      %p448 = scmp.eq.s32.totalorder %s30, 0
      %p449 = por %p447, %p448
      %p450 = scmp.ne.s32.totalorder %s442, %s444
      %p451 = scmp.eq.s32.totalorder %s35, 1
      %p452 = por %p450, %p451
      %p453 = scmp.ne.s32.totalorder %s444, %s445
      %p454 = scmp.eq.s32.totalorder %s35, 0
      %p455 = por %p453, %p454
      %p456 = scmp.ne.s32.totalorder %s444, %s445
      %p457 = scmp.eq.s32.totalorder %s36, 1
      %p458 = por %p456, %p457
      %p460 = scmp.ne.s32.totalorder %s445, %s459
      %p461 = scmp.eq.s32.totalorder %s36, 0
      %p462 = por %p460, %p461
      %s464 = sadd.s32 %s463, 1
      %p467 = scmp.eq.s32.totalorder %s30, 1
      %p468 = scmp.ne.s32.totalorder %s463, %s465
      %p469 = scmp.eq.s32.totalorder %s30, 0
      %p470 = por %p468, %p469
      %p471 = scmp.ne.s32.totalorder %s463, %s465
      %p472 = scmp.eq.s32.totalorder %s35, 1
      %p473 = por %p471, %p472
      %p474 = scmp.ne.s32.totalorder %s465, %s466
      %p475 = scmp.eq.s32.totalorder %s35, 0
      %p476 = por %p474, %p475
      %p477 = scmp.ne.s32.totalorder %s465, %s466
      %p478 = scmp.eq.s32.totalorder %s36, 1
      %p479 = por %p477, %p478
      %p481 = scmp.ne.s32.totalorder %s466, %s480
      %p482 = scmp.eq.s32.totalorder %s36, 0
      %p483 = por %p481, %p482
      %s485 = sadd.s32 %s484, 1
      %p488 = scmp.eq.s32.totalorder %s30, 1
      %p489 = scmp.ne.s32.totalorder %s484, %s486
      %p490 = scmp.eq.s32.totalorder %s30, 0
      %p491 = por %p489, %p490
      %p492 = scmp.ne.s32.totalorder %s484, %s486
      %p493 = scmp.eq.s32.totalorder %s35, 1
      %p494 = por %p492, %p493
      %p495 = scmp.ne.s32.totalorder %s486, %s487
      %p496 = scmp.eq.s32.totalorder %s35, 0
      %p497 = por %p495, %p496
      %p498 = scmp.ne.s32.totalorder %s486, %s487
      %p499 = scmp.eq.s32.totalorder %s36, 1
      %p500 = por %p498, %p499
      %p502 = scmp.ne.s32.totalorder %s487, %s501
      %p503 = scmp.eq.s32.totalorder %s36, 0
      %p504 = por %p502, %p503
      %s506 = sadd.s32 %s505, 1
      %p509 = scmp.eq.s32.totalorder %s30, 1
      %p510 = scmp.ne.s32.totalorder %s505, %s507
      %p511 = scmp.eq.s32.totalorder %s30, 0
      %p512 = por %p510, %p511
      %p513 = scmp.ne.s32.totalorder %s505, %s507
      %p514 = scmp.eq.s32.totalorder %s35, 1
      %p515 = por %p513, %p514
      %p516 = scmp.ne.s32.totalorder %s507, %s508
      %p517 = scmp.eq.s32.totalorder %s35, 0
      %p518 = por %p516, %p517
      %p519 = scmp.ne.s32.totalorder %s507, %s508
      %p520 = scmp.eq.s32.totalorder %s36, 1
      %p521 = por %p519, %p520
      %p523 = scmp.ne.s32.totalorder %s508, %s522
      %p524 = scmp.eq.s32.totalorder %s36, 0
      %p525 = por %p523, %p524
      %s526 = ssub.s32 %s30, %s37
      %p527 = scmp.eq.s32.totalorder %s526, 0
      %s529 = sadd.s32 %s528, 1
      %s530 = scalar_select %p527, %s528, %s529
      %p533 = pneg %p527
      %p534 = scmp.eq.s32.totalorder %s30, 1
      %p535 = por %p533, %p534
      %p536 = scmp.ne.s32.totalorder %s528, %s531
      %p537 = scmp.eq.s32.totalorder %s30, 0
      %p538 = por %p536, %p537
      %p539 = scmp.ne.s32.totalorder %s528, %s531
      %p540 = scmp.eq.s32.totalorder %s35, 1
      %p541 = por %p539, %p540
      %p542 = scmp.ne.s32.totalorder %s531, %s532
      %p543 = scmp.eq.s32.totalorder %s35, 0
      %p544 = por %p542, %p543
      %p545 = scmp.ne.s32.totalorder %s531, %s532
      %p546 = scmp.eq.s32.totalorder %s36, 1
      %p547 = por %p545, %p546
      %p549 = scmp.ne.s32.totalorder %s532, %s548
      %p550 = scmp.eq.s32.totalorder %s36, 0
      %p551 = por %p549, %p550
      %p552 = scmp.le.s32.totalorder 1, %s30
      %p553 = scmp.lt.s32.totalorder %s30, 3
      %p554 = pnand %p552, %p553
      %p555 = pneg %p554
      // Predicated region
      $region9: #{forward.1} parent=5 // pred_check
        _
      $region10: #{forward.1} parent=5 // pred_check_branch
        %557 = sbr.rel (%p554) target = $region12
      $region11: #{forward.1} parent=5 // pred_region
        %s558 = ssub.s32 %s30, 1
        // Predicated region
        $region13: #{forward.1} parent=11 // pred_check
          %p559 = pneg %p77
        $region14: #{forward.1} parent=11 // pred_check_branch
          %561 = sbr.rel (%p559) target = $region16
        $region15: #{forward.1} parent=11 // pred_region
          _
        $region16: #{forward.1} parent=11 // pred_fallthru
          _
        // Predicated region
        $region17: #{forward.1} parent=11 // pred_check
          %p562 = pneg %p98
        $region18: #{forward.1} parent=11 // pred_check_branch
          %564 = sbr.rel (%p562) target = $region20
        $region19: #{forward.1} parent=11 // pred_region
          _
        $region20: #{forward.1} parent=11 // pred_fallthru
          _
        // Predicated region
        $region21: #{forward.1} parent=11 // pred_check
          %p565 = pneg %p119
        $region22: #{forward.1} parent=11 // pred_check_branch
          %567 = sbr.rel (%p565) target = $region24
        $region23: #{forward.1} parent=11 // pred_region
          _
        $region24: #{forward.1} parent=11 // pred_fallthru
          _
        // Predicated region
        $region25: #{forward.1} parent=11 // pred_check
          %p568 = pneg %p140
        $region26: #{forward.1} parent=11 // pred_check_branch
          %570 = sbr.rel (%p568) target = $region28
        $region27: #{forward.1} parent=11 // pred_region
          _
        $region28: #{forward.1} parent=11 // pred_fallthru
          _
        // Predicated region
        $region29: #{forward.1} parent=11 // pred_check
          %p571 = pneg %p161
        $region30: #{forward.1} parent=11 // pred_check_branch
          %573 = sbr.rel (%p571) target = $region32
        $region31: #{forward.1} parent=11 // pred_region
          _
        $region32: #{forward.1} parent=11 // pred_fallthru
          _
        // Predicated region
        $region33: #{forward.1} parent=11 // pred_check
          %p574 = pneg %p182
        $region34: #{forward.1} parent=11 // pred_check_branch
          %576 = sbr.rel (%p574) target = $region36
        $region35: #{forward.1} parent=11 // pred_region
          _
        $region36: #{forward.1} parent=11 // pred_fallthru
          _
        // Predicated region
        $region37: #{forward.1} parent=11 // pred_check
          %p577 = pneg %p203
        $region38: #{forward.1} parent=11 // pred_check_branch
          %579 = sbr.rel (%p577) target = $region40
        $region39: #{forward.1} parent=11 // pred_region
          _
        $region40: #{forward.1} parent=11 // pred_fallthru
          _
        // Predicated region
        $region41: #{forward.1} parent=11 // pred_check
          %p580 = pneg %p224
        $region42: #{forward.1} parent=11 // pred_check_branch
          %582 = sbr.rel (%p580) target = $region44
        $region43: #{forward.1} parent=11 // pred_region
          _
        $region44: #{forward.1} parent=11 // pred_fallthru
          _
        // Predicated region
        $region45: #{forward.1} parent=11 // pred_check
          %p583 = pneg %p245
        $region46: #{forward.1} parent=11 // pred_check_branch
          %585 = sbr.rel (%p583) target = $region48
        $region47: #{forward.1} parent=11 // pred_region
          _
        $region48: #{forward.1} parent=11 // pred_fallthru
          _
        // Predicated region
        $region49: #{forward.1} parent=11 // pred_check
          %p586 = pneg %p266
        $region50: #{forward.1} parent=11 // pred_check_branch
          %588 = sbr.rel (%p586) target = $region52
        $region51: #{forward.1} parent=11 // pred_region
          _
        $region52: #{forward.1} parent=11 // pred_fallthru
          _
        // Predicated region
        $region53: #{forward.1} parent=11 // pred_check
          %p589 = pneg %p287
        $region54: #{forward.1} parent=11 // pred_check_branch
          %591 = sbr.rel (%p589) target = $region56
        $region55: #{forward.1} parent=11 // pred_region
          _
        $region56: #{forward.1} parent=11 // pred_fallthru
          _
        // Predicated region
        $region57: #{forward.1} parent=11 // pred_check
          %p592 = pneg %p308
        $region58: #{forward.1} parent=11 // pred_check_branch
          %594 = sbr.rel (%p592) target = $region60
        $region59: #{forward.1} parent=11 // pred_region
          _
        $region60: #{forward.1} parent=11 // pred_fallthru
          _
        // Predicated region
        $region61: #{forward.1} parent=11 // pred_check
          %p595 = pneg %p329
        $region62: #{forward.1} parent=11 // pred_check_branch
          %597 = sbr.rel (%p595) target = $region64
        $region63: #{forward.1} parent=11 // pred_region
          _
        $region64: #{forward.1} parent=11 // pred_fallthru
          _
        // Predicated region
        $region65: #{forward.1} parent=11 // pred_check
          %p598 = pneg %p350
        $region66: #{forward.1} parent=11 // pred_check_branch
          %600 = sbr.rel (%p598) target = $region68
        $region67: #{forward.1} parent=11 // pred_region
          _
        $region68: #{forward.1} parent=11 // pred_fallthru
          _
        // Predicated region
        $region69: #{forward.1} parent=11 // pred_check
          %p601 = pneg %p371
        $region70: #{forward.1} parent=11 // pred_check_branch
          %603 = sbr.rel (%p601) target = $region72
        $region71: #{forward.1} parent=11 // pred_region
          _
        $region72: #{forward.1} parent=11 // pred_fallthru
          _
        // Predicated region
        $region73: #{forward.1} parent=11 // pred_check
          %p604 = pneg %p392
        $region74: #{forward.1} parent=11 // pred_check_branch
          %606 = sbr.rel (%p604) target = $region76
        $region75: #{forward.1} parent=11 // pred_region
          _
        $region76: #{forward.1} parent=11 // pred_fallthru
          _
        // Predicated region
        $region77: #{forward.1} parent=11 // pred_check
          %p607 = pneg %p413
        $region78: #{forward.1} parent=11 // pred_check_branch
          %609 = sbr.rel (%p607) target = $region80
        $region79: #{forward.1} parent=11 // pred_region
          _
        $region80: #{forward.1} parent=11 // pred_fallthru
          _
        // Predicated region
        $region81: #{forward.1} parent=11 // pred_check
          %p610 = pneg %p434
        $region82: #{forward.1} parent=11 // pred_check_branch
          %612 = sbr.rel (%p610) target = $region84
        $region83: #{forward.1} parent=11 // pred_region
          _
        $region84: #{forward.1} parent=11 // pred_fallthru
          _
        // Predicated region
        $region85: #{forward.1} parent=11 // pred_check
          %p613 = pneg %p455
        $region86: #{forward.1} parent=11 // pred_check_branch
          %615 = sbr.rel (%p613) target = $region88
        $region87: #{forward.1} parent=11 // pred_region
          _
        $region88: #{forward.1} parent=11 // pred_fallthru
          _
        // Predicated region
        $region89: #{forward.1} parent=11 // pred_check
          %p616 = pneg %p476
        $region90: #{forward.1} parent=11 // pred_check_branch
          %618 = sbr.rel (%p616) target = $region92
        $region91: #{forward.1} parent=11 // pred_region
          _
        $region92: #{forward.1} parent=11 // pred_fallthru
          _
        // Predicated region
        $region93: #{forward.1} parent=11 // pred_check
          %p619 = pneg %p497
        $region94: #{forward.1} parent=11 // pred_check_branch
          %621 = sbr.rel (%p619) target = $region96
        $region95: #{forward.1} parent=11 // pred_region
          _
        $region96: #{forward.1} parent=11 // pred_fallthru
          _
        // Predicated region
        $region97: #{forward.1} parent=11 // pred_check
          %p622 = pneg %p518
        $region98: #{forward.1} parent=11 // pred_check_branch
          %624 = sbr.rel (%p622) target = $region100
        $region99: #{forward.1} parent=11 // pred_region
          _
        $region100: #{forward.1} parent=11 // pred_fallthru
          _
      $region12: #{forward.1} parent=5 // pred_fallthru
        _
      %p625 = scmp.lt.s32.totalorder %s30, 2
      // Predicated region
      $region101: #{forward.1} parent=5 // pred_check
        %p626 = pneg %p625
      $region102: #{forward.1} parent=5 // pred_check_branch
        %628 = sbr.rel (%p626) target = $region104
      $region103: #{forward.1} parent=5 // pred_region
        // Predicated region
        $region105: #{forward.1} parent=103 // pred_check
          %p629 = pneg %p50
        $region106: #{forward.1} parent=103 // pred_check_branch
          %631 = sbr.rel (%p629) target = $region108
        $region107: #{forward.1} parent=103 // pred_region
          %p632 = scmp.lt.s32.totalorder %s30, 1
          %s633 = scalar_select %p632, %s30, 1
          %s634 = smul.addr %s633, 8
          %s635 = smul.addr %s634, 8
          %s636 = scalar_lea.vmem %s0, %s635
        $region108: #{forward.1} parent=103 // pred_fallthru
          _
      $region104: #{forward.1} parent=5 // pred_fallthru
        _
      %p637 = scmp.le.s32.totalorder 1, %s30
      %p638 = scmp.lt.s32.totalorder %s30, 3
      %p639 = pnand %p637, %p638
      %p640 = pneg %p639
      // Predicated region
      $region109: #{forward.1} parent=5 // pred_check
        _
      $region110: #{forward.1} parent=5 // pred_check_branch
        %642 = sbr.rel (%p639) target = $region112
      $region111: #{forward.1} parent=5 // pred_region
        %s643 = ssub.s32 %s30, 1
        %p644 = scmp.lt.s32.totalorder %s35, 1
        %s645 = scalar_select %p644, %s35, 1
        %s646 = smul.addr %s645, 8
        %s647 = smul.addr %s646, 8
        %s648 = scalar_lea.vmem %s0, %s647
        %p649 = pneg %p56
        %p650 = pneg %p53
        %p651 = pneg %p77
        %p652 = pneg %p74
        %p653 = pneg %p98
        %p654 = pneg %p95
        %p655 = pneg %p119
        %p656 = pneg %p116
        %p657 = pneg %p140
        %p658 = pneg %p137
        %p659 = pneg %p161
        %p660 = pneg %p158
        %p661 = pneg %p182
        %p662 = pneg %p179
        %p663 = pneg %p203
        %p664 = pneg %p200
        %p665 = pneg %p224
        %p666 = pneg %p221
        %p667 = pneg %p245
        %p668 = pneg %p242
        %p669 = pneg %p266
        %p670 = pneg %p263
        %p671 = pneg %p287
        %p672 = pneg %p284
        %p673 = pneg %p308
        %p674 = pneg %p305
        %p675 = pneg %p329
        %p676 = pneg %p326
        %p677 = pneg %p350
        %p678 = pneg %p347
        %p679 = pneg %p371
        %p680 = pneg %p368
        %p681 = pneg %p392
        %p682 = pneg %p389
        %p683 = pneg %p413
        %p684 = pneg %p410
        %p685 = pneg %p434
        %p686 = pneg %p431
        %p687 = pneg %p455
        %p688 = pneg %p452
        %p689 = pneg %p476
        %p690 = pneg %p473
        %p691 = pneg %p497
        %p692 = pneg %p494
        %p693 = pneg %p518
        %p694 = pneg %p515
        %p695 = pneg %p544
        %p696 = pneg %p541
        %s697 = sand.u32 %s531, 1
        %s698 = sand.u32 %s531, 1
        %s699 = smul.addr %s698, 128
        %s700 = scalar_lea.vmem [#allocation4], %s699
        %p701 = scmp.lt.s32.totalorder %s35, 1
        %s702 = scalar_select %p701, %s35, 1
        %s703 = smul.addr %s702, 8
        %s704 = smul.addr %s703, 8
        %s705 = scalar_lea.vmem %s0, %s704
        %v707 = vld [vmem:[%s705] sm:$0xff]
        %v708 = vld [vmem:[%s705 + $0x8] sm:$0xff]
        %v709 = vld [vmem:[%s705 + $0x10] sm:$0xff]
        %v710 = vld [vmem:[%s705 + $0x18] sm:$0xff]
        %v711 = vld [vmem:[%s705 + $0x20] sm:$0xff]
        %v712 = vld [vmem:[%s705 + $0x28] sm:$0xff]
        %v713 = vld [vmem:[%s705 + $0x30] sm:$0xff]
        %v714 = vld [vmem:[%s705 + $0x38] sm:$0xff]
        %vm715 = vcmask 261120
        %v716 = vsel %vm715, %v707, 0.0
        %v717 = vsel %vm715, %v708, 0.0
        %v718 = vadd.f32 %v716, %v717
        %v719 = vsel %vm715, %v709, 0.0
        %v720 = vadd.f32 %v718, %v719
        %v721 = vsel %vm715, %v710, 0.0
        %v722 = vadd.f32 %v720, %v721
        %v723 = vsel %vm715, %v711, 0.0
        %v724 = vadd.f32 %v722, %v723
        %v725 = vsel %vm715, %v712, 0.0
        %v726 = vadd.f32 %v724, %v725
        %v727 = vsel %vm715, %v713, 0.0
        %v728 = vadd.f32 %v726, %v727
        %v729 = vsel %vm715, %v714, 0.0
        %v730 = vadd.f32 %v728, %v729
        %731 = vadd.xlane.f32.xlu0 %v730
        %v732 = vpop.xlane.xlu0 %731
        %v733 = vrot.slane %v732, 4
        %v734 = vadd.f32 %v732, %v733
        %v735 = vrot.slane %v734, 2
        %v736 = vadd.f32 %v734, %v735
        %v737 = vrot.slane %v736, 1
        %v738 = vadd.f32 %v736, %v737
        %s739 = vtos %v738
        %v740 = vrcp.pop 2048.0
        %v741 = vmul.f32 2048.0, %v740
        %v742 = vsub.f32 1.0, %v741
        %v743 = vmul.f32 %v740, %v742
        %v744 = vadd.f32 %v740, %v743
        %vm745 = vweird.f32 %v740
        %v746 = vsel %vm745, %v740, %v744
        %s747 = vtos %v746
        %s748 = smul.f32 %s739, %s747
        %v749 = vstv %s748
        %v750 = vsub.f32 %v707, %v749
        %v751 = vsub.f32 %v708, %v749
        %v752 = vsub.f32 %v709, %v749
        %v753 = vsub.f32 %v710, %v749
        %v754 = vsub.f32 %v711, %v749
        %v755 = vsub.f32 %v712, %v749
        %v756 = vsub.f32 %v713, %v749
        %v757 = vsub.f32 %v714, %v749
        %v758 = vmul.f32 %v750, %v750
        %v759 = vmul.f32 %v751, %v751
        %v760 = vmul.f32 %v752, %v752
        %v761 = vmul.f32 %v753, %v753
        %v762 = vmul.f32 %v754, %v754
        %v763 = vmul.f32 %v755, %v755
        %v764 = vmul.f32 %v756, %v756
        %v765 = vmul.f32 %v757, %v757
        %v766 = vsel %vm715, %v758, 0.0
        %v767 = vsel %vm715, %v759, 0.0
        %v768 = vadd.f32 %v766, %v767
        %v769 = vsel %vm715, %v760, 0.0
        %v770 = vadd.f32 %v768, %v769
        %v771 = vsel %vm715, %v761, 0.0
        %v772 = vadd.f32 %v770, %v771
        %v773 = vsel %vm715, %v762, 0.0
        %v774 = vadd.f32 %v772, %v773
        %v775 = vsel %vm715, %v763, 0.0
        %v776 = vadd.f32 %v774, %v775
        %v777 = vsel %vm715, %v764, 0.0
        %v778 = vadd.f32 %v776, %v777
        %v779 = vsel %vm715, %v765, 0.0
        %v780 = vadd.f32 %v778, %v779
        %781 = vadd.xlane.f32.xlu0 %v780
        %v782 = vpop.xlane.xlu0 %781
        %v783 = vrot.slane %v782, 4
        %v784 = vadd.f32 %v782, %v783
        %v785 = vrot.slane %v784, 2
        %v786 = vadd.f32 %v784, %v785
        %v787 = vrot.slane %v786, 1
        %v788 = vadd.f32 %v786, %v787
        %s789 = vtos %v788
        %v790 = vrcp.pop 2048.0
        %v791 = vmul.f32 2048.0, %v790
        %v792 = vsub.f32 1.0, %v791
        %v793 = vmul.f32 %v790, %v792
        %v794 = vadd.f32 %v790, %v793
        %vm795 = vweird.f32 %v790
        %v796 = vsel %vm795, %v790, %v794
        %s797 = vtos %v796
        %s798 = smul.f32 %s789, %s797
        %s799 = sadd.f32 %s798, 1e-08
        %v800 = vstv %s799
        %v801 = vrsqrt.pop %v800
        %v802 = vmul.f32 %v801, %v800
        %v803 = vmul.f32 %v802, %v801
        %v804 = vmul.f32 0.5, %v803
        %v805 = vsub.f32 1.5, %v804
        %v806 = vmul.f32 %v801, %v805
        %vm807 = vweird.f32 %v800
        %vm808 = vweird.f32 %v801
        %vm809 = vmor %vm807, %vm808
        %v810 = vsel %vm809, %v801, %v806
        %s811 = vtos %v810
        %v812 = vstv %s811
        %v813 = vmul.f32 %v750, %v812
        %v814 = vmul.f32 %v751, %v812
        %v815 = vmul.f32 %v752, %v812
        %v816 = vmul.f32 %v753, %v812
        %v817 = vmul.f32 %v754, %v812
        %v818 = vmul.f32 %v755, %v812
        %v819 = vmul.f32 %v756, %v812
        %v820 = vmul.f32 %v757, %v812
        %v821 = vld [vmem:[%s1] sm:$0x1]
        %v823 = vperm.slane %v821, 0
        %v825 = vmul.f32 %v813, %v823
        %v826 = vmul.f32 %v814, %v823
        %v827 = vmul.f32 %v815, %v823
        %v828 = vmul.f32 %v816, %v823
        %v829 = vmul.f32 %v817, %v823
        %v830 = vmul.f32 %v818, %v823
        %v831 = vmul.f32 %v819, %v823
        %v832 = vmul.f32 %v820, %v823
        %v833 = vld [vmem:[%s2] sm:$0x1]
        %v835 = vperm.slane %v833, 0
        %v837 = vadd.f32 %v825, %v835
        %v838 = vadd.f32 %v826, %v835
        %v839 = vadd.f32 %v827, %v835
        %v840 = vadd.f32 %v828, %v835
        %v841 = vadd.f32 %v829, %v835
        %v842 = vadd.f32 %v830, %v835
        %v843 = vadd.f32 %v831, %v835
        %v844 = vadd.f32 %v832, %v835
        %845 = vst.msk [vmem:[#allocation2] sm:$0xff] %vm715, 0.0
        %846 = vst.msk [vmem:[#allocation2 + $0x48] sm:$0xff] %vm715, 0.0
        %847 = vst.msk [vmem:[#allocation2 + $0x8] sm:$0xff] %vm715, %v837
        %848 = vst.msk [vmem:[#allocation2 + $0x10] sm:$0xff] %vm715, %v838
        %849 = vst.msk [vmem:[#allocation2 + $0x18] sm:$0xff] %vm715, %v839
        %850 = vst.msk [vmem:[#allocation2 + $0x20] sm:$0xff] %vm715, %v840
        %851 = vst.msk [vmem:[#allocation2 + $0x28] sm:$0xff] %vm715, %v841
        %852 = vst.msk [vmem:[#allocation2 + $0x30] sm:$0xff] %vm715, %v842
        %853 = vst.msk [vmem:[#allocation2 + $0x38] sm:$0xff] %vm715, %v843
        %854 = vst.msk [vmem:[#allocation2 + $0x40] sm:$0xff] %vm715, %v844
        %v855 = vld [vmem:[#allocation2 + $0x5] sm:$0xff]
        %v856 = vld [vmem:[#allocation2 + $0xd] sm:$0xff]
        %v857 = vld [vmem:[#allocation2 + $0x15] sm:$0xff]
        %v858 = vld [vmem:[#allocation2 + $0x1d] sm:$0xff]
        %v859 = vld [vmem:[#allocation2 + $0x25] sm:$0xff]
        %v860 = vld [vmem:[#allocation2 + $0x2d] sm:$0xff]
        %v861 = vld [vmem:[#allocation2 + $0x35] sm:$0xff]
        %v862 = vld [vmem:[#allocation2 + $0x3d] sm:$0xff]
        %v863 = vld [vmem:[#allocation2 + $0x6] sm:$0xff]
        %v864 = vld [vmem:[#allocation2 + $0xe] sm:$0xff]
        %v865 = vld [vmem:[#allocation2 + $0x16] sm:$0xff]
        %v866 = vld [vmem:[#allocation2 + $0x1e] sm:$0xff]
        %v867 = vld [vmem:[#allocation2 + $0x26] sm:$0xff]
        %v868 = vld [vmem:[#allocation2 + $0x2e] sm:$0xff]
        %v869 = vld [vmem:[#allocation2 + $0x36] sm:$0xff]
        %v870 = vld [vmem:[#allocation2 + $0x3e] sm:$0xff]
        %v871 = vld [vmem:[#allocation2 + $0x7] sm:$0xff]
        %v872 = vld [vmem:[#allocation2 + $0xf] sm:$0xff]
        %v873 = vld [vmem:[#allocation2 + $0x17] sm:$0xff]
        %v874 = vld [vmem:[#allocation2 + $0x1f] sm:$0xff]
        %v875 = vld [vmem:[#allocation2 + $0x27] sm:$0xff]
        %v876 = vld [vmem:[#allocation2 + $0x2f] sm:$0xff]
        %v877 = vld [vmem:[#allocation2 + $0x37] sm:$0xff]
        %v878 = vld [vmem:[#allocation2 + $0x3f] sm:$0xff]
        %v879 = vld [vmem:[#allocation2 + $0x8] sm:$0xff]
        %v880 = vld [vmem:[#allocation2 + $0x10] sm:$0xff]
        %v881 = vld [vmem:[#allocation2 + $0x18] sm:$0xff]
        %v882 = vld [vmem:[#allocation2 + $0x20] sm:$0xff]
        %v883 = vld [vmem:[#allocation2 + $0x28] sm:$0xff]
        %v884 = vld [vmem:[#allocation2 + $0x30] sm:$0xff]
        %v885 = vld [vmem:[#allocation2 + $0x38] sm:$0xff]
        %v886 = vld [vmem:[#allocation2 + $0x40] sm:$0xff]
        %v887 = vld [vmem:[#allocation2 + $0x9] sm:$0xff]
        %v888 = vld [vmem:[#allocation2 + $0x11] sm:$0xff]
        %v889 = vld [vmem:[#allocation2 + $0x19] sm:$0xff]
        %v890 = vld [vmem:[#allocation2 + $0x21] sm:$0xff]
        %v891 = vld [vmem:[#allocation2 + $0x29] sm:$0xff]
        %v892 = vld [vmem:[#allocation2 + $0x31] sm:$0xff]
        %v893 = vld [vmem:[#allocation2 + $0x39] sm:$0xff]
        %v894 = vld [vmem:[#allocation2 + $0x41] sm:$0xff]
        %v895 = vld [vmem:[#allocation2 + $0xa] sm:$0xff]
        %v896 = vld [vmem:[#allocation2 + $0x12] sm:$0xff]
        %v897 = vld [vmem:[#allocation2 + $0x1a] sm:$0xff]
        %v898 = vld [vmem:[#allocation2 + $0x22] sm:$0xff]
        %v899 = vld [vmem:[#allocation2 + $0x2a] sm:$0xff]
        %v900 = vld [vmem:[#allocation2 + $0x32] sm:$0xff]
        %v901 = vld [vmem:[#allocation2 + $0x3a] sm:$0xff]
        %v902 = vld [vmem:[#allocation2 + $0x42] sm:$0xff]
        %v903 = vld [vmem:[#allocation2 + $0xb] sm:$0xff]
        %v904 = vld [vmem:[#allocation2 + $0x13] sm:$0xff]
        %v905 = vld [vmem:[#allocation2 + $0x1b] sm:$0xff]
        %v906 = vld [vmem:[#allocation2 + $0x23] sm:$0xff]
        %v907 = vld [vmem:[#allocation2 + $0x2b] sm:$0xff]
        %v908 = vld [vmem:[#allocation2 + $0x33] sm:$0xff]
        %v909 = vld [vmem:[#allocation2 + $0x3b] sm:$0xff]
        %v910 = vld [vmem:[#allocation2 + $0x43] sm:$0xff]
        %919 = vrot.lane.b32.xlu0 %v863, 32
        %v920 = vpop.permute.xlu0 %919
        %921 = vrot.lane.b32.xlu0 %v864, 32
        %v922 = vpop.permute.xlu0 %921
        %923 = vrot.lane.b32.xlu0 %v865, 32
        %v924 = vpop.permute.xlu0 %923
        %925 = vrot.lane.b32.xlu0 %v866, 32
        %v926 = vpop.permute.xlu0 %925
        %927 = vrot.lane.b32.xlu0 %v867, 32
        %v928 = vpop.permute.xlu0 %927
        %929 = vrot.lane.b32.xlu0 %v868, 32
        %v930 = vpop.permute.xlu0 %929
        %931 = vrot.lane.b32.xlu0 %v869, 32
        %v932 = vpop.permute.xlu0 %931
        %933 = vrot.lane.b32.xlu0 %v870, 32
        %v934 = vpop.permute.xlu0 %933
        %951 = vrot.lane.b32.xlu0 %v871, 64
        %v952 = vpop.permute.xlu0 %951
        %953 = vrot.lane.b32.xlu0 %v872, 64
        %v954 = vpop.permute.xlu0 %953
        %955 = vrot.lane.b32.xlu0 %v873, 64
        %v956 = vpop.permute.xlu0 %955
        %957 = vrot.lane.b32.xlu0 %v874, 64
        %v958 = vpop.permute.xlu0 %957
        %959 = vrot.lane.b32.xlu0 %v875, 64
        %v960 = vpop.permute.xlu0 %959
        %961 = vrot.lane.b32.xlu0 %v876, 64
        %v962 = vpop.permute.xlu0 %961
        %963 = vrot.lane.b32.xlu0 %v877, 64
        %v964 = vpop.permute.xlu0 %963
        %965 = vrot.lane.b32.xlu0 %v878, 64
        %v966 = vpop.permute.xlu0 %965
        %983 = vrot.lane.b32.xlu0 %v879, 96
        %v984 = vpop.permute.xlu0 %983
        %985 = vrot.lane.b32.xlu0 %v880, 96
        %v986 = vpop.permute.xlu0 %985
        %987 = vrot.lane.b32.xlu0 %v881, 96
        %v988 = vpop.permute.xlu0 %987
        %989 = vrot.lane.b32.xlu0 %v882, 96
        %v990 = vpop.permute.xlu0 %989
        %991 = vrot.lane.b32.xlu0 %v883, 96
        %v992 = vpop.permute.xlu0 %991
        %993 = vrot.lane.b32.xlu0 %v884, 96
        %v994 = vpop.permute.xlu0 %993
        %995 = vrot.lane.b32.xlu0 %v885, 96
        %v996 = vpop.permute.xlu0 %995
        %997 = vrot.lane.b32.xlu0 %v886, 96
        %v998 = vpop.permute.xlu0 %997
        %1015 = vrot.lane.b32.xlu0 %v895, 32
        %v1016 = vpop.permute.xlu0 %1015
        %1017 = vrot.lane.b32.xlu0 %v896, 32
        %v1018 = vpop.permute.xlu0 %1017
        %1019 = vrot.lane.b32.xlu0 %v897, 32
        %v1020 = vpop.permute.xlu0 %1019
        %1021 = vrot.lane.b32.xlu0 %v898, 32
        %v1022 = vpop.permute.xlu0 %1021
        %1023 = vrot.lane.b32.xlu0 %v899, 32
        %v1024 = vpop.permute.xlu0 %1023
        %1025 = vrot.lane.b32.xlu0 %v900, 32
        %v1026 = vpop.permute.xlu0 %1025
        %1027 = vrot.lane.b32.xlu0 %v901, 32
        %v1028 = vpop.permute.xlu0 %1027
        %1029 = vrot.lane.b32.xlu0 %v902, 32
        %v1030 = vpop.permute.xlu0 %1029
        %1047 = vrot.lane.b32.xlu0 %v903, 64
        %v1048 = vpop.permute.xlu0 %1047
        %1049 = vrot.lane.b32.xlu0 %v904, 64
        %v1050 = vpop.permute.xlu0 %1049
        %1051 = vrot.lane.b32.xlu0 %v905, 64
        %v1052 = vpop.permute.xlu0 %1051
        %1053 = vrot.lane.b32.xlu0 %v906, 64
        %v1054 = vpop.permute.xlu0 %1053
        %1055 = vrot.lane.b32.xlu0 %v907, 64
        %v1056 = vpop.permute.xlu0 %1055
        %1057 = vrot.lane.b32.xlu0 %v908, 64
        %v1058 = vpop.permute.xlu0 %1057
        %1059 = vrot.lane.b32.xlu0 %v909, 64
        %v1060 = vpop.permute.xlu0 %1059
        %1061 = vrot.lane.b32.xlu0 %v910, 64
        %v1062 = vpop.permute.xlu0 %1061
        %v1071 = vsel %vm715, %v855, %v920
        %v1072 = vsel %vm715, %v856, %v922
        %v1073 = vsel %vm715, %v857, %v924
        %v1074 = vsel %vm715, %v858, %v926
        %v1075 = vsel %vm715, %v859, %v928
        %v1076 = vsel %vm715, %v860, %v930
        %v1077 = vsel %vm715, %v861, %v932
        %v1078 = vsel %vm715, %v862, %v934
        %vm1079 = vcmask 523264
        %v1080 = vsel %vm1079, %v1071, %v952
        %v1081 = vsel %vm1079, %v1072, %v954
        %v1082 = vsel %vm1079, %v1073, %v956
        %v1083 = vsel %vm1079, %v1074, %v958
        %v1084 = vsel %vm1079, %v1075, %v960
        %v1085 = vsel %vm1079, %v1076, %v962
        %v1086 = vsel %vm1079, %v1077, %v964
        %v1087 = vsel %vm1079, %v1078, %v966
        %vm1088 = vcmask 785408
        %v1089 = vsel %vm1088, %v1080, %v984
        %v1090 = vsel %vm1088, %v1081, %v986
        %v1091 = vsel %vm1088, %v1082, %v988
        %v1092 = vsel %vm1088, %v1083, %v990
        %v1093 = vsel %vm1088, %v1084, %v992
        %v1094 = vsel %vm1088, %v1085, %v994
        %v1095 = vsel %vm1088, %v1086, %v996
        %v1096 = vsel %vm1088, %v1087, %v998
        %v1097 = vsel %vm715, %v887, %v1016
        %v1098 = vsel %vm715, %v888, %v1018
        %v1099 = vsel %vm715, %v889, %v1020
        %v1100 = vsel %vm715, %v890, %v1022
        %v1101 = vsel %vm715, %v891, %v1024
        %v1102 = vsel %vm715, %v892, %v1026
        %v1103 = vsel %vm715, %v893, %v1028
        %v1104 = vsel %vm715, %v894, %v1030
        %v1105 = vsel %vm1079, %v1097, %v1048
        %v1106 = vsel %vm1079, %v1098, %v1050
        %v1107 = vsel %vm1079, %v1099, %v1052
        %v1108 = vsel %vm1079, %v1100, %v1054
        %v1109 = vsel %vm1079, %v1101, %v1056
        %v1110 = vsel %vm1079, %v1102, %v1058
        %v1111 = vsel %vm1079, %v1103, %v1060
        %v1112 = vsel %vm1079, %v1104, %v1062
        %v1113 = vpack.c.bf16 %v1090, %v1089
        %v1114 = vpack.c.bf16 %v1106, %v1105
        %v1115 = vpack.c.bf16 %v1092, %v1091
        %v1116 = vpack.c.bf16 %v1108, %v1107
        %v1117 = vpack.c.bf16 %v1094, %v1093
        %v1118 = vpack.c.bf16 %v1110, %v1109
        %v1119 = vpack.c.bf16 %v1096, %v1095
        %v1120 = vpack.c.bf16 %v1112, %v1111
        %v1121 = vld [vmem:[%s3] sm:$0xf]
        %v1122 = vld [vmem:[%s3 + $0x4] sm:$0xf]
        %v1123 = vld [vmem:[%s3 + $0x8] sm:$0xf]
        %v1124 = vld [vmem:[%s3 + $0xc] sm:$0xf]
        %v1125 = vld [vmem:[%s3 + $0x10] sm:$0xf]
        %v1126 = vld [vmem:[%s3 + $0x14] sm:$0xf]
        %v1127 = vld [vmem:[%s3 + $0x18] sm:$0xf]
        %v1128 = vld [vmem:[%s3 + $0x1c] sm:$0xf]
        %v1129 = vld [vmem:[%s3 + $0x20] sm:$0xf]
        %v1130 = vld [vmem:[%s3 + $0x24] sm:$0xf]
        %v1131 = vld [vmem:[%s3 + $0x28] sm:$0xf]
        %v1132 = vld [vmem:[%s3 + $0x2c] sm:$0xf]
        %v1133 = vld [vmem:[%s3 + $0x30] sm:$0xf]
        %v1134 = vld [vmem:[%s3 + $0x34] sm:$0xf]
        %v1135 = vld [vmem:[%s3 + $0x38] sm:$0xf]
        %v1136 = vld [vmem:[%s3 + $0x3c] sm:$0xf]
        %v1137 = vld [vmem:[%s3 + $0x40] sm:$0xf]
        %v1138 = vld [vmem:[%s3 + $0x44] sm:$0xf]
        %v1139 = vld [vmem:[%s3 + $0x48] sm:$0xf]
        %v1140 = vld [vmem:[%s3 + $0x4c] sm:$0xf]
        %v1141 = vld [vmem:[%s3 + $0x50] sm:$0xf]
        %v1142 = vld [vmem:[%s3 + $0x54] sm:$0xf]
        %v1143 = vld [vmem:[%s3 + $0x58] sm:$0xf]
        %v1144 = vld [vmem:[%s3 + $0x5c] sm:$0xf]
        %v1145 = vld [vmem:[%s3 + $0x60] sm:$0xf]
        %v1146 = vld [vmem:[%s3 + $0x64] sm:$0xf]
        %v1147 = vld [vmem:[%s3 + $0x68] sm:$0xf]
        %v1148 = vld [vmem:[%s3 + $0x6c] sm:$0xf]
        %v1149 = vld [vmem:[%s4] sm:$0x1]
        %v1151 = vperm.slane %v1149, 0
        %v1181 = vunpack.c.l.b16 %v1121
        %v1182 = vunpack.c.l.b16 %v1122
        %v1183 = vunpack.c.l.b16 %v1123
        %v1184 = vunpack.c.l.b16 %v1124
        %v1185 = vunpack.c.l.b16 %v1125
        %v1186 = vunpack.c.l.b16 %v1126
        %v1187 = vunpack.c.l.b16 %v1127
        %v1188 = vunpack.c.l.b16 %v1128
        %v1189 = vunpack.c.l.b16 %v1129
        %v1190 = vunpack.c.l.b16 %v1130
        %v1191 = vunpack.c.l.b16 %v1131
        %v1192 = vunpack.c.l.b16 %v1132
        %v1193 = vunpack.c.l.b16 %v1133
        %v1194 = vunpack.c.l.b16 %v1134
        %v1195 = vunpack.c.l.b16 %v1135
        %v1196 = vunpack.c.l.b16 %v1136
        %v1197 = vunpack.c.l.b16 %v1137
        %v1198 = vunpack.c.l.b16 %v1138
        %v1199 = vunpack.c.l.b16 %v1139
        %v1200 = vunpack.c.l.b16 %v1140
        %v1201 = vunpack.c.l.b16 %v1141
        %v1202 = vunpack.c.l.b16 %v1142
        %v1203 = vunpack.c.l.b16 %v1143
        %v1204 = vunpack.c.l.b16 %v1144
        %v1205 = vunpack.c.l.b16 %v1145
        %v1206 = vunpack.c.l.b16 %v1146
        %v1207 = vunpack.c.l.b16 %v1147
        %v1208 = vunpack.c.l.b16 %v1148
        %v1209 = vpack.c.b16 %v1182, %v1181
        %v1210 = vpack.c.b16 %v1184, %v1183
        %v1211 = vpack.c.b16 %v1186, %v1185
        %v1212 = vpack.c.b16 %v1188, %v1187
        %v1213 = vpack.c.b16 %v1190, %v1189
        %v1214 = vpack.c.b16 %v1192, %v1191
        %v1215 = vpack.c.b16 %v1194, %v1193
        %v1216 = vpack.c.b16 %v1196, %v1195
        %v1217 = vpack.c.b16 %v1198, %v1197
        %v1218 = vpack.c.b16 %v1200, %v1199
        %v1219 = vpack.c.b16 %v1202, %v1201
        %v1220 = vpack.c.b16 %v1204, %v1203
        %v1221 = vpack.c.b16 %v1206, %v1205
        %v1222 = vpack.c.b16 %v1208, %v1207
        %v1238 = vsel %vm1088, %v1114, 0
        %v1241 = vsel %vm1088, %v1116, 0
        %v1244 = vsel %vm1088, %v1118, 0
        %v1247 = vsel %vm1088, %v1120, 0
        %1249 = vmatpush.bf16.msra.mxu0 %v1216
        %1250 = vmatpush.bf16.msra.mxu0 %v1215
        %1251 = vmatpush.bf16.msra.mxu0 %v1214
        %1252 = vmatpush.bf16.msra.mxu0 %v1213
        %1253 = vmatpush.bf16.msra.mxu0 %v1212
        %1254 = vmatpush.bf16.msra.mxu0 %v1211
        %1255 = vmatpush.bf16.msra.mxu0 %v1210
        %1256 = vmatpush.bf16.msra.mxu0 %v1209
        %1257 = vmatmul.bf16.gmra.mxu0 %v1113
        %v1258 = vpop.f32.mrf.mxu0
        %v1259 = vadd.f32 %v1151, %v1258
        %v1260 = vpop.f32.mrf.mxu0
        %v1261 = vadd.f32 %v1151, %v1260
        %1262 = vmatmul.bf16.gmra.mxu0 %v1115
        %v1263 = vpop.f32.mrf.mxu0
        %v1264 = vadd.f32 %v1151, %v1263
        %v1265 = vpop.f32.mrf.mxu0
        %v1266 = vadd.f32 %v1151, %v1265
        %1267 = vmatmul.bf16.gmra.mxu0 %v1117
        %v1268 = vpop.f32.mrf.mxu0
        %v1269 = vadd.f32 %v1151, %v1268
        %v1270 = vpop.f32.mrf.mxu0
        %v1271 = vadd.f32 %v1151, %v1270
        %1272 = vmatmul.bf16.gmra.mxu0 %v1119
        %v1273 = vpop.f32.mrf.mxu0
        %v1274 = vadd.f32 %v1151, %v1273
        %v1275 = vpop.f32.mrf.mxu0
        %v1276 = vadd.f32 %v1151, %v1275
        %1277 = vdwg.mxu0
        %1278 = vmatpush.bf16.msra.mxu0 0
        %1279 = vmatpush.bf16.msra.mxu0 0
        %1280 = vmatpush.bf16.msra.mxu0 %v1222
        %1281 = vmatpush.bf16.msra.mxu0 %v1221
        %1282 = vmatpush.bf16.msra.mxu0 %v1220
        %1283 = vmatpush.bf16.msra.mxu0 %v1219
        %1284 = vmatpush.bf16.msra.mxu0 %v1218
        %1285 = vmatpush.bf16.msra.mxu0 %v1217
        %1286 = vmatmul.bf16.gmra.mxu0 %v1238
        %v1287 = vpop.f32.mrf.mxu0
        %v1288 = vadd.f32 %v1259, %v1287
        %v1289 = vpop.f32.mrf.mxu0
        %v1290 = vadd.f32 %v1261, %v1289
        %1291 = vmatmul.bf16.gmra.mxu0 %v1241
        %v1292 = vpop.f32.mrf.mxu0
        %v1293 = vadd.f32 %v1264, %v1292
        %v1294 = vpop.f32.mrf.mxu0
        %v1295 = vadd.f32 %v1266, %v1294
        %1296 = vmatmul.bf16.gmra.mxu0 %v1244
        %v1297 = vpop.f32.mrf.mxu0
        %v1298 = vadd.f32 %v1269, %v1297
        %v1299 = vpop.f32.mrf.mxu0
        %v1300 = vadd.f32 %v1271, %v1299
        %1301 = vmatmul.bf16.gmra.mxu0 %v1247
        %v1302 = vpop.f32.mrf.mxu0
        %v1303 = vadd.f32 %v1274, %v1302
        %v1304 = vpop.f32.mrf.mxu0
        %v1305 = vadd.f32 %v1276, %v1304
        %1306 = vdwg.mxu0
        %v1307 = vmax.f32 %v1288, 0.0
        %v1308 = vmax.f32 %v1290, 0.0
        %v1309 = vmax.f32 %v1293, 0.0
        %v1310 = vmax.f32 %v1295, 0.0
        %v1311 = vmax.f32 %v1298, 0.0
        %v1312 = vmax.f32 %v1300, 0.0
        %v1313 = vmax.f32 %v1303, 0.0
        %v1314 = vmax.f32 %v1305, 0.0
        %v1315 = vpack.c.bf16 %v1308, %v1307
        %v1316 = vpack.c.bf16 %v1310, %v1309
        %v1317 = vpack.c.bf16 %v1312, %v1311
        %v1318 = vpack.c.bf16 %v1314, %v1313
        %v1319 = vld [vmem:[%s5] sm:$0xf]
        %v1320 = vld [vmem:[%s5 + $0x4] sm:$0xf]
        %v1321 = vld [vmem:[%s5 + $0x8] sm:$0xf]
        %v1322 = vld [vmem:[%s5 + $0xc] sm:$0xf]
        %v1323 = vld [vmem:[%s6] sm:$0x1]
        %v1325 = vperm.slane %v1323, 0
        %v1331 = vunpack.c.l.b16 %v1319
        %v1332 = vunpack.c.l.b16 %v1320
        %v1333 = vunpack.c.l.b16 %v1321
        %v1334 = vunpack.c.l.b16 %v1322
        %v1335 = vpack.c.b16 %v1332, %v1331
        %v1336 = vpack.c.b16 %v1334, %v1333
        %v1340 = vsel %vm715, %v1315, 0
        %v1343 = vsel %vm715, %v1316, 0
        %v1346 = vsel %vm715, %v1317, 0
        %v1349 = vsel %vm715, %v1318, 0
        %1351 = vmatpush.bf16.msra.mxu0 0
        %1352 = vmatpush.bf16.msra.mxu0 0
        %1353 = vmatpush.bf16.msra.mxu0 0
        %1354 = vmatpush.bf16.msra.mxu0 0
        %1355 = vmatpush.bf16.msra.mxu0 0
        %1356 = vmatpush.bf16.msra.mxu0 0
        %1357 = vmatpush.bf16.msra.mxu0 %v1336
        %1358 = vmatpush.bf16.msra.mxu0 %v1335
        %1359 = vmatmul.bf16.gmra.mxu0 %v1340
        %v1360 = vpop.f32.mrf.mxu0
        %v1361 = vadd.f32 %v1325, %v1360
        %v1362 = vpop.f32.mrf.mxu0
        %v1363 = vadd.f32 %v1325, %v1362
        %1364 = vmatmul.bf16.gmra.mxu0 %v1343
        %v1365 = vpop.f32.mrf.mxu0
        %v1366 = vadd.f32 %v1325, %v1365
        %v1367 = vpop.f32.mrf.mxu0
        %v1368 = vadd.f32 %v1325, %v1367
        %1369 = vmatmul.bf16.gmra.mxu0 %v1346
        %v1370 = vpop.f32.mrf.mxu0
        %v1371 = vadd.f32 %v1325, %v1370
        %v1372 = vpop.f32.mrf.mxu0
        %v1373 = vadd.f32 %v1325, %v1372
        %1374 = vmatmul.bf16.gmra.mxu0 %v1349
        %v1375 = vpop.f32.mrf.mxu0
        %v1376 = vadd.f32 %v1325, %v1375
        %v1377 = vpop.f32.mrf.mxu0
        %v1378 = vadd.f32 %v1325, %v1377
        %1379 = vdwg.mxu0
        %v1380 = vpack.c.bf16 %v1363, %v1361
        %v1381 = vpack.c.bf16 %v1368, %v1366
        %v1382 = vpack.c.bf16 %v1373, %v1371
        %v1383 = vpack.c.bf16 %v1378, %v1376
        %v1384 = vld [vmem:[%s7] sm:$0xf]
        %v1385 = vld [vmem:[%s7 + $0x4] sm:$0xf]
        %v1386 = vld [vmem:[%s7 + $0x8] sm:$0xf]
        %v1387 = vld [vmem:[%s7 + $0xc] sm:$0xf]
        %v1388 = vld [vmem:[%s8] sm:$0xff]
        %v1389 = vld [vmem:[%s8 + $0x8] sm:$0xff]
        %v1390 = vld [vmem:[%s8 + $0x10] sm:$0xff]
        %v1391 = vld [vmem:[%s8 + $0x18] sm:$0xff]
        %v1392 = vld [vmem:[%s8 + $0x20] sm:$0xff]
        %v1393 = vld [vmem:[%s8 + $0x28] sm:$0xff]
        %v1394 = vld [vmem:[%s8 + $0x30] sm:$0xff]
        %v1395 = vld [vmem:[%s8 + $0x38] sm:$0xff]
        %v1400 = vunpack.c.l.b16 %v1384
        %v1401 = vunpack.c.l.b16 %v1385
        %v1402 = vunpack.c.l.b16 %v1386
        %v1403 = vunpack.c.l.b16 %v1387
        %v1404 = vpack.c.b16 %v1401, %v1400
        %v1405 = vpack.c.b16 %v1403, %v1402
        %v1409 = vsel %vm715, %v1380, 0
        %v1412 = vsel %vm715, %v1381, 0
        %v1415 = vsel %vm715, %v1382, 0
        %v1418 = vsel %vm715, %v1383, 0
        %1420 = vmatpush.bf16.msra.mxu0 0
        %1421 = vmatpush.bf16.msra.mxu0 0
        %1422 = vmatpush.bf16.msra.mxu0 0
        %1423 = vmatpush.bf16.msra.mxu0 0
        %1424 = vmatpush.bf16.msra.mxu0 0
        %1425 = vmatpush.bf16.msra.mxu0 0
        %1426 = vmatpush.bf16.msra.mxu0 %v1405
        %1427 = vmatpush.bf16.msra.mxu0 %v1404
        %1428 = vmatmul.bf16.gmra.mxu0 %v1409
        %v1429 = vpop.f32.mrf.mxu0
        %v1430 = vadd.f32 %v1388, %v1429
        %v1431 = vpop.f32.mrf.mxu0
        %v1432 = vadd.f32 %v1389, %v1431
        %1433 = vmatmul.bf16.gmra.mxu0 %v1412
        %v1434 = vpop.f32.mrf.mxu0
        %v1435 = vadd.f32 %v1390, %v1434
        %v1436 = vpop.f32.mrf.mxu0
        %v1437 = vadd.f32 %v1391, %v1436
        %1438 = vmatmul.bf16.gmra.mxu0 %v1415
        %v1439 = vpop.f32.mrf.mxu0
        %v1440 = vadd.f32 %v1392, %v1439
        %v1441 = vpop.f32.mrf.mxu0
        %v1442 = vadd.f32 %v1393, %v1441
        %1443 = vmatmul.bf16.gmra.mxu0 %v1418
        %v1444 = vpop.f32.mrf.mxu0
        %v1445 = vadd.f32 %v1394, %v1444
        %v1446 = vpop.f32.mrf.mxu0
        %v1447 = vadd.f32 %v1395, %v1446
        %1448 = vdwg.mxu0
        %v1449 = vsel %vm715, %v1430, 0.0
        %1450 = vadd.xlane.f32.xlu0 %v1449
        %v1451 = vpop.xlane.xlu0 %1450
        %v1452 = vsel %vm715, %v1432, 0.0
        %1453 = vadd.xlane.f32.xlu0 %v1452
        %v1454 = vpop.xlane.xlu0 %1453
        %v1455 = vsel %vm715, %v1435, 0.0
        %1456 = vadd.xlane.f32.xlu0 %v1455
        %v1457 = vpop.xlane.xlu0 %1456
        %v1458 = vsel %vm715, %v1437, 0.0
        %1459 = vadd.xlane.f32.xlu0 %v1458
        %v1460 = vpop.xlane.xlu0 %1459
        %v1461 = vsel %vm715, %v1440, 0.0
        %1462 = vadd.xlane.f32.xlu0 %v1461
        %v1463 = vpop.xlane.xlu0 %1462
        %v1464 = vsel %vm715, %v1442, 0.0
        %1465 = vadd.xlane.f32.xlu0 %v1464
        %v1466 = vpop.xlane.xlu0 %1465
        %v1467 = vsel %vm715, %v1445, 0.0
        %1468 = vadd.xlane.f32.xlu0 %v1467
        %v1469 = vpop.xlane.xlu0 %1468
        %v1470 = vsel %vm715, %v1447, 0.0
        %1471 = vadd.xlane.f32.xlu0 %v1470
        %v1472 = vpop.xlane.xlu0 %1471
        %v1473 = vrcp.pop 32.0
        %v1474 = vmul.f32 32.0, %v1473
        %v1475 = vsub.f32 1.0, %v1474
        %v1476 = vmul.f32 %v1473, %v1475
        %v1477 = vadd.f32 %v1473, %v1476
        %vm1478 = vweird.f32 %v1473
        %v1479 = vsel %vm1478, %v1473, %v1477
        %v1480 = vmul.f32 %v1451, %v1479
        %v1481 = vmul.f32 %v1454, %v1479
        %v1482 = vmul.f32 %v1457, %v1479
        %v1483 = vmul.f32 %v1460, %v1479
        %v1484 = vmul.f32 %v1463, %v1479
        %v1485 = vmul.f32 %v1466, %v1479
        %v1486 = vmul.f32 %v1469, %v1479
        %v1487 = vmul.f32 %v1472, %v1479
        %v1488 = vsub.f32 %v1430, %v1480
        %v1489 = vsub.f32 %v1432, %v1481
        %v1490 = vsub.f32 %v1435, %v1482
        %v1491 = vsub.f32 %v1437, %v1483
        %v1492 = vsub.f32 %v1440, %v1484
        %v1493 = vsub.f32 %v1442, %v1485
        %v1494 = vsub.f32 %v1445, %v1486
        %v1495 = vsub.f32 %v1447, %v1487
        %v1496 = vmul.f32 %v1488, %v1488
        %v1497 = vmul.f32 %v1489, %v1489
        %v1498 = vmul.f32 %v1490, %v1490
        %v1499 = vmul.f32 %v1491, %v1491
        %v1500 = vmul.f32 %v1492, %v1492
        %v1501 = vmul.f32 %v1493, %v1493
        %v1502 = vmul.f32 %v1494, %v1494
        %v1503 = vmul.f32 %v1495, %v1495
        %v1504 = vsel %vm715, %v1496, 0.0
        %1505 = vadd.xlane.f32.xlu0 %v1504
        %v1506 = vpop.xlane.xlu0 %1505
        %v1507 = vsel %vm715, %v1497, 0.0
        %1508 = vadd.xlane.f32.xlu0 %v1507
        %v1509 = vpop.xlane.xlu0 %1508
        %v1510 = vsel %vm715, %v1498, 0.0
        %1511 = vadd.xlane.f32.xlu0 %v1510
        %v1512 = vpop.xlane.xlu0 %1511
        %v1513 = vsel %vm715, %v1499, 0.0
        %1514 = vadd.xlane.f32.xlu0 %v1513
        %v1515 = vpop.xlane.xlu0 %1514
        %v1516 = vsel %vm715, %v1500, 0.0
        %1517 = vadd.xlane.f32.xlu0 %v1516
        %v1518 = vpop.xlane.xlu0 %1517
        %v1519 = vsel %vm715, %v1501, 0.0
        %1520 = vadd.xlane.f32.xlu0 %v1519
        %v1521 = vpop.xlane.xlu0 %1520
        %v1522 = vsel %vm715, %v1502, 0.0
        %1523 = vadd.xlane.f32.xlu0 %v1522
        %v1524 = vpop.xlane.xlu0 %1523
        %v1525 = vsel %vm715, %v1503, 0.0
        %1526 = vadd.xlane.f32.xlu0 %v1525
        %v1527 = vpop.xlane.xlu0 %1526
        %v1528 = vmul.f32 %v1506, %v1479
        %v1529 = vmul.f32 %v1509, %v1479
        %v1530 = vmul.f32 %v1512, %v1479
        %v1531 = vmul.f32 %v1515, %v1479
        %v1532 = vmul.f32 %v1518, %v1479
        %v1533 = vmul.f32 %v1521, %v1479
        %v1534 = vmul.f32 %v1524, %v1479
        %v1535 = vmul.f32 %v1527, %v1479
        %v1536 = vadd.f32 %v1528, 1e-06
        %v1537 = vadd.f32 %v1529, 1e-06
        %v1538 = vadd.f32 %v1530, 1e-06
        %v1539 = vadd.f32 %v1531, 1e-06
        %v1540 = vadd.f32 %v1532, 1e-06
        %v1541 = vadd.f32 %v1533, 1e-06
        %v1542 = vadd.f32 %v1534, 1e-06
        %v1543 = vadd.f32 %v1535, 1e-06
        %v1544 = vrsqrt.pop %v1536
        %v1545 = vmul.f32 %v1544, %v1536
        %v1546 = vmul.f32 %v1545, %v1544
        %v1547 = vmul.f32 0.5, %v1546
        %v1548 = vsub.f32 1.5, %v1547
        %v1549 = vmul.f32 %v1544, %v1548
        %vm1550 = vweird.f32 %v1536
        %vm1551 = vweird.f32 %v1544
        %vm1552 = vmor %vm1550, %vm1551
        %v1553 = vsel %vm1552, %v1544, %v1549
        %v1554 = vrsqrt.pop %v1537
        %v1555 = vmul.f32 %v1554, %v1537
        %v1556 = vmul.f32 %v1555, %v1554
        %v1557 = vmul.f32 0.5, %v1556
        %v1558 = vsub.f32 1.5, %v1557
        %v1559 = vmul.f32 %v1554, %v1558
        %vm1560 = vweird.f32 %v1537
        %vm1561 = vweird.f32 %v1554
        %vm1562 = vmor %vm1560, %vm1561
        %v1563 = vsel %vm1562, %v1554, %v1559
        %v1564 = vrsqrt.pop %v1538
        %v1565 = vmul.f32 %v1564, %v1538
        %v1566 = vmul.f32 %v1565, %v1564
        %v1567 = vmul.f32 0.5, %v1566
        %v1568 = vsub.f32 1.5, %v1567
        %v1569 = vmul.f32 %v1564, %v1568
        %vm1570 = vweird.f32 %v1538
        %vm1571 = vweird.f32 %v1564
        %vm1572 = vmor %vm1570, %vm1571
        %v1573 = vsel %vm1572, %v1564, %v1569
        %v1574 = vrsqrt.pop %v1539
        %v1575 = vmul.f32 %v1574, %v1539
        %v1576 = vmul.f32 %v1575, %v1574
        %v1577 = vmul.f32 0.5, %v1576
        %v1578 = vsub.f32 1.5, %v1577
        %v1579 = vmul.f32 %v1574, %v1578
        %vm1580 = vweird.f32 %v1539
        %vm1581 = vweird.f32 %v1574
        %vm1582 = vmor %vm1580, %vm1581
        %v1583 = vsel %vm1582, %v1574, %v1579
        %v1584 = vrsqrt.pop %v1540
        %v1585 = vmul.f32 %v1584, %v1540
        %v1586 = vmul.f32 %v1585, %v1584
        %v1587 = vmul.f32 0.5, %v1586
        %v1588 = vsub.f32 1.5, %v1587
        %v1589 = vmul.f32 %v1584, %v1588
        %vm1590 = vweird.f32 %v1540
        %vm1591 = vweird.f32 %v1584
        %vm1592 = vmor %vm1590, %vm1591
        %v1593 = vsel %vm1592, %v1584, %v1589
        %v1594 = vrsqrt.pop %v1541
        %v1595 = vmul.f32 %v1594, %v1541
        %v1596 = vmul.f32 %v1595, %v1594
        %v1597 = vmul.f32 0.5, %v1596
        %v1598 = vsub.f32 1.5, %v1597
        %v1599 = vmul.f32 %v1594, %v1598
        %vm1600 = vweird.f32 %v1541
        %vm1601 = vweird.f32 %v1594
        %vm1602 = vmor %vm1600, %vm1601
        %v1603 = vsel %vm1602, %v1594, %v1599
        %v1604 = vrsqrt.pop %v1542
        %v1605 = vmul.f32 %v1604, %v1542
        %v1606 = vmul.f32 %v1605, %v1604
        %v1607 = vmul.f32 0.5, %v1606
        %v1608 = vsub.f32 1.5, %v1607
        %v1609 = vmul.f32 %v1604, %v1608
        %vm1610 = vweird.f32 %v1542
        %vm1611 = vweird.f32 %v1604
        %vm1612 = vmor %vm1610, %vm1611
        %v1613 = vsel %vm1612, %v1604, %v1609
        %v1614 = vrsqrt.pop %v1543
        %v1615 = vmul.f32 %v1614, %v1543
        %v1616 = vmul.f32 %v1615, %v1614
        %v1617 = vmul.f32 0.5, %v1616
        %v1618 = vsub.f32 1.5, %v1617
        %v1619 = vmul.f32 %v1614, %v1618
        %vm1620 = vweird.f32 %v1543
        %vm1621 = vweird.f32 %v1614
        %vm1622 = vmor %vm1620, %vm1621
        %v1623 = vsel %vm1622, %v1614, %v1619
        %v1624 = vmul.f32 %v1488, %v1553
        %v1625 = vmul.f32 %v1489, %v1563
        %v1626 = vmul.f32 %v1490, %v1573
        %v1627 = vmul.f32 %v1491, %v1583
        %v1628 = vmul.f32 %v1492, %v1593
        %v1629 = vmul.f32 %v1493, %v1603
        %v1630 = vmul.f32 %v1494, %v1613
        %v1631 = vmul.f32 %v1495, %v1623
        %v1632 = vld [vmem:[%s9] sm:$0x1]
        %v1634 = vperm.slane %v1632, 0
        %v1636 = vmul.f32 %v1624, %v1634
        %v1637 = vmul.f32 %v1625, %v1634
        %v1638 = vmul.f32 %v1626, %v1634
        %v1639 = vmul.f32 %v1627, %v1634
        %v1640 = vmul.f32 %v1628, %v1634
        %v1641 = vmul.f32 %v1629, %v1634
        %v1642 = vmul.f32 %v1630, %v1634
        %v1643 = vmul.f32 %v1631, %v1634
        %v1644 = vld [vmem:[%s10] sm:$0x1]
        %v1646 = vperm.slane %v1644, 0
        %v1648 = vadd.f32 %v1636, %v1646
        %v1649 = vadd.f32 %v1637, %v1646
        %v1650 = vadd.f32 %v1638, %v1646
        %v1651 = vadd.f32 %v1639, %v1646
        %v1652 = vadd.f32 %v1640, %v1646
        %v1653 = vadd.f32 %v1641, %v1646
        %v1654 = vadd.f32 %v1642, %v1646
        %v1655 = vadd.f32 %v1643, %v1646
        %v1656 = vsel %vm715, %v1648, 0.0
        %v1657 = vsel %vm715, %v1649, 0.0
        %v1658 = vadd.f32 %v1656, %v1657
        %v1659 = vsel %vm715, %v1650, 0.0
        %v1660 = vadd.f32 %v1658, %v1659
        %v1661 = vsel %vm715, %v1651, 0.0
        %v1662 = vadd.f32 %v1660, %v1661
        %v1663 = vsel %vm715, %v1652, 0.0
        %v1664 = vadd.f32 %v1662, %v1663
        %v1665 = vsel %vm715, %v1653, 0.0
        %v1666 = vadd.f32 %v1664, %v1665
        %v1667 = vsel %vm715, %v1654, 0.0
        %v1668 = vadd.f32 %v1666, %v1667
        %v1669 = vsel %vm715, %v1655, 0.0
        %v1670 = vadd.f32 %v1668, %v1669
        %1671 = vadd.xlane.f32.xlu0 %v1670
        %v1672 = vpop.xlane.xlu0 %1671
        %v1673 = vrot.slane %v1672, 4
        %v1674 = vadd.f32 %v1672, %v1673
        %v1675 = vrot.slane %v1674, 2
        %v1676 = vadd.f32 %v1674, %v1675
        %v1677 = vrot.slane %v1676, 1
        %v1678 = vadd.f32 %v1676, %v1677
        %s1679 = vtos %v1678
        %v1680 = vrcp.pop 2048.0
        %v1681 = vmul.f32 2048.0, %v1680
        %v1682 = vsub.f32 1.0, %v1681
        %v1683 = vmul.f32 %v1680, %v1682
        %v1684 = vadd.f32 %v1680, %v1683
        %vm1685 = vweird.f32 %v1680
        %v1686 = vsel %vm1685, %v1680, %v1684
        %s1687 = vtos %v1686
        %s1688 = smul.f32 %s1679, %s1687
        %v1689 = vstv %s1688
        %v1690 = vsub.f32 %v1648, %v1689
        %v1691 = vsub.f32 %v1649, %v1689
        %v1692 = vsub.f32 %v1650, %v1689
        %v1693 = vsub.f32 %v1651, %v1689
        %v1694 = vsub.f32 %v1652, %v1689
        %v1695 = vsub.f32 %v1653, %v1689
        %v1696 = vsub.f32 %v1654, %v1689
        %v1697 = vsub.f32 %v1655, %v1689
        %v1698 = vmul.f32 %v1690, %v1690
        %v1699 = vmul.f32 %v1691, %v1691
        %v1700 = vmul.f32 %v1692, %v1692
        %v1701 = vmul.f32 %v1693, %v1693
        %v1702 = vmul.f32 %v1694, %v1694
        %v1703 = vmul.f32 %v1695, %v1695
        %v1704 = vmul.f32 %v1696, %v1696
        %v1705 = vmul.f32 %v1697, %v1697
        %v1706 = vsel %vm715, %v1698, 0.0
        %v1707 = vsel %vm715, %v1699, 0.0
        %v1708 = vadd.f32 %v1706, %v1707
        %v1709 = vsel %vm715, %v1700, 0.0
        %v1710 = vadd.f32 %v1708, %v1709
        %v1711 = vsel %vm715, %v1701, 0.0
        %v1712 = vadd.f32 %v1710, %v1711
        %v1713 = vsel %vm715, %v1702, 0.0
        %v1714 = vadd.f32 %v1712, %v1713
        %v1715 = vsel %vm715, %v1703, 0.0
        %v1716 = vadd.f32 %v1714, %v1715
        %v1717 = vsel %vm715, %v1704, 0.0
        %v1718 = vadd.f32 %v1716, %v1717
        %v1719 = vsel %vm715, %v1705, 0.0
        %v1720 = vadd.f32 %v1718, %v1719
        %1721 = vadd.xlane.f32.xlu0 %v1720
        %v1722 = vpop.xlane.xlu0 %1721
        %v1723 = vrot.slane %v1722, 4
        %v1724 = vadd.f32 %v1722, %v1723
        %v1725 = vrot.slane %v1724, 2
        %v1726 = vadd.f32 %v1724, %v1725
        %v1727 = vrot.slane %v1726, 1
        %v1728 = vadd.f32 %v1726, %v1727
        %s1729 = vtos %v1728
        %v1730 = vrcp.pop 2048.0
        %v1731 = vmul.f32 2048.0, %v1730
        %v1732 = vsub.f32 1.0, %v1731
        %v1733 = vmul.f32 %v1730, %v1732
        %v1734 = vadd.f32 %v1730, %v1733
        %vm1735 = vweird.f32 %v1730
        %v1736 = vsel %vm1735, %v1730, %v1734
        %s1737 = vtos %v1736
        %s1738 = smul.f32 %s1729, %s1737
        %s1739 = sadd.f32 %s1738, 1e-08
        %v1740 = vstv %s1739
        %v1741 = vrsqrt.pop %v1740
        %v1742 = vmul.f32 %v1741, %v1740
        %v1743 = vmul.f32 %v1742, %v1741
        %v1744 = vmul.f32 0.5, %v1743
        %v1745 = vsub.f32 1.5, %v1744
        %v1746 = vmul.f32 %v1741, %v1745
        %vm1747 = vweird.f32 %v1740
        %vm1748 = vweird.f32 %v1741
        %vm1749 = vmor %vm1747, %vm1748
        %v1750 = vsel %vm1749, %v1741, %v1746
        %s1751 = vtos %v1750
        %v1752 = vstv %s1751
        %v1753 = vmul.f32 %v1690, %v1752
        %v1754 = vmul.f32 %v1691, %v1752
        %v1755 = vmul.f32 %v1692, %v1752
        %v1756 = vmul.f32 %v1693, %v1752
        %v1757 = vmul.f32 %v1694, %v1752
        %v1758 = vmul.f32 %v1695, %v1752
        %v1759 = vmul.f32 %v1696, %v1752
        %v1760 = vmul.f32 %v1697, %v1752
        %v1761 = vld [vmem:[%s11] sm:$0x1]
        %v1763 = vperm.slane %v1761, 0
        %v1765 = vmul.f32 %v1753, %v1763
        %v1766 = vmul.f32 %v1754, %v1763
        %v1767 = vmul.f32 %v1755, %v1763
        %v1768 = vmul.f32 %v1756, %v1763
        %v1769 = vmul.f32 %v1757, %v1763
        %v1770 = vmul.f32 %v1758, %v1763
        %v1771 = vmul.f32 %v1759, %v1763
        %v1772 = vmul.f32 %v1760, %v1763
        %v1773 = vld [vmem:[%s12] sm:$0x1]
        %v1775 = vperm.slane %v1773, 0
        %v1777 = vadd.f32 %v1765, %v1775
        %v1778 = vadd.f32 %v1766, %v1775
        %v1779 = vadd.f32 %v1767, %v1775
        %v1780 = vadd.f32 %v1768, %v1775
        %v1781 = vadd.f32 %v1769, %v1775
        %v1782 = vadd.f32 %v1770, %v1775
        %v1783 = vadd.f32 %v1771, %v1775
        %v1784 = vadd.f32 %v1772, %v1775
        %v1785 = vadd.f32 %v1777, %v1430
        %v1786 = vadd.f32 %v1778, %v1432
        %v1787 = vadd.f32 %v1779, %v1435
        %v1788 = vadd.f32 %v1780, %v1437
        %v1789 = vadd.f32 %v1781, %v1440
        %v1790 = vadd.f32 %v1782, %v1442
        %v1791 = vadd.f32 %v1783, %v1445
        %v1792 = vadd.f32 %v1784, %v1447
        %s1793 = sld [smem:[#allocation3]]
        %vm1794 = vcmp.gt.f32.partialorder %v1785, 0.0
        %vm1795 = vcmp.gt.f32.partialorder %v1786, 0.0
        %vm1796 = vcmp.gt.f32.partialorder %v1787, 0.0
        %vm1797 = vcmp.gt.f32.partialorder %v1788, 0.0
        %vm1798 = vcmp.gt.f32.partialorder %v1789, 0.0
        %vm1799 = vcmp.gt.f32.partialorder %v1790, 0.0
        %vm1800 = vcmp.gt.f32.partialorder %v1791, 0.0
        %vm1801 = vcmp.gt.f32.partialorder %v1792, 0.0
        %v1802 = vstv %s1793
        %v1803 = vmul.f32 %v1802, %v1785
        %v1804 = vmul.f32 %v1802, %v1786
        %v1805 = vmul.f32 %v1802, %v1787
        %v1806 = vmul.f32 %v1802, %v1788
        %v1807 = vmul.f32 %v1802, %v1789
        %v1808 = vmul.f32 %v1802, %v1790
        %v1809 = vmul.f32 %v1802, %v1791
        %v1810 = vmul.f32 %v1802, %v1792
        %v1811 = vsel %vm1794, %v1785, %v1803
        %v1812 = vsel %vm1795, %v1786, %v1804
        %v1813 = vsel %vm1796, %v1787, %v1805
        %v1814 = vsel %vm1797, %v1788, %v1806
        %v1815 = vsel %vm1798, %v1789, %v1807
        %v1816 = vsel %vm1799, %v1790, %v1808
        %v1817 = vsel %vm1800, %v1791, %v1809
        %v1818 = vsel %vm1801, %v1792, %v1810
        %v1819 = vsel %vm715, %v1811, 0.0
        %v1820 = vsel %vm715, %v1812, 0.0
        %v1821 = vadd.f32 %v1819, %v1820
        %v1822 = vsel %vm715, %v1813, 0.0
        %v1823 = vadd.f32 %v1821, %v1822
        %v1824 = vsel %vm715, %v1814, 0.0
        %v1825 = vadd.f32 %v1823, %v1824
        %v1826 = vsel %vm715, %v1815, 0.0
        %v1827 = vadd.f32 %v1825, %v1826
        %v1828 = vsel %vm715, %v1816, 0.0
        %v1829 = vadd.f32 %v1827, %v1828
        %v1830 = vsel %vm715, %v1817, 0.0
        %v1831 = vadd.f32 %v1829, %v1830
        %v1832 = vsel %vm715, %v1818, 0.0
        %v1833 = vadd.f32 %v1831, %v1832
        %v1834 = vrot.slane %v1833, 4
        %v1835 = vadd.f32 %v1833, %v1834
        %v1836 = vrot.slane %v1835, 2
        %v1837 = vadd.f32 %v1835, %v1836
        %v1838 = vrot.slane %v1837, 1
        %v1839 = vadd.f32 %v1837, %v1838
        %v1840 = vrcp.pop 64.0
        %v1841 = vmul.f32 64.0, %v1840
        %v1842 = vsub.f32 1.0, %v1841
        %v1843 = vmul.f32 %v1840, %v1842
        %v1844 = vadd.f32 %v1840, %v1843
        %vm1845 = vweird.f32 %v1840
        %v1846 = vsel %vm1845, %v1840, %v1844
        %v1847 = vmul.f32 %v1839, %v1846
        %v1848 = vpack.c.bf16 %v1847, %v1847
        %v1849 = vld [vmem:[%s14] sm:$0xf]
        %v1850 = vld [vmem:[%s14 + $0x4] sm:$0xf]
        %v1851 = vld [vmem:[%s14 + $0x8] sm:$0xf]
        %v1852 = vld [vmem:[%s14 + $0xc] sm:$0xf]
        %v1853 = vld [vmem:[%s15] sm:$0x1]
        %v1858 = vunpack.c.l.b16 %v1849
        %v1859 = vunpack.c.l.b16 %v1850
        %v1860 = vunpack.c.l.b16 %v1851
        %v1861 = vunpack.c.l.b16 %v1852
        %v1862 = vpack.c.b16 %v1859, %v1858
        %v1863 = vpack.c.b16 %v1861, %v1860
        %v1867 = vsel %vm715, %v1848, 0
        %1869 = vmatpush.bf16.msra.mxu0 0
        %1870 = vmatpush.bf16.msra.mxu0 0
        %1871 = vmatpush.bf16.msra.mxu0 0
        %1872 = vmatpush.bf16.msra.mxu0 0
        %1873 = vmatpush.bf16.msra.mxu0 0
        %1874 = vmatpush.bf16.msra.mxu0 0
        %1875 = vmatpush.bf16.msra.mxu0 %v1863
        %1876 = vmatpush.bf16.msra.mxu0 %v1862
        %1877 = vmatmul.bf16.gmra.mxu0 %v1867
        %v1878 = vpop.f32.mrf.mxu0
        %v1879 = vadd.f32 %v1853, %v1878
        %v1880 = vpop.f32.mrf.mxu0
        %1881 = vdwg.mxu0
        %v1882 = vmax.f32 %v1879, 0.0
        %v1883 = vpack.c.bf16 %v1882, %v1882
        %v1884 = vld [vmem:[%s16] sm:$0x3]
        %v1885 = vld [vmem:[%s17] sm:$0x1]
        %vm1886 = vcmask 31744
        %v1888 = vsel %vm1886, %v1883, 0
        %vm1890 = vcmask 1041408
        %v1892 = vsel %vm1890, %v1884, 0
        %1894 = vmatpush.bf16.msra.mxu0 0
        %1895 = vmatpush.bf16.msra.mxu0 0
        %1896 = vmatpush.bf16.msra.mxu0 0
        %1897 = vmatpush.bf16.msra.mxu0 0
        %1898 = vmatpush.bf16.msra.mxu0 0
        %1899 = vmatpush.bf16.msra.mxu0 0
        %1900 = vmatpush.bf16.msra.mxu0 0
        %1901 = vmatpush.bf16.msra.mxu0 %v1892
        %1902 = vmatmul.bf16.gmra.mxu0 %v1888
        %v1903 = vpop.f32.mrf.mxu0
        %v1904 = vadd.f32 %v1885, %v1903
        %v1905 = vpop.f32.mrf.mxu0
        %1906 = vdwg.mxu0
        %v1907 = vxor.u32 %v1904, 2147483648
        %v1908 = vmul.f32 %v1907, 1.442695
        %v1909 = vpow.pop %v1908
        %v1910 = vadd.f32 %v1909, 1.0
        %v1911 = vrcp.pop %v1910
        %v1912 = vmul.f32 %v1910, %v1911
        %v1913 = vsub.f32 1.0, %v1912
        %v1914 = vmul.f32 %v1911, %v1913
        %v1915 = vadd.f32 %v1911, %v1914
        %vm1916 = vweird.f32 %v1910
        %vm1917 = vweird.f32 %v1911
        %vm1918 = vmor %vm1916, %vm1917
        %v1919 = vsel %vm1918, %v1911, %v1915
        %v1920 = vand.u32 2147483647, %v1910
        %vm1921 = vcmp.eq.f32.partialorder %v1920, 8.507059e+37
        %v1922 = vand.u32 %v1910, 2147483648
        %v1923 = vor.u32 1.1754944e-38, %v1922
        %v1924 = vsel %vm1921, %v1923, %v1919
        %v1925 = vmul.f32 1.0, %v1924
        %v1926 = vperm.slane %v1925, 0
        %v1927 = vmul.f32 %v1811, %v1926
        %v1928 = vmul.f32 %v1812, %v1926
        %v1929 = vmul.f32 %v1813, %v1926
        %v1930 = vmul.f32 %v1814, %v1926
        %v1931 = vmul.f32 %v1815, %v1926
        %v1932 = vmul.f32 %v1816, %v1926
        %v1933 = vmul.f32 %v1817, %v1926
        %v1934 = vmul.f32 %v1818, %v1926
        %v1935 = vpack.c.bf16 %v1928, %v1927
        %v1936 = vpack.c.bf16 %v1930, %v1929
        %v1937 = vpack.c.bf16 %v1932, %v1931
        %v1938 = vpack.c.bf16 %v1934, %v1933
        %v1939 = vld [vmem:[%s18] sm:$0xf]
        %v1940 = vld [vmem:[%s18 + $0x4] sm:$0xf]
        %v1941 = vld [vmem:[%s18 + $0x8] sm:$0xf]
        %v1942 = vld [vmem:[%s18 + $0xc] sm:$0xf]
        %v1943 = vld [vmem:[%s19] sm:$0x1]
        %v1945 = vperm.slane %v1943, 0
        %v1951 = vunpack.c.l.b16 %v1939
        %v1952 = vunpack.c.l.b16 %v1940
        %v1953 = vunpack.c.l.b16 %v1941
        %v1954 = vunpack.c.l.b16 %v1942
        %v1955 = vpack.c.b16 %v1952, %v1951
        %v1956 = vpack.c.b16 %v1954, %v1953
        %v1960 = vsel %vm715, %v1935, 0
        %v1963 = vsel %vm715, %v1936, 0
        %v1966 = vsel %vm715, %v1937, 0
        %v1969 = vsel %vm715, %v1938, 0
        %1971 = vmatpush.bf16.msra.mxu0 0
        %1972 = vmatpush.bf16.msra.mxu0 0
        %1973 = vmatpush.bf16.msra.mxu0 0
        %1974 = vmatpush.bf16.msra.mxu0 0
        %1975 = vmatpush.bf16.msra.mxu0 0
        %1976 = vmatpush.bf16.msra.mxu0 0
        %1977 = vmatpush.bf16.msra.mxu0 %v1956
        %1978 = vmatpush.bf16.msra.mxu0 %v1955
        %1979 = vmatmul.bf16.gmra.mxu0 %v1960
        %v1980 = vpop.f32.mrf.mxu0
        %v1981 = vadd.f32 %v1945, %v1980
        %v1982 = vpop.f32.mrf.mxu0
        %v1983 = vadd.f32 %v1945, %v1982
        %1984 = vmatmul.bf16.gmra.mxu0 %v1963
        %v1985 = vpop.f32.mrf.mxu0
        %v1986 = vadd.f32 %v1945, %v1985
        %v1987 = vpop.f32.mrf.mxu0
        %v1988 = vadd.f32 %v1945, %v1987
        %1989 = vmatmul.bf16.gmra.mxu0 %v1966
        %v1990 = vpop.f32.mrf.mxu0
        %v1991 = vadd.f32 %v1945, %v1990
        %v1992 = vpop.f32.mrf.mxu0
        %v1993 = vadd.f32 %v1945, %v1992
        %1994 = vmatmul.bf16.gmra.mxu0 %v1969
        %v1995 = vpop.f32.mrf.mxu0
        %v1996 = vadd.f32 %v1945, %v1995
        %v1997 = vpop.f32.mrf.mxu0
        %v1998 = vadd.f32 %v1945, %v1997
        %1999 = vdwg.mxu0
        %v2000 = vpack.c.bf16 %v1983, %v1981
        %v2001 = vpack.c.bf16 %v1988, %v1986
        %v2002 = vpack.c.bf16 %v1993, %v1991
        %v2003 = vpack.c.bf16 %v1998, %v1996
        %v2004 = vld [vmem:[%s20] sm:$0xf]
        %v2005 = vld [vmem:[%s20 + $0x4] sm:$0xf]
        %v2006 = vld [vmem:[%s20 + $0x8] sm:$0xf]
        %v2007 = vld [vmem:[%s20 + $0xc] sm:$0xf]
        %v2008 = vld [vmem:[%s21] sm:$0x1]
        %v2010 = vperm.slane %v2008, 0
        %v2016 = vunpack.c.l.b16 %v2004
        %v2017 = vunpack.c.l.b16 %v2005
        %v2018 = vunpack.c.l.b16 %v2006
        %v2019 = vunpack.c.l.b16 %v2007
        %v2020 = vpack.c.b16 %v2017, %v2016
        %v2021 = vpack.c.b16 %v2019, %v2018
        %v2025 = vsel %vm715, %v2000, 0
        %v2028 = vsel %vm715, %v2001, 0
        %v2031 = vsel %vm715, %v2002, 0
        %v2034 = vsel %vm715, %v2003, 0
        %2036 = vmatpush.bf16.msra.mxu0 0
        %2037 = vmatpush.bf16.msra.mxu0 0
        %2038 = vmatpush.bf16.msra.mxu0 0
        %2039 = vmatpush.bf16.msra.mxu0 0
        %2040 = vmatpush.bf16.msra.mxu0 0
        %2041 = vmatpush.bf16.msra.mxu0 0
        %2042 = vmatpush.bf16.msra.mxu0 %v2021
        %2043 = vmatpush.bf16.msra.mxu0 %v2020
        %2044 = vmatmul.bf16.gmra.mxu0 %v2025
        %v2045 = vpop.f32.mrf.mxu0
        %v2046 = vadd.f32 %v2010, %v2045
        %v2047 = vpop.f32.mrf.mxu0
        %v2048 = vadd.f32 %v2010, %v2047
        %2049 = vmatmul.bf16.gmra.mxu0 %v2028
        %v2050 = vpop.f32.mrf.mxu0
        %v2051 = vadd.f32 %v2010, %v2050
        %v2052 = vpop.f32.mrf.mxu0
        %v2053 = vadd.f32 %v2010, %v2052
        %2054 = vmatmul.bf16.gmra.mxu0 %v2031
        %v2055 = vpop.f32.mrf.mxu0
        %v2056 = vadd.f32 %v2010, %v2055
        %v2057 = vpop.f32.mrf.mxu0
        %v2058 = vadd.f32 %v2010, %v2057
        %2059 = vmatmul.bf16.gmra.mxu0 %v2034
        %v2060 = vpop.f32.mrf.mxu0
        %v2061 = vadd.f32 %v2010, %v2060
        %v2062 = vpop.f32.mrf.mxu0
        %v2063 = vadd.f32 %v2010, %v2062
        %2064 = vdwg.mxu0
        %v2065 = vtanh.pop %v2046
        %v2066 = vtanh.pop %v2048
        %v2067 = vtanh.pop %v2051
        %v2068 = vtanh.pop %v2053
        %v2069 = vtanh.pop %v2056
        %v2070 = vtanh.pop %v2058
        %v2071 = vtanh.pop %v2061
        %v2072 = vtanh.pop %v2063
        %v2073 = vxor.u32 %v2046, 2147483648
        %v2074 = vxor.u32 %v2048, 2147483648
        %v2075 = vxor.u32 %v2051, 2147483648
        %v2076 = vxor.u32 %v2053, 2147483648
        %v2077 = vxor.u32 %v2056, 2147483648
        %v2078 = vxor.u32 %v2058, 2147483648
        %v2079 = vxor.u32 %v2061, 2147483648
        %v2080 = vxor.u32 %v2063, 2147483648
        %v2081 = vmul.f32 %v2073, 1.442695
        %v2082 = vpow.pop %v2081
        %v2083 = vmul.f32 %v2074, 1.442695
        %v2084 = vpow.pop %v2083
        %v2085 = vmul.f32 %v2075, 1.442695
        %v2086 = vpow.pop %v2085
        %v2087 = vmul.f32 %v2076, 1.442695
        %v2088 = vpow.pop %v2087
        %v2089 = vmul.f32 %v2077, 1.442695
        %v2090 = vpow.pop %v2089
        %v2091 = vmul.f32 %v2078, 1.442695
        %v2092 = vpow.pop %v2091
        %v2093 = vmul.f32 %v2079, 1.442695
        %v2094 = vpow.pop %v2093
        %v2095 = vmul.f32 %v2080, 1.442695
        %v2096 = vpow.pop %v2095
        %v2097 = vadd.f32 %v2082, 1.0
        %v2098 = vadd.f32 %v2084, 1.0
        %v2099 = vadd.f32 %v2086, 1.0
        %v2100 = vadd.f32 %v2088, 1.0
        %v2101 = vadd.f32 %v2090, 1.0
        %v2102 = vadd.f32 %v2092, 1.0
        %v2103 = vadd.f32 %v2094, 1.0
        %v2104 = vadd.f32 %v2096, 1.0
        %v2105 = vrcp.pop %v2097
        %v2106 = vmul.f32 %v2097, %v2105
        %v2107 = vsub.f32 1.0, %v2106
        %v2108 = vmul.f32 %v2105, %v2107
        %v2109 = vadd.f32 %v2105, %v2108
        %vm2110 = vweird.f32 %v2097
        %vm2111 = vweird.f32 %v2105
        %vm2112 = vmor %vm2110, %vm2111
        %v2113 = vsel %vm2112, %v2105, %v2109
        %v2114 = vand.u32 2147483647, %v2097
        %vm2115 = vcmp.eq.f32.partialorder %v2114, 8.507059e+37
        %v2116 = vand.u32 %v2097, 2147483648
        %v2117 = vor.u32 1.1754944e-38, %v2116
        %v2118 = vsel %vm2115, %v2117, %v2113
        %v2119 = vmul.f32 1.0, %v2118
        %v2120 = vrcp.pop %v2098
        %v2121 = vmul.f32 %v2098, %v2120
        %v2122 = vsub.f32 1.0, %v2121
        %v2123 = vmul.f32 %v2120, %v2122
        %v2124 = vadd.f32 %v2120, %v2123
        %vm2125 = vweird.f32 %v2098
        %vm2126 = vweird.f32 %v2120
        %vm2127 = vmor %vm2125, %vm2126
        %v2128 = vsel %vm2127, %v2120, %v2124
        %v2129 = vand.u32 2147483647, %v2098
        %vm2130 = vcmp.eq.f32.partialorder %v2129, 8.507059e+37
        %v2131 = vand.u32 %v2098, 2147483648
        %v2132 = vor.u32 1.1754944e-38, %v2131
        %v2133 = vsel %vm2130, %v2132, %v2128
        %v2134 = vmul.f32 1.0, %v2133
        %v2135 = vrcp.pop %v2099
        %v2136 = vmul.f32 %v2099, %v2135
        %v2137 = vsub.f32 1.0, %v2136
        %v2138 = vmul.f32 %v2135, %v2137
        %v2139 = vadd.f32 %v2135, %v2138
        %vm2140 = vweird.f32 %v2099
        %vm2141 = vweird.f32 %v2135
        %vm2142 = vmor %vm2140, %vm2141
        %v2143 = vsel %vm2142, %v2135, %v2139
        %v2144 = vand.u32 2147483647, %v2099
        %vm2145 = vcmp.eq.f32.partialorder %v2144, 8.507059e+37
        %v2146 = vand.u32 %v2099, 2147483648
        %v2147 = vor.u32 1.1754944e-38, %v2146
        %v2148 = vsel %vm2145, %v2147, %v2143
        %v2149 = vmul.f32 1.0, %v2148
        %v2150 = vrcp.pop %v2100
        %v2151 = vmul.f32 %v2100, %v2150
        %v2152 = vsub.f32 1.0, %v2151
        %v2153 = vmul.f32 %v2150, %v2152
        %v2154 = vadd.f32 %v2150, %v2153
        %vm2155 = vweird.f32 %v2100
        %vm2156 = vweird.f32 %v2150
        %vm2157 = vmor %vm2155, %vm2156
        %v2158 = vsel %vm2157, %v2150, %v2154
        %v2159 = vand.u32 2147483647, %v2100
        %vm2160 = vcmp.eq.f32.partialorder %v2159, 8.507059e+37
        %v2161 = vand.u32 %v2100, 2147483648
        %v2162 = vor.u32 1.1754944e-38, %v2161
        %v2163 = vsel %vm2160, %v2162, %v2158
        %v2164 = vmul.f32 1.0, %v2163
        %v2165 = vrcp.pop %v2101
        %v2166 = vmul.f32 %v2101, %v2165
        %v2167 = vsub.f32 1.0, %v2166
        %v2168 = vmul.f32 %v2165, %v2167
        %v2169 = vadd.f32 %v2165, %v2168
        %vm2170 = vweird.f32 %v2101
        %vm2171 = vweird.f32 %v2165
        %vm2172 = vmor %vm2170, %vm2171
        %v2173 = vsel %vm2172, %v2165, %v2169
        %v2174 = vand.u32 2147483647, %v2101
        %vm2175 = vcmp.eq.f32.partialorder %v2174, 8.507059e+37
        %v2176 = vand.u32 %v2101, 2147483648
        %v2177 = vor.u32 1.1754944e-38, %v2176
        %v2178 = vsel %vm2175, %v2177, %v2173
        %v2179 = vmul.f32 1.0, %v2178
        %v2180 = vrcp.pop %v2102
        %v2181 = vmul.f32 %v2102, %v2180
        %v2182 = vsub.f32 1.0, %v2181
        %v2183 = vmul.f32 %v2180, %v2182
        %v2184 = vadd.f32 %v2180, %v2183
        %vm2185 = vweird.f32 %v2102
        %vm2186 = vweird.f32 %v2180
        %vm2187 = vmor %vm2185, %vm2186
        %v2188 = vsel %vm2187, %v2180, %v2184
        %v2189 = vand.u32 2147483647, %v2102
        %vm2190 = vcmp.eq.f32.partialorder %v2189, 8.507059e+37
        %v2191 = vand.u32 %v2102, 2147483648
        %v2192 = vor.u32 1.1754944e-38, %v2191
        %v2193 = vsel %vm2190, %v2192, %v2188
        %v2194 = vmul.f32 1.0, %v2193
        %v2195 = vrcp.pop %v2103
        %v2196 = vmul.f32 %v2103, %v2195
        %v2197 = vsub.f32 1.0, %v2196
        %v2198 = vmul.f32 %v2195, %v2197
        %v2199 = vadd.f32 %v2195, %v2198
        %vm2200 = vweird.f32 %v2103
        %vm2201 = vweird.f32 %v2195
        %vm2202 = vmor %vm2200, %vm2201
        %v2203 = vsel %vm2202, %v2195, %v2199
        %v2204 = vand.u32 2147483647, %v2103
        %vm2205 = vcmp.eq.f32.partialorder %v2204, 8.507059e+37
        %v2206 = vand.u32 %v2103, 2147483648
        %v2207 = vor.u32 1.1754944e-38, %v2206
        %v2208 = vsel %vm2205, %v2207, %v2203
        %v2209 = vmul.f32 1.0, %v2208
        %v2210 = vrcp.pop %v2104
        %v2211 = vmul.f32 %v2104, %v2210
        %v2212 = vsub.f32 1.0, %v2211
        %v2213 = vmul.f32 %v2210, %v2212
        %v2214 = vadd.f32 %v2210, %v2213
        %vm2215 = vweird.f32 %v2104
        %vm2216 = vweird.f32 %v2210
        %vm2217 = vmor %vm2215, %vm2216
        %v2218 = vsel %vm2217, %v2210, %v2214
        %v2219 = vand.u32 2147483647, %v2104
        %vm2220 = vcmp.eq.f32.partialorder %v2219, 8.507059e+37
        %v2221 = vand.u32 %v2104, 2147483648
        %v2222 = vor.u32 1.1754944e-38, %v2221
        %v2223 = vsel %vm2220, %v2222, %v2218
        %v2224 = vmul.f32 1.0, %v2223
        %2233 = vrot.lane.b32.xlu0 %v2119, 96
        %v2234 = vpop.permute.xlu0 %2233
        %2235 = vrot.lane.b32.xlu0 %v2134, 96
        %v2236 = vpop.permute.xlu0 %2235
        %2237 = vrot.lane.b32.xlu0 %v2149, 96
        %v2238 = vpop.permute.xlu0 %2237
        %2239 = vrot.lane.b32.xlu0 %v2164, 96
        %v2240 = vpop.permute.xlu0 %2239
        %2241 = vrot.lane.b32.xlu0 %v2179, 96
        %v2242 = vpop.permute.xlu0 %2241
        %2243 = vrot.lane.b32.xlu0 %v2194, 96
        %v2244 = vpop.permute.xlu0 %2243
        %2245 = vrot.lane.b32.xlu0 %v2209, 96
        %v2246 = vpop.permute.xlu0 %2245
        %2247 = vrot.lane.b32.xlu0 %v2224, 96
        %v2248 = vpop.permute.xlu0 %2247
        %v2257 = vmul.f32 %v2065, %v2234
        %v2258 = vmul.f32 %v2066, %v2236
        %v2259 = vmul.f32 %v2067, %v2238
        %v2260 = vmul.f32 %v2068, %v2240
        %v2261 = vmul.f32 %v2069, %v2242
        %v2262 = vmul.f32 %v2070, %v2244
        %v2263 = vmul.f32 %v2071, %v2246
        %v2264 = vmul.f32 %v2072, %v2248
        %v2265 = vpack.c.bf16 %v2258, %v2257
        %v2266 = vpack.c.bf16 %v2260, %v2259
        %v2267 = vpack.c.bf16 %v2262, %v2261
        %v2268 = vpack.c.bf16 %v2264, %v2263
        %v2269 = vld [vmem:[%s22] sm:$0xf]
        %v2270 = vld [vmem:[%s22 + $0x4] sm:$0xf]
        %v2271 = vld [vmem:[%s22 + $0x8] sm:$0xf]
        %v2272 = vld [vmem:[%s22 + $0xc] sm:$0xf]
        %v2277 = vunpack.c.l.b16 %v2269
        %v2278 = vunpack.c.l.b16 %v2270
        %v2279 = vunpack.c.l.b16 %v2271
        %v2280 = vunpack.c.l.b16 %v2272
        %v2281 = vpack.c.b16 %v2278, %v2277
        %v2282 = vpack.c.b16 %v2280, %v2279
        %v2286 = vsel %vm715, %v2265, 0
        %v2289 = vsel %vm715, %v2266, 0
        %v2292 = vsel %vm715, %v2267, 0
        %v2295 = vsel %vm715, %v2268, 0
        %2297 = vmatpush.bf16.msra.mxu0 0
        %2298 = vmatpush.bf16.msra.mxu0 0
        %2299 = vmatpush.bf16.msra.mxu0 0
        %2300 = vmatpush.bf16.msra.mxu0 0
        %2301 = vmatpush.bf16.msra.mxu0 0
        %2302 = vmatpush.bf16.msra.mxu0 0
        %2303 = vmatpush.bf16.msra.mxu0 %v2282
        %2304 = vmatpush.bf16.msra.mxu0 %v2281
        %2305 = vmatmul.bf16.gmra.mxu0 %v2286
        %v2306 = vpop.f32.mrf.mxu0
        %v2307 = vadd.f32 0.0, %v2306
        %v2308 = vpop.f32.mrf.mxu0
        %v2309 = vadd.f32 0.0, %v2308
        %2310 = vmatmul.bf16.gmra.mxu0 %v2289
        %v2311 = vpop.f32.mrf.mxu0
        %v2312 = vadd.f32 0.0, %v2311
        %v2313 = vpop.f32.mrf.mxu0
        %v2314 = vadd.f32 0.0, %v2313
        %2315 = vmatmul.bf16.gmra.mxu0 %v2292
        %v2316 = vpop.f32.mrf.mxu0
        %v2317 = vadd.f32 0.0, %v2316
        %v2318 = vpop.f32.mrf.mxu0
        %v2319 = vadd.f32 0.0, %v2318
        %2320 = vmatmul.bf16.gmra.mxu0 %v2295
        %v2321 = vpop.f32.mrf.mxu0
        %v2322 = vadd.f32 0.0, %v2321
        %v2323 = vpop.f32.mrf.mxu0
        %v2324 = vadd.f32 0.0, %v2323
        %2325 = vdwg.mxu0
        %v2326 = vmax.f32 %v2307, 0.0
        %v2327 = vmax.f32 %v2309, 0.0
        %v2328 = vmax.f32 %v2312, 0.0
        %v2329 = vmax.f32 %v2314, 0.0
        %v2330 = vmax.f32 %v2317, 0.0
        %v2331 = vmax.f32 %v2319, 0.0
        %v2332 = vmax.f32 %v2322, 0.0
        %v2333 = vmax.f32 %v2324, 0.0
        %2334 = vst.msk [vmem:[%s700] sm:$0xff] %vm715, %v2326
        %2335 = vst.msk [vmem:[%s700 + $0x8] sm:$0xff] %vm715, %v2327
        %2336 = vst.msk [vmem:[%s700 + $0x10] sm:$0xff] %vm715, %v2328
        %2337 = vst.msk [vmem:[%s700 + $0x18] sm:$0xff] %vm715, %v2329
        %2338 = vst.msk [vmem:[%s700 + $0x20] sm:$0xff] %vm715, %v2330
        %2339 = vst.msk [vmem:[%s700 + $0x28] sm:$0xff] %vm715, %v2331
        %2340 = vst.msk [vmem:[%s700 + $0x30] sm:$0xff] %vm715, %v2332
        %2341 = vst.msk [vmem:[%s700 + $0x38] sm:$0xff] %vm715, %v2333
        %v2342 = vld [vmem:[%s20] sm:$0xf]
        %v2343 = vld [vmem:[%s20 + $0x4] sm:$0xf]
        %v2344 = vld [vmem:[%s20 + $0x8] sm:$0xf]
        %v2345 = vld [vmem:[%s20 + $0xc] sm:$0xf]
        %v2346 = vld [vmem:[%s21] sm:$0x1]
        %v2348 = vperm.slane %v2346, 0
        %2354 = vrot.lane.b32.xlu0 %v2000, 96
        %v2355 = vpop.permute.xlu0 %2354
        %2356 = vrot.lane.b32.xlu0 %v2001, 96
        %v2357 = vpop.permute.xlu0 %2356
        %2358 = vrot.lane.b32.xlu0 %v2002, 96
        %v2359 = vpop.permute.xlu0 %2358
        %2360 = vrot.lane.b32.xlu0 %v2003, 96
        %v2361 = vpop.permute.xlu0 %2360
        %v2366 = vunpack.c.l.b16 %v2342
        %v2367 = vunpack.c.l.b16 %v2343
        %v2368 = vunpack.c.l.b16 %v2344
        %v2369 = vunpack.c.l.b16 %v2345
        %v2370 = vpack.c.b16 %v2367, %v2366
        %v2371 = vpack.c.b16 %v2369, %v2368
        %v2375 = vsel %vm715, %v2355, 0
        %v2378 = vsel %vm715, %v2357, 0
        %v2381 = vsel %vm715, %v2359, 0
        %v2384 = vsel %vm715, %v2361, 0
        %2386 = vmatpush.bf16.msra.mxu0 0
        %2387 = vmatpush.bf16.msra.mxu0 0
        %2388 = vmatpush.bf16.msra.mxu0 0
        %2389 = vmatpush.bf16.msra.mxu0 0
        %2390 = vmatpush.bf16.msra.mxu0 0
        %2391 = vmatpush.bf16.msra.mxu0 0
        %2392 = vmatpush.bf16.msra.mxu0 %v2371
        %2393 = vmatpush.bf16.msra.mxu0 %v2370
        %2394 = vmatmul.bf16.gmra.mxu0 %v2375
        %v2395 = vpop.f32.mrf.mxu0
        %v2396 = vadd.f32 %v2348, %v2395
        %v2397 = vpop.f32.mrf.mxu0
        %v2398 = vadd.f32 %v2348, %v2397
        %2399 = vmatmul.bf16.gmra.mxu0 %v2378
        %v2400 = vpop.f32.mrf.mxu0
        %v2401 = vadd.f32 %v2348, %v2400
        %v2402 = vpop.f32.mrf.mxu0
        %v2403 = vadd.f32 %v2348, %v2402
        %2404 = vmatmul.bf16.gmra.mxu0 %v2381
        %v2405 = vpop.f32.mrf.mxu0
        %v2406 = vadd.f32 %v2348, %v2405
        %v2407 = vpop.f32.mrf.mxu0
        %v2408 = vadd.f32 %v2348, %v2407
        %2409 = vmatmul.bf16.gmra.mxu0 %v2384
        %v2410 = vpop.f32.mrf.mxu0
        %v2411 = vadd.f32 %v2348, %v2410
        %v2412 = vpop.f32.mrf.mxu0
        %v2413 = vadd.f32 %v2348, %v2412
        %2414 = vdwg.mxu0
        %v2415 = vtanh.pop %v2396
        %v2416 = vtanh.pop %v2398
        %v2417 = vtanh.pop %v2401
        %v2418 = vtanh.pop %v2403
        %v2419 = vtanh.pop %v2406
        %v2420 = vtanh.pop %v2408
        %v2421 = vtanh.pop %v2411
        %v2422 = vtanh.pop %v2413
        %v2423 = vxor.u32 %v2396, 2147483648
        %v2424 = vxor.u32 %v2398, 2147483648
        %v2425 = vxor.u32 %v2401, 2147483648
        %v2426 = vxor.u32 %v2403, 2147483648
        %v2427 = vxor.u32 %v2406, 2147483648
        %v2428 = vxor.u32 %v2408, 2147483648
        %v2429 = vxor.u32 %v2411, 2147483648
        %v2430 = vxor.u32 %v2413, 2147483648
        %v2431 = vmul.f32 %v2423, 1.442695
        %v2432 = vpow.pop %v2431
        %v2433 = vmul.f32 %v2424, 1.442695
        %v2434 = vpow.pop %v2433
        %v2435 = vmul.f32 %v2425, 1.442695
        %v2436 = vpow.pop %v2435
        %v2437 = vmul.f32 %v2426, 1.442695
        %v2438 = vpow.pop %v2437
        %v2439 = vmul.f32 %v2427, 1.442695
        %v2440 = vpow.pop %v2439
        %v2441 = vmul.f32 %v2428, 1.442695
        %v2442 = vpow.pop %v2441
        %v2443 = vmul.f32 %v2429, 1.442695
        %v2444 = vpow.pop %v2443
        %v2445 = vmul.f32 %v2430, 1.442695
        %v2446 = vpow.pop %v2445
        %v2447 = vadd.f32 %v2432, 1.0
        %v2448 = vadd.f32 %v2434, 1.0
        %v2449 = vadd.f32 %v2436, 1.0
        %v2450 = vadd.f32 %v2438, 1.0
        %v2451 = vadd.f32 %v2440, 1.0
        %v2452 = vadd.f32 %v2442, 1.0
        %v2453 = vadd.f32 %v2444, 1.0
        %v2454 = vadd.f32 %v2446, 1.0
        %v2455 = vrcp.pop %v2447
        %v2456 = vmul.f32 %v2447, %v2455
        %v2457 = vsub.f32 1.0, %v2456
        %v2458 = vmul.f32 %v2455, %v2457
        %v2459 = vadd.f32 %v2455, %v2458
        %vm2460 = vweird.f32 %v2447
        %vm2461 = vweird.f32 %v2455
        %vm2462 = vmor %vm2460, %vm2461
        %v2463 = vsel %vm2462, %v2455, %v2459
        %v2464 = vand.u32 2147483647, %v2447
        %vm2465 = vcmp.eq.f32.partialorder %v2464, 8.507059e+37
        %v2466 = vand.u32 %v2447, 2147483648
        %v2467 = vor.u32 1.1754944e-38, %v2466
        %v2468 = vsel %vm2465, %v2467, %v2463
        %v2469 = vmul.f32 1.0, %v2468
        %v2470 = vrcp.pop %v2448
        %v2471 = vmul.f32 %v2448, %v2470
        %v2472 = vsub.f32 1.0, %v2471
        %v2473 = vmul.f32 %v2470, %v2472
        %v2474 = vadd.f32 %v2470, %v2473
        %vm2475 = vweird.f32 %v2448
        %vm2476 = vweird.f32 %v2470
        %vm2477 = vmor %vm2475, %vm2476
        %v2478 = vsel %vm2477, %v2470, %v2474
        %v2479 = vand.u32 2147483647, %v2448
        %vm2480 = vcmp.eq.f32.partialorder %v2479, 8.507059e+37
        %v2481 = vand.u32 %v2448, 2147483648
        %v2482 = vor.u32 1.1754944e-38, %v2481
        %v2483 = vsel %vm2480, %v2482, %v2478
        %v2484 = vmul.f32 1.0, %v2483
        %v2485 = vrcp.pop %v2449
        %v2486 = vmul.f32 %v2449, %v2485
        %v2487 = vsub.f32 1.0, %v2486
        %v2488 = vmul.f32 %v2485, %v2487
        %v2489 = vadd.f32 %v2485, %v2488
        %vm2490 = vweird.f32 %v2449
        %vm2491 = vweird.f32 %v2485
        %vm2492 = vmor %vm2490, %vm2491
        %v2493 = vsel %vm2492, %v2485, %v2489
        %v2494 = vand.u32 2147483647, %v2449
        %vm2495 = vcmp.eq.f32.partialorder %v2494, 8.507059e+37
        %v2496 = vand.u32 %v2449, 2147483648
        %v2497 = vor.u32 1.1754944e-38, %v2496
        %v2498 = vsel %vm2495, %v2497, %v2493
        %v2499 = vmul.f32 1.0, %v2498
        %v2500 = vrcp.pop %v2450
        %v2501 = vmul.f32 %v2450, %v2500
        %v2502 = vsub.f32 1.0, %v2501
        %v2503 = vmul.f32 %v2500, %v2502
        %v2504 = vadd.f32 %v2500, %v2503
        %vm2505 = vweird.f32 %v2450
        %vm2506 = vweird.f32 %v2500
        %vm2507 = vmor %vm2505, %vm2506
        %v2508 = vsel %vm2507, %v2500, %v2504
        %v2509 = vand.u32 2147483647, %v2450
        %vm2510 = vcmp.eq.f32.partialorder %v2509, 8.507059e+37
        %v2511 = vand.u32 %v2450, 2147483648
        %v2512 = vor.u32 1.1754944e-38, %v2511
        %v2513 = vsel %vm2510, %v2512, %v2508
        %v2514 = vmul.f32 1.0, %v2513
        %v2515 = vrcp.pop %v2451
        %v2516 = vmul.f32 %v2451, %v2515
        %v2517 = vsub.f32 1.0, %v2516
        %v2518 = vmul.f32 %v2515, %v2517
        %v2519 = vadd.f32 %v2515, %v2518
        %vm2520 = vweird.f32 %v2451
        %vm2521 = vweird.f32 %v2515
        %vm2522 = vmor %vm2520, %vm2521
        %v2523 = vsel %vm2522, %v2515, %v2519
        %v2524 = vand.u32 2147483647, %v2451
        %vm2525 = vcmp.eq.f32.partialorder %v2524, 8.507059e+37
        %v2526 = vand.u32 %v2451, 2147483648
        %v2527 = vor.u32 1.1754944e-38, %v2526
        %v2528 = vsel %vm2525, %v2527, %v2523
        %v2529 = vmul.f32 1.0, %v2528
        %v2530 = vrcp.pop %v2452
        %v2531 = vmul.f32 %v2452, %v2530
        %v2532 = vsub.f32 1.0, %v2531
        %v2533 = vmul.f32 %v2530, %v2532
        %v2534 = vadd.f32 %v2530, %v2533
        %vm2535 = vweird.f32 %v2452
        %vm2536 = vweird.f32 %v2530
        %vm2537 = vmor %vm2535, %vm2536
        %v2538 = vsel %vm2537, %v2530, %v2534
        %v2539 = vand.u32 2147483647, %v2452
        %vm2540 = vcmp.eq.f32.partialorder %v2539, 8.507059e+37
        %v2541 = vand.u32 %v2452, 2147483648
        %v2542 = vor.u32 1.1754944e-38, %v2541
        %v2543 = vsel %vm2540, %v2542, %v2538
        %v2544 = vmul.f32 1.0, %v2543
        %v2545 = vrcp.pop %v2453
        %v2546 = vmul.f32 %v2453, %v2545
        %v2547 = vsub.f32 1.0, %v2546
        %v2548 = vmul.f32 %v2545, %v2547
        %v2549 = vadd.f32 %v2545, %v2548
        %vm2550 = vweird.f32 %v2453
        %vm2551 = vweird.f32 %v2545
        %vm2552 = vmor %vm2550, %vm2551
        %v2553 = vsel %vm2552, %v2545, %v2549
        %v2554 = vand.u32 2147483647, %v2453
        %vm2555 = vcmp.eq.f32.partialorder %v2554, 8.507059e+37
        %v2556 = vand.u32 %v2453, 2147483648
        %v2557 = vor.u32 1.1754944e-38, %v2556
        %v2558 = vsel %vm2555, %v2557, %v2553
        %v2559 = vmul.f32 1.0, %v2558
        %v2560 = vrcp.pop %v2454
        %v2561 = vmul.f32 %v2454, %v2560
        %v2562 = vsub.f32 1.0, %v2561
        %v2563 = vmul.f32 %v2560, %v2562
        %v2564 = vadd.f32 %v2560, %v2563
        %vm2565 = vweird.f32 %v2454
        %vm2566 = vweird.f32 %v2560
        %vm2567 = vmor %vm2565, %vm2566
        %v2568 = vsel %vm2567, %v2560, %v2564
        %v2569 = vand.u32 2147483647, %v2454
        %vm2570 = vcmp.eq.f32.partialorder %v2569, 8.507059e+37
        %v2571 = vand.u32 %v2454, 2147483648
        %v2572 = vor.u32 1.1754944e-38, %v2571
        %v2573 = vsel %vm2570, %v2572, %v2568
        %v2574 = vmul.f32 1.0, %v2573
        %2583 = vrot.lane.b32.xlu0 %v2469, 96
        %v2584 = vpop.permute.xlu0 %2583
        %2585 = vrot.lane.b32.xlu0 %v2484, 96
        %v2586 = vpop.permute.xlu0 %2585
        %2587 = vrot.lane.b32.xlu0 %v2499, 96
        %v2588 = vpop.permute.xlu0 %2587
        %2589 = vrot.lane.b32.xlu0 %v2514, 96
        %v2590 = vpop.permute.xlu0 %2589
        %2591 = vrot.lane.b32.xlu0 %v2529, 96
        %v2592 = vpop.permute.xlu0 %2591
        %2593 = vrot.lane.b32.xlu0 %v2544, 96
        %v2594 = vpop.permute.xlu0 %2593
        %2595 = vrot.lane.b32.xlu0 %v2559, 96
        %v2596 = vpop.permute.xlu0 %2595
        %2597 = vrot.lane.b32.xlu0 %v2574, 96
        %v2598 = vpop.permute.xlu0 %2597
        %v2607 = vmul.f32 %v2415, %v2584
        %v2608 = vmul.f32 %v2416, %v2586
        %v2609 = vmul.f32 %v2417, %v2588
        %v2610 = vmul.f32 %v2418, %v2590
        %v2611 = vmul.f32 %v2419, %v2592
        %v2612 = vmul.f32 %v2420, %v2594
        %v2613 = vmul.f32 %v2421, %v2596
        %v2614 = vmul.f32 %v2422, %v2598
        %v2615 = vpack.c.bf16 %v2608, %v2607
        %v2616 = vpack.c.bf16 %v2610, %v2609
        %v2617 = vpack.c.bf16 %v2612, %v2611
        %v2618 = vpack.c.bf16 %v2614, %v2613
        %v2619 = vld [vmem:[%s22] sm:$0xf]
        %v2620 = vld [vmem:[%s22 + $0x4] sm:$0xf]
        %v2621 = vld [vmem:[%s22 + $0x8] sm:$0xf]
        %v2622 = vld [vmem:[%s22 + $0xc] sm:$0xf]
        %v2627 = vunpack.c.l.b16 %v2619
        %v2628 = vunpack.c.l.b16 %v2620
        %v2629 = vunpack.c.l.b16 %v2621
        %v2630 = vunpack.c.l.b16 %v2622
        %v2631 = vpack.c.b16 %v2628, %v2627
        %v2632 = vpack.c.b16 %v2630, %v2629
        %v2636 = vsel %vm715, %v2615, 0
        %v2639 = vsel %vm715, %v2616, 0
        %v2642 = vsel %vm715, %v2617, 0
        %v2645 = vsel %vm715, %v2618, 0
        %2647 = vmatpush.bf16.msra.mxu0 0
        %2648 = vmatpush.bf16.msra.mxu0 0
        %2649 = vmatpush.bf16.msra.mxu0 0
        %2650 = vmatpush.bf16.msra.mxu0 0
        %2651 = vmatpush.bf16.msra.mxu0 0
        %2652 = vmatpush.bf16.msra.mxu0 0
        %2653 = vmatpush.bf16.msra.mxu0 %v2632
        %2654 = vmatpush.bf16.msra.mxu0 %v2631
        %2655 = vmatmul.bf16.gmra.mxu0 %v2636
        %v2656 = vpop.f32.mrf.mxu0
        %v2657 = vadd.f32 0.0, %v2656
        %v2658 = vpop.f32.mrf.mxu0
        %v2659 = vadd.f32 0.0, %v2658
        %2660 = vmatmul.bf16.gmra.mxu0 %v2639
        %v2661 = vpop.f32.mrf.mxu0
        %v2662 = vadd.f32 0.0, %v2661
        %v2663 = vpop.f32.mrf.mxu0
        %v2664 = vadd.f32 0.0, %v2663
        %2665 = vmatmul.bf16.gmra.mxu0 %v2642
        %v2666 = vpop.f32.mrf.mxu0
        %v2667 = vadd.f32 0.0, %v2666
        %v2668 = vpop.f32.mrf.mxu0
        %v2669 = vadd.f32 0.0, %v2668
        %2670 = vmatmul.bf16.gmra.mxu0 %v2645
        %v2671 = vpop.f32.mrf.mxu0
        %v2672 = vadd.f32 0.0, %v2671
        %v2673 = vpop.f32.mrf.mxu0
        %v2674 = vadd.f32 0.0, %v2673
        %2675 = vdwg.mxu0
        %v2676 = vmax.f32 %v2657, 0.0
        %v2677 = vmax.f32 %v2659, 0.0
        %v2678 = vmax.f32 %v2662, 0.0
        %v2679 = vmax.f32 %v2664, 0.0
        %v2680 = vmax.f32 %v2667, 0.0
        %v2681 = vmax.f32 %v2669, 0.0
        %v2682 = vmax.f32 %v2672, 0.0
        %v2683 = vmax.f32 %v2674, 0.0
        %s2684 = scalar_lea.vmem %s700, 64 [#allocation4]
        %2685 = vst.msk [vmem:[%s2684] sm:$0xff] %vm715, %v2676
        %2686 = vst.msk [vmem:[%s2684 + $0x8] sm:$0xff] %vm715, %v2677
        %2687 = vst.msk [vmem:[%s2684 + $0x10] sm:$0xff] %vm715, %v2678
        %2688 = vst.msk [vmem:[%s2684 + $0x18] sm:$0xff] %vm715, %v2679
        %2689 = vst.msk [vmem:[%s2684 + $0x20] sm:$0xff] %vm715, %v2680
        %2690 = vst.msk [vmem:[%s2684 + $0x28] sm:$0xff] %vm715, %v2681
        %2691 = vst.msk [vmem:[%s2684 + $0x30] sm:$0xff] %vm715, %v2682
        %2692 = vst.msk [vmem:[%s2684 + $0x38] sm:$0xff] %vm715, %v2683
        %s2693 = sand.u32 %s531, 1
        %s2694 = sand.u32 %s531, 1
        %s2695 = smul.addr %s2694, 128
        %s2696 = scalar_lea.vmem [#allocation4], %s2695
        // Predicated region
        $region113: #{forward.1} parent=111 // pred_check
          %p2697 = pneg %p541
        $region114: #{forward.1} parent=111 // pred_check_branch
          %2699 = sbr.rel (%p2697) target = $region116
        $region115: #{forward.1} parent=111 // pred_region
          %s2700 = smul.addr %s35, 8
          %s2701 = smul.addr %s2700, 8
          %s2702 = scalar_lea.vmem %s23, %s2701
          // Predicated region
          $region117: #{forward.1} parent=115 // pred_check
            _
          $region118: #{forward.1} parent=115 // pred_check_branch
            %2704 = sbr.rel (0) target = $region120
          $region119: #{forward.1} parent=115 // pred_region
            // Predicated region
            $region121: #{forward.1} parent=119 // pred_check
              _
            $region122: #{forward.1} parent=119 // pred_check_branch
              %2706 = sbr.rel (0) target = $region124
            $region123: #{forward.1} parent=119 // pred_region
              // Predicated region
              $region136: #{forward.1} parent=123 // pred_check
                _
              $region137: #{forward.1} parent=123 // pred_check_branch
                %2752 = sbr.rel (0) target = $region139
              $region138: #{forward.1} parent=123 // pred_region
                loop: start=0, step=1, limit=1
                $region140: #{forward.1} parent=138 // loop_pre_header
                  _
                $region141: #{forward.1} parent=138 // loop_header
                  %s2754 = sphi 0, %s2758
                  %p2755 = scmp.ge.s32.totalorder %s2754, 1
                  %s2759 = sphi %s2696, %s2696
                  %s2760 = sphi %s2702, %s2702
                $region142: #{forward.1} parent=138 // loop_header_branch
                  %2757 = sbr.rel (%p2755) target = $region146
                $region143: #{forward.1} parent=138 // loop_body
                  %v2761 = vld [vmem:[%s2759] sm:$0xff]
                  %2762 = vst [vmem:[%s2760] sm:$0xff] %v2761
                  %v2763 = vld [vmem:[%s2759 + $0x8] sm:$0xff]
                  %2764 = vst [vmem:[%s2760 + $0x8] sm:$0xff] %v2763
                  %v2765 = vld [vmem:[%s2759 + $0x10] sm:$0xff]
                  %2766 = vst [vmem:[%s2760 + $0x10] sm:$0xff] %v2765
                  %v2767 = vld [vmem:[%s2759 + $0x18] sm:$0xff]
                  %2768 = vst [vmem:[%s2760 + $0x18] sm:$0xff] %v2767
                  %v2769 = vld [vmem:[%s2759 + $0x20] sm:$0xff]
                  %2770 = vst [vmem:[%s2760 + $0x20] sm:$0xff] %v2769
                  %v2771 = vld [vmem:[%s2759 + $0x28] sm:$0xff]
                  %2772 = vst [vmem:[%s2760 + $0x28] sm:$0xff] %v2771
                  %v2773 = vld [vmem:[%s2759 + $0x30] sm:$0xff]
                  %2774 = vst [vmem:[%s2760 + $0x30] sm:$0xff] %v2773
                  %v2775 = vld [vmem:[%s2759 + $0x38] sm:$0xff]
                  %2776 = vst [vmem:[%s2760 + $0x38] sm:$0xff] %v2775
                  %v2777 = vld [vmem:[%s2759 + $0x40] sm:$0xff]
                  %2778 = vst [vmem:[%s2760 + $0x80] sm:$0xff] %v2777
                  %v2779 = vld [vmem:[%s2759 + $0x48] sm:$0xff]
                  %2780 = vst [vmem:[%s2760 + $0x88] sm:$0xff] %v2779
                  %v2781 = vld [vmem:[%s2759 + $0x50] sm:$0xff]
                  %2782 = vst [vmem:[%s2760 + $0x90] sm:$0xff] %v2781
                  %v2783 = vld [vmem:[%s2759 + $0x58] sm:$0xff]
                  %2784 = vst [vmem:[%s2760 + $0x98] sm:$0xff] %v2783
                  %v2785 = vld [vmem:[%s2759 + $0x60] sm:$0xff]
                  %2786 = vst [vmem:[%s2760 + $0xa0] sm:$0xff] %v2785
                  %v2787 = vld [vmem:[%s2759 + $0x68] sm:$0xff]
                  %2788 = vst [vmem:[%s2760 + $0xa8] sm:$0xff] %v2787
                  %v2789 = vld [vmem:[%s2759 + $0x70] sm:$0xff]
                  %2790 = vst [vmem:[%s2760 + $0xb0] sm:$0xff] %v2789
                  %v2791 = vld [vmem:[%s2759 + $0x78] sm:$0xff]
                  %2792 = vst [vmem:[%s2760 + $0xb8] sm:$0xff] %v2791
                $region144: #{forward.1} parent=138 // loop_footer
                  %s2758 = sadd.s32 1, %s2754
                $region145: #{forward.1} parent=138 // loop_footer_branch
                  %2753 = sbr.rel target = $region141
                $region146: #{forward.1} parent=138 // loop_exit
                  _
              $region139: #{forward.1} parent=123 // pred_fallthru
                _
              // Predicated region
              $region147: #{forward.1} parent=123 // pred_check
                _
              $region148: #{forward.1} parent=123 // pred_check_branch
                %2794 = sbr.rel target = $region150
              $region149: #{forward.1} parent=123 // pred_region
                _
              $region150: #{forward.1} parent=123 // pred_fallthru
                _
            $region124: #{forward.1} parent=119 // pred_fallthru
              _
            // Predicated region
            $region125: #{forward.1} parent=119 // pred_check
              _
            $region126: #{forward.1} parent=119 // pred_check_branch
              %2708 = sbr.rel target = $region128
            $region127: #{forward.1} parent=119 // pred_region
              %s2710 = ssub.s32 256, 1
              loop: start=0, step=1, limit=1
              $region129: #{forward.1} parent=127 // loop_pre_header
                _
              $region130: #{forward.1} parent=127 // loop_header
                %s2712 = sphi 0, %s2716
                %p2713 = scmp.ge.s32.totalorder %s2712, 1
                %s2717 = sphi %s2696, %s2696
                %s2718 = sphi %s2702, %s2702
              $region131: #{forward.1} parent=127 // loop_header_branch
                %2715 = sbr.rel (%p2713) target = $region135
              $region132: #{forward.1} parent=127 // loop_body
                %v2719 = vld [vmem:[%s2717] sm:%s2710]
                %2720 = vst [vmem:[%s2718] sm:%s2710] %v2719
                %v2721 = vld [vmem:[%s2717 + $0x8] sm:%s2710]
                %2722 = vst [vmem:[%s2718 + $0x8] sm:%s2710] %v2721
                %v2723 = vld [vmem:[%s2717 + $0x10] sm:%s2710]
                %2724 = vst [vmem:[%s2718 + $0x10] sm:%s2710] %v2723
                %v2725 = vld [vmem:[%s2717 + $0x18] sm:%s2710]
                %2726 = vst [vmem:[%s2718 + $0x18] sm:%s2710] %v2725
                %v2727 = vld [vmem:[%s2717 + $0x20] sm:%s2710]
                %2728 = vst [vmem:[%s2718 + $0x20] sm:%s2710] %v2727
                %v2729 = vld [vmem:[%s2717 + $0x28] sm:%s2710]
                %2730 = vst [vmem:[%s2718 + $0x28] sm:%s2710] %v2729
                %v2731 = vld [vmem:[%s2717 + $0x30] sm:%s2710]
                %2732 = vst [vmem:[%s2718 + $0x30] sm:%s2710] %v2731
                %v2733 = vld [vmem:[%s2717 + $0x38] sm:%s2710]
                %2734 = vst [vmem:[%s2718 + $0x38] sm:%s2710] %v2733
                %v2735 = vld [vmem:[%s2717 + $0x40] sm:%s2710]
                %2736 = vst [vmem:[%s2718 + $0x80] sm:%s2710] %v2735
                %v2737 = vld [vmem:[%s2717 + $0x48] sm:%s2710]
                %2738 = vst [vmem:[%s2718 + $0x88] sm:%s2710] %v2737
                %v2739 = vld [vmem:[%s2717 + $0x50] sm:%s2710]
                %2740 = vst [vmem:[%s2718 + $0x90] sm:%s2710] %v2739
                %v2741 = vld [vmem:[%s2717 + $0x58] sm:%s2710]
                %2742 = vst [vmem:[%s2718 + $0x98] sm:%s2710] %v2741
                %v2743 = vld [vmem:[%s2717 + $0x60] sm:%s2710]
                %2744 = vst [vmem:[%s2718 + $0xa0] sm:%s2710] %v2743
                %v2745 = vld [vmem:[%s2717 + $0x68] sm:%s2710]
                %2746 = vst [vmem:[%s2718 + $0xa8] sm:%s2710] %v2745
                %v2747 = vld [vmem:[%s2717 + $0x70] sm:%s2710]
                %2748 = vst [vmem:[%s2718 + $0xb0] sm:%s2710] %v2747
                %v2749 = vld [vmem:[%s2717 + $0x78] sm:%s2710]
                %2750 = vst [vmem:[%s2718 + $0xb8] sm:%s2710] %v2749
              $region133: #{forward.1} parent=127 // loop_footer
                %s2716 = sadd.s32 1, %s2712
              $region134: #{forward.1} parent=127 // loop_footer_branch
                %2711 = sbr.rel target = $region130
              $region135: #{forward.1} parent=127 // loop_exit
                _
            $region128: #{forward.1} parent=119 // pred_fallthru
              _
          $region120: #{forward.1} parent=115 // pred_fallthru
            _
          %2795 = vnop
        $region116: #{forward.1} parent=111 // pred_fallthru
          _
      $region112: #{forward.1} parent=5 // pred_fallthru
        _
      %p2796 = scmp.le.s32.totalorder 2, %s30
      // Predicated region
      $region151: #{forward.1} parent=5 // pred_check
        %p2797 = pneg %p2796
      $region152: #{forward.1} parent=5 // pred_check_branch
        %2799 = sbr.rel (%p2797) target = $region154
      $region153: #{forward.1} parent=5 // pred_region
        %s2800 = ssub.s32 %s30, 2
        // Predicated region
        $region155: #{forward.1} parent=153 // pred_check
          %p2801 = pneg %p547
        $region156: #{forward.1} parent=153 // pred_check_branch
          %2803 = sbr.rel (%p2801) target = $region158
        $region157: #{forward.1} parent=153 // pred_region
          %s2804 = sand.u32 %s532, 1
          %s2805 = sand.u32 %s532, 1
          %s2806 = smul.addr %s2805, 128
          %s2807 = scalar_lea.vmem [#allocation4], %s2806
        $region158: #{forward.1} parent=153 // pred_fallthru
          _
      $region154: #{forward.1} parent=5 // pred_fallthru
        _
    $region6: #{forward.1} parent=1 // loop_footer
      %s34 = sadd.s32 1, %s30
    $region7: #{forward.1} parent=1 // loop_footer_branch
      %29 = sbr.rel target = $region3
    $region8: #{forward.1} parent=1 // loop_exit
      _

</llo_original>
